<compile_context>
chip_gen: v6e
topology: v6e:2x2x1
jax: 0.10.0
libtpu: 0.0.40
codegen_flags: <defaults>
</compile_context>

<pallas_src>
import functools

import jax
import jax.numpy as jnp
from jax import lax
from jax.experimental import pallas as pl
from jax.experimental.pallas import tpu as pltpu


# ----------------------------------------------------------------------------
# Fused kernel
# ----------------------------------------------------------------------------
def _fused_bilstm_kernel(*refs, hidden_dim, seq_len, batch, n_layers,
                         has_seq_scratch):
    """All LSTM layers + mean over time + MLP in one kernel.

    inputs : x (T*B, Din) bf16,
             per layer: wih (d_in, 8H) bf16, whh_bd (2H, 8H) bf16, bias (1,8H) f32,
             MLP: w1 (2H,128), b1 (1,128), w2 (128,128), b2 (1,128),
                  w3 (128,Cp), b3 (1,Cp)   (all f32)
    output : logits (B, Cp) f32
    scratch: xg (T*B, 8H) f32, seq (T*B, 2H) bf16 (if n_layers > 1)
    """
    H, T, B = hidden_dim, seq_len, batch
    n_in = 1 + 3 * n_layers + 6
    x_ref = refs[0]
    layer_refs = [refs[1 + 3 * l: 1 + 3 * (l + 1)] for l in range(n_layers)]
    (w1_ref, b1_ref, w2_ref, b2_ref, w3_ref, b3_ref) = refs[1 + 3 * n_layers: n_in]
    out_ref = refs[n_in]
    xg_ref = refs[n_in + 1]
    seq_ref = refs[n_in + 2] if has_seq_scratch else None

    # ---- hoisted lane masks / scale vectors (interleaved gate layout) -------
    lane = lax.broadcasted_iota(jnp.int32, (B, 8 * H), 1)

    def rng(lo, hi):
        return (lane >= lo) & (lane < hi)

    # fwd lanes: [0,H) u [2H,3H) u [4H,5H) u [6H,7H)
    is_fwd = rng(0, H) | rng(2 * H, 3 * H) | rng(4 * H, 5 * H) | rng(6 * H, 7 * H)
    # g (cell-candidate) lanes: [4H, 6H)
    is_g = rng(4 * H, 6 * H)
    pre_scale = jnp.where(is_g, jnp.float32(1.0), jnp.float32(0.5))
    post_shift = jnp.where(is_g, jnp.float32(0.0), jnp.float32(0.5))

    def run_layer(x_in_ref, wih_ref, whh_ref, bias_ref, out_seq_ref):
        # Input projection for every timestep (hoisted out of the recurrence):
        # (T*B, d_in) bf16 @ (d_in, 8H) bf16 -> f32, + bias, into VMEM scratch.
        xg_ref[...] = (jnp.dot(x_in_ref[...], wih_ref[...],
                               preferred_element_type=jnp.float32)
                       + bias_ref[...])
        whh = whh_ref[...]                                   # (2H, 8H) bf16

        h = jnp.zeros((B, 2 * H), jnp.float32)               # [h_fwd | h_bwd]
        c = jnp.zeros((B, 2 * H), jnp.float32)
        hsum = jnp.zeros((B, 2 * H), jnp.float32) if out_seq_ref is None else None

        # Fully unrolled time loop (T static & small); backward direction
        # indexes reversed time instead of flipping the sequence.
        for s in range(T):
            tb = T - 1 - s
            g_in = jnp.where(is_fwd,
                             xg_ref[s * B:(s + 1) * B, :],
                             xg_ref[tb * B:(tb + 1) * B, :])
            gates = g_in + jnp.dot(h.astype(jnp.bfloat16), whh,
                                   preferred_element_type=jnp.float32)
            # Single EUP pass: tanh on g lanes, sigmoid via tanh elsewhere.
            y = jnp.tanh(gates * pre_scale)
            act = y * pre_scale + post_shift
            i_g = act[:, 0:2 * H]
            f_g = act[:, 2 * H:4 * H]
            g_g = act[:, 4 * H:6 * H]
            o_g = act[:, 6 * H:8 * H]
            c = f_g * c + i_g * g_g
            h = o_g * jnp.tanh(c)
            if out_seq_ref is None:
                hsum = hsum + h                               # fused time mean
            else:
                out_seq_ref[s * B:(s + 1) * B, 0:H] = h[:, 0:H].astype(jnp.bfloat16)
                out_seq_ref[tb * B:(tb + 1) * B, H:2 * H] = \
                    h[:, H:2 * H].astype(jnp.bfloat16)
        return hsum

    # ---- layer stack (intermediates stay in VMEM scratch) -------------------
    cur_ref = x_ref
    hsum = None
    for l in range(n_layers):
        wih_ref, whh_ref, bias_ref = layer_refs[l]
        last = (l == n_layers - 1)
        res = run_layer(cur_ref, wih_ref, whh_ref, bias_ref,
                        None if last else seq_ref)
        if last:
            hsum = res
        else:
            cur_ref = seq_ref   # scratch is fully consumed by the next
                                # layer's projection before being overwritten

    # ---- mean over time + ClassPredictor (dropouts are identity) ------------
    mean = hsum * jnp.float32(1.0 / T)                        # (B, 2H) [fwd|bwd]
    slope = jnp.float32(0.01)
    h1 = jnp.dot(mean, w1_ref[...], preferred_element_type=jnp.float32) + b1_ref[...]
    h1 = jnp.where(h1 > 0, h1, slope * h1)
    h2 = jnp.dot(h1, w2_ref[...], preferred_element_type=jnp.float32) + b2_ref[...]
    h2 = jnp.where(h2 > 0, h2, slope * h2)
    out_ref[...] = (jnp.dot(h2, w3_ref[...], preferred_element_type=jnp.float32)
                    + b3_ref[...])


# ----------------------------------------------------------------------------
# Wrapper
# ----------------------------------------------------------------------------
def _vmem_spec():
    return pl.BlockSpec(memory_space=pltpu.MemorySpace.VMEM)


def bilstm_model_forward(x, params):
    """x: (B, T, input_dim) float32 -> logits (B, classes) float32."""
    H = params["hidden_dim"]
    classes = params["classes"]
    lstm = params["lstm"]
    mlp = params["mlp"]
    n_layers = len(lstm)

    B, T, Din = x.shape
    Bp = ((B + 7) // 8) * 8
    if Bp != B:
        x = jnp.pad(x, ((0, Bp - B), (0, 0), (0, 0)))

    # Single transpose to time-major for the whole stack, pre-cast to bf16.
    x_tm = jnp.transpose(x, (1, 0, 2)).reshape(T * Bp, Din).astype(jnp.bfloat16)

    inputs = [x_tm]
    for (wih, whh, bias) in lstm:
        inputs += [wih, whh, bias]
    inputs += list(mlp)
    Cp = int(mlp[4].shape[1])

    has_seq = n_layers > 1
    scratch = [pltpu.VMEM((T * Bp, 8 * H), jnp.float32)]
    if has_seq:
        scratch.append(pltpu.VMEM((T * Bp, 2 * H), jnp.bfloat16))

    # Advisory cost estimate.
    flops = 0
    transc = 0
    for (wih, whh, bias) in lstm:
        d_in = int(wih.shape[0])
        flops += 2 * T * Bp * d_in * 8 * H          # input projection
        flops += 2 * T * Bp * 2 * H * 8 * H         # recurrent dot
        transc += T * Bp * (8 * H + 2 * H)          # gate tanh + cell tanh
    flops += 2 * Bp * (2 * H * int(mlp[0].shape[1])
                       + int(mlp[2].shape[0]) * int(mlp[2].shape[1])
                       + int(mlp[4].shape[0]) * Cp)
    bytes_acc = (sum(int(a.size) * a.dtype.itemsize for a in inputs)
                 + Bp * Cp * 4)

    kernel = functools.partial(_fused_bilstm_kernel, hidden_dim=H, seq_len=T,
                               batch=Bp, n_layers=n_layers,
                               has_seq_scratch=has_seq)

    logits_p = pl.pallas_call(
        kernel,
        out_shape=jax.ShapeDtypeStruct((Bp, Cp), jnp.float32),
        in_specs=[_vmem_spec()] * len(inputs),
        out_specs=_vmem_spec(),
        scratch_shapes=scratch,
        cost_estimate=pl.CostEstimate(flops=flops, transcendentals=transc,
                                      bytes_accessed=bytes_acc),
    )(*inputs)
    return logits_p[:B, :classes]


# ----------------------------------------------------------------------------
# Deterministic parameter construction (mirrors the PyTorch module's __init__),
# laid out for the kernel: interleaved gate columns + block-diagonal Whh.
# ----------------------------------------------------------------------------
def make_params(key, input_dim, hidden_dim, n_layers, classes):
    H = hidden_dim
    scale = 1.0 / (H ** 0.5)

    lstm_layers = []
    for layer in range(n_layers):
        d_in = input_dim if layer == 0 else 2 * H
        dir_ws = []
        for _ in range(2):  # forward / backward
            key, k1, k2, k3, k4 = jax.random.split(key, 5)
            w_ih = jax.random.uniform(k1, (4 * H, d_in), jnp.float32, -scale, scale)
            w_hh = jax.random.uniform(k2, (4 * H, H), jnp.float32, -scale, scale)
            b_ih = jax.random.uniform(k3, (4 * H,), jnp.float32, -scale, scale)
            b_hh = jax.random.uniform(k4, (4 * H,), jnp.float32, -scale, scale)
            dir_ws.append((w_ih, w_hh, b_ih + b_hh))
        (wif, whf, bsf), (wib, whb, bsb) = dir_ws

        # Gate-interleaved column layout: [i_f i_b | f_f f_b | g_f g_b | o_f o_b]
        wif_t, wib_t = wif.T, wib.T                       # (d_in, 4H)
        wih_cols, bias_cols, whh_cols = [], [], []
        whf_t, whb_t = whf.T, whb.T                       # (H, 4H)
        zblk = jnp.zeros((H, H), jnp.float32)
        for k in range(4):
            wih_cols += [wif_t[:, k * H:(k + 1) * H], wib_t[:, k * H:(k + 1) * H]]
            bias_cols += [bsf[k * H:(k + 1) * H], bsb[k * H:(k + 1) * H]]
            # block-diagonal Whh: rows 0:H act on h_fwd, rows H:2H on h_bwd
            whh_cols += [jnp.concatenate([whf_t[:, k * H:(k + 1) * H], zblk], 0),
                         jnp.concatenate([zblk, whb_t[:, k * H:(k + 1) * H]], 0)]
        wih = jnp.concatenate(wih_cols, axis=1).astype(jnp.bfloat16)   # (d_in, 8H)
        whh_bd = jnp.concatenate(whh_cols, axis=1).astype(jnp.bfloat16)  # (2H, 8H)
        bias = jnp.concatenate(bias_cols)[None, :]                      # (1, 8H) f32
        lstm_layers.append((wih, whh_bd, bias))

    # ClassPredictor: fc1(2H->120) -> LeakyReLU -> fc2(120->80) -> LeakyReLU
    # -> out(80->classes). Orthogonal weights. Zero-pad dims to 128 lanes.
    hidden_1, hidden_2 = 120, 80
    H1p = ((hidden_1 + 127) // 128) * 128
    H2p = ((hidden_2 + 127) // 128) * 128
    Cp = ((classes + 127) // 128) * 128

    ortho = jax.nn.initializers.orthogonal()
    key, k1, k2, k3, k4, k5, k6 = jax.random.split(key, 7)
    w1 = ortho(k1, (hidden_1, 2 * H), jnp.float32)
    b1 = jax.random.uniform(k2, (hidden_1,), jnp.float32,
                            -1.0 / (2 * H) ** 0.5, 1.0 / (2 * H) ** 0.5)
    w2 = ortho(k3, (hidden_2, hidden_1), jnp.float32)
    b2 = jax.random.uniform(k4, (hidden_2,), jnp.float32,
                            -1.0 / hidden_1 ** 0.5, 1.0 / hidden_1 ** 0.5)
    w3 = ortho(k5, (classes, hidden_2), jnp.float32)
    b3 = jax.random.uniform(k6, (classes,), jnp.float32,
                            -1.0 / hidden_2 ** 0.5, 1.0 / hidden_2 ** 0.5)

    w1p = jnp.pad(w1.T, ((0, 0), (0, H1p - hidden_1)))       # (2H, 128)
    b1p = jnp.pad(b1, (0, H1p - hidden_1))[None, :]
    w2p = jnp.pad(w2.T, ((0, H1p - hidden_1), (0, H2p - hidden_2)))
    b2p = jnp.pad(b2, (0, H2p - hidden_2))[None, :]
    w3p = jnp.pad(w3.T, ((0, H2p - hidden_2), (0, Cp - classes)))
    b3p = jnp.pad(b3, (0, Cp - classes))[None, :]
    mlp = (w1p, b1p, w2p, b2p, w3p, b3p)

    return {"hidden_dim": H, "classes": classes,
            "lstm": lstm_layers, "mlp": mlp}


# ----------------------------------------------------------------------------
if __name__ == "__main__":
    batch, seq, input_dim = 2, 8, 16
    hidden_dim, n_layers, classes = 32, 2, 5

    key = jax.random.PRNGKey(0)
    key, kx = jax.random.split(key)
    x = jax.random.normal(kx, (batch, seq, input_dim), jnp.float32)

    params = make_params(key, input_dim, hidden_dim, n_layers, classes)

    fwd = jax.jit(functools.partial(bilstm_model_forward, params=params))
    logits = fwd(x)
    jax.block_until_ready(logits)

    assert logits.shape == (batch, classes), logits.shape
    assert bool(jnp.all(jnp.isfinite(logits)))
    print("KERNEL_OK")
</pallas_src>

<mosaic_0001>
module attributes {stable_mosaic.version = 11 : i64} {
  func.func @_fused_bilstm_kernel(%arg0: memref<64x16xbf16, #tpu.memory_space<vmem>>, %arg1: memref<16x256xbf16, #tpu.memory_space<vmem>>, %arg2: memref<64x256xbf16, #tpu.memory_space<vmem>>, %arg3: memref<1x256xf32, #tpu.memory_space<vmem>>, %arg4: memref<64x256xbf16, #tpu.memory_space<vmem>>, %arg5: memref<64x256xbf16, #tpu.memory_space<vmem>>, %arg6: memref<1x256xf32, #tpu.memory_space<vmem>>, %arg7: memref<64x128xf32, #tpu.memory_space<vmem>>, %arg8: memref<1x128xf32, #tpu.memory_space<vmem>>, %arg9: memref<128x128xf32, #tpu.memory_space<vmem>>, %arg10: memref<1x128xf32, #tpu.memory_space<vmem>>, %arg11: memref<128x128xf32, #tpu.memory_space<vmem>>, %arg12: memref<1x128xf32, #tpu.memory_space<vmem>>, %arg13: memref<8x128xf32, #tpu.memory_space<vmem>>, %arg14: memref<64x256xf32, #tpu.memory_space<vmem>>, %arg15: memref<64x64xbf16, #tpu.memory_space<vmem>>) attributes {dimension_semantics = [], scalar_prefetch = 0 : i64, scratch_operands = 2 : i64, tpu.core_type = #tpu.core_type<tc>} {
    %0 = tpu.iota {dimensions = array<i32: 1>} : vector<8x256xi32>
    %c0_i32 = arith.constant 0 : i32
    %1 = vector.broadcast %c0_i32 : i32 to vector<8x256xi32>
    %2 = arith.cmpi sge, %0, %1 : vector<8x256xi32>
    %c32_i32 = arith.constant 32 : i32
    %3 = vector.broadcast %c32_i32 : i32 to vector<8x256xi32>
    %4 = arith.cmpi slt, %0, %3 : vector<8x256xi32>
    %5 = arith.andi %2, %4 : vector<8x256xi1>
    %c64_i32 = arith.constant 64 : i32
    %6 = vector.broadcast %c64_i32 : i32 to vector<8x256xi32>
    %7 = arith.cmpi sge, %0, %6 : vector<8x256xi32>
    %c96_i32 = arith.constant 96 : i32
    %8 = vector.broadcast %c96_i32 : i32 to vector<8x256xi32>
    %9 = arith.cmpi slt, %0, %8 : vector<8x256xi32>
    %10 = arith.andi %7, %9 : vector<8x256xi1>
    %11 = arith.ori %5, %10 : vector<8x256xi1>
    %c128_i32 = arith.constant 128 : i32
    %12 = vector.broadcast %c128_i32 : i32 to vector<8x256xi32>
    %13 = arith.cmpi sge, %0, %12 : vector<8x256xi32>
    %c160_i32 = arith.constant 160 : i32
    %14 = vector.broadcast %c160_i32 : i32 to vector<8x256xi32>
    %15 = arith.cmpi slt, %0, %14 : vector<8x256xi32>
    %16 = arith.andi %13, %15 : vector<8x256xi1>
    %17 = arith.ori %11, %16 : vector<8x256xi1>
    %c192_i32 = arith.constant 192 : i32
    %18 = vector.broadcast %c192_i32 : i32 to vector<8x256xi32>
    %19 = arith.cmpi sge, %0, %18 : vector<8x256xi32>
    %c224_i32 = arith.constant 224 : i32
    %20 = vector.broadcast %c224_i32 : i32 to vector<8x256xi32>
    %21 = arith.cmpi slt, %0, %20 : vector<8x256xi32>
    %22 = arith.andi %19, %21 : vector<8x256xi1>
    %23 = arith.ori %17, %22 : vector<8x256xi1>
    %c128_i32_0 = arith.constant 128 : i32
    %24 = vector.broadcast %c128_i32_0 : i32 to vector<8x256xi32>
    %25 = arith.cmpi sge, %0, %24 : vector<8x256xi32>
    %c192_i32_1 = arith.constant 192 : i32
    %26 = vector.broadcast %c192_i32_1 : i32 to vector<8x256xi32>
    %27 = arith.cmpi slt, %0, %26 : vector<8x256xi32>
    %28 = arith.andi %25, %27 : vector<8x256xi1>
    %cst = arith.constant 1.000000e+00 : f32
    %cst_2 = arith.constant 5.000000e-01 : f32
    %29 = vector.broadcast %cst : f32 to vector<8x256xf32>
    %30 = vector.broadcast %cst_2 : f32 to vector<8x256xf32>
    %31 = arith.select %28, %29, %30 : vector<8x256xi1>, vector<8x256xf32>
    %cst_3 = arith.constant 0.000000e+00 : f32
    %cst_4 = arith.constant 5.000000e-01 : f32
    %32 = vector.broadcast %cst_3 : f32 to vector<8x256xf32>
    %33 = vector.broadcast %cst_4 : f32 to vector<8x256xf32>
    %34 = arith.select %28, %32, %33 : vector<8x256xi1>, vector<8x256xf32>
    %c0 = arith.constant 0 : index
    %c0_5 = arith.constant 0 : index
    %35 = vector.load %arg0[%c0, %c0_5] : memref<64x16xbf16, #tpu.memory_space<vmem>>, vector<64x16xbf16>
    %c0_6 = arith.constant 0 : index
    %c0_7 = arith.constant 0 : index
    %36 = vector.load %arg1[%c0_6, %c0_7] : memref<16x256xbf16, #tpu.memory_space<vmem>>, vector<16x256xbf16>
    %cst_8 = arith.constant dense<0.000000e+00> : vector<64x256xf32>
    %37 = tpu.matmul %35, %36, %cst_8 {dimension_numbers = #tpu.dot_dimension_numbers<[1], [0], [0], [1], [0, 0, 1, 1], [], []>} : vector<64x16xbf16>, vector<16x256xbf16>, vector<64x256xf32> -> vector<64x256xf32>
    %c0_9 = arith.constant 0 : index
    %c0_10 = arith.constant 0 : index
    %38 = vector.load %arg3[%c0_9, %c0_10] : memref<1x256xf32, #tpu.memory_space<vmem>>, vector<1x256xf32>
    %39 = vector.broadcast %38 : vector<1x256xf32> to vector<64x256xf32>
    %40 = arith.addf %37, %39 : vector<64x256xf32>
    %c0_11 = arith.constant 0 : index
    %c0_12 = arith.constant 0 : index
    %41 = vector.load %arg14[%c0_11, %c0_12] : memref<64x256xf32, #tpu.memory_space<vmem>>, vector<64x256xf32>
    tpu.vector_store %arg14[%c0_11, %c0_12], %40 {strides = array<i32>} : memref<64x256xf32, #tpu.memory_space<vmem>>, vector<64x256xf32>,
    %c0_13 = arith.constant 0 : index
    %c0_14 = arith.constant 0 : index
    %42 = vector.load %arg2[%c0_13, %c0_14] : memref<64x256xbf16, #tpu.memory_space<vmem>>, vector<64x256xbf16>
    %cst_15 = arith.constant 0.000000e+00 : f32
    %43 = vector.broadcast %cst_15 : f32 to vector<8x64xf32>
    %cst_16 = arith.constant 0.000000e+00 : f32
    %44 = vector.broadcast %cst_16 : f32 to vector<8x64xf32>
    %c0_17 = arith.constant 0 : index
    %c0_18 = arith.constant 0 : index
    %45 = vector.load %arg14[%c0_17, %c0_18] : memref<64x256xf32, #tpu.memory_space<vmem>>, vector<8x256xf32>
    %c56 = arith.constant 56 : index
    %c0_19 = arith.constant 0 : index
    %46 = vector.load %arg14[%c56, %c0_19] : memref<64x256xf32, #tpu.memory_space<vmem>>, vector<8x256xf32>
    %47 = arith.select %23, %45, %46 : vector<8x256xi1>, vector<8x256xf32>
    %48 = arith.truncf %43 : vector<8x64xf32> to vector<8x64xbf16>
    %cst_20 = arith.constant dense<0.000000e+00> : vector<8x256xf32>
    %49 = tpu.matmul %48, %42, %cst_20 {dimension_numbers = #tpu.dot_dimension_numbers<[1], [0], [0], [1], [0, 0, 1, 1], [], []>} : vector<8x64xbf16>, vector<64x256xbf16>, vector<8x256xf32> -> vector<8x256xf32>
    %50 = arith.addf %47, %49 : vector<8x256xf32>
    %51 = arith.mulf %50, %31 : vector<8x256xf32>
    %52 = math.tanh %51 : vector<8x256xf32>
    %53 = arith.mulf %52, %31 : vector<8x256xf32>
    %54 = arith.addf %53, %34 : vector<8x256xf32>
    %55 = vector.extract_strided_slice %54 {offsets = [0, 0], sizes = [8, 64], strides = [1, 1]} : vector<8x256xf32> to vector<8x64xf32>
    %56 = vector.extract_strided_slice %54 {offsets = [0, 64], sizes = [8, 64], strides = [1, 1]} : vector<8x256xf32> to vector<8x64xf32>
    %57 = vector.extract_strided_slice %54 {offsets = [0, 128], sizes = [8, 64], strides = [1, 1]} : vector<8x256xf32> to vector<8x64xf32>
    %58 = vector.extract_strided_slice %54 {offsets = [0, 192], sizes = [8, 64], strides = [1, 1]} : vector<8x256xf32> to vector<8x64xf32>
    %59 = arith.mulf %56, %44 : vector<8x64xf32>
    %60 = arith.mulf %55, %57 : vector<8x64xf32>
    %61 = arith.addf %59, %60 : vector<8x64xf32>
    %62 = math.tanh %61 : vector<8x64xf32>
    %63 = arith.mulf %58, %62 : vector<8x64xf32>
    %64 = vector.extract_strided_slice %63 {offsets = [0, 0], sizes = [8, 32], strides = [1, 1]} : vector<8x64xf32> to vector<8x32xf32>
    %65 = arith.truncf %64 : vector<8x32xf32> to vector<8x32xbf16>
    %c0_21 = arith.constant 0 : index
    %c0_22 = arith.constant 0 : index
    %66 = vector.load %arg15[%c0_21, %c0_22] : memref<64x64xbf16, #tpu.memory_space<vmem>>, vector<8x32xbf16>
    tpu.vector_store %arg15[%c0_21, %c0_22], %65 {strides = array<i32>} : memref<64x64xbf16, #tpu.memory_space<vmem>>, vector<8x32xbf16>,
    %67 = vector.extract_strided_slice %63 {offsets = [0, 32], sizes = [8, 32], strides = [1, 1]} : vector<8x64xf32> to vector<8x32xf32>
    %68 = arith.truncf %67 : vector<8x32xf32> to vector<8x32xbf16>
    %c56_23 = arith.constant 56 : index
    %c32 = arith.constant 32 : index
    %69 = vector.load %arg15[%c56_23, %c32] : memref<64x64xbf16, #tpu.memory_space<vmem>>, vector<8x32xbf16>
    tpu.vector_store %arg15[%c56_23, %c32], %68 {strides = array<i32>} : memref<64x64xbf16, #tpu.memory_space<vmem>>, vector<8x32xbf16>,
    %c8 = arith.constant 8 : index
    %c0_24 = arith.constant 0 : index
    %70 = vector.load %arg14[%c8, %c0_24] : memref<64x256xf32, #tpu.memory_space<vmem>>, vector<8x256xf32>
    %c48 = arith.constant 48 : index
    %c0_25 = arith.constant 0 : index
    %71 = vector.load %arg14[%c48, %c0_25] : memref<64x256xf32, #tpu.memory_space<vmem>>, vector<8x256xf32>
    %72 = arith.select %23, %70, %71 : vector<8x256xi1>, vector<8x256xf32>
    %73 = arith.truncf %63 : vector<8x64xf32> to vector<8x64xbf16>
    %cst_26 = arith.constant dense<0.000000e+00> : vector<8x256xf32>
    %74 = tpu.matmul %73, %42, %cst_26 {dimension_numbers = #tpu.dot_dimension_numbers<[1], [0], [0], [1], [0, 0, 1, 1], [], []>} : vector<8x64xbf16>, vector<64x256xbf16>, vector<8x256xf32> -> vector<8x256xf32>
    %75 = arith.addf %72, %74 : vector<8x256xf32>
    %76 = arith.mulf %75, %31 : vector<8x256xf32>
    %77 = math.tanh %76 : vector<8x256xf32>
    %78 = arith.mulf %77, %31 : vector<8x256xf32>
    %79 = arith.addf %78, %34 : vector<8x256xf32>
    %80 = vector.extract_strided_slice %79 {offsets = [0, 0], sizes = [8, 64], strides = [1, 1]} : vector<8x256xf32> to vector<8x64xf32>
    %81 = vector.extract_strided_slice %79 {offsets = [0, 64], sizes = [8, 64], strides = [1, 1]} : vector<8x256xf32> to vector<8x64xf32>
    %82 = vector.extract_strided_slice %79 {offsets = [0, 128], sizes = [8, 64], strides = [1, 1]} : vector<8x256xf32> to vector<8x64xf32>
    %83 = vector.extract_strided_slice %79 {offsets = [0, 192], sizes = [8, 64], strides = [1, 1]} : vector<8x256xf32> to vector<8x64xf32>
    %84 = arith.mulf %81, %61 : vector<8x64xf32>
    %85 = arith.mulf %80, %82 : vector<8x64xf32>
    %86 = arith.addf %84, %85 : vector<8x64xf32>
    %87 = math.tanh %86 : vector<8x64xf32>
    %88 = arith.mulf %83, %87 : vector<8x64xf32>
    %89 = vector.extract_strided_slice %88 {offsets = [0, 0], sizes = [8, 32], strides = [1, 1]} : vector<8x64xf32> to vector<8x32xf32>
    %90 = arith.truncf %89 : vector<8x32xf32> to vector<8x32xbf16>
    %c8_27 = arith.constant 8 : index
    %c0_28 = arith.constant 0 : index
    %91 = vector.load %arg15[%c8_27, %c0_28] : memref<64x64xbf16, #tpu.memory_space<vmem>>, vector<8x32xbf16>
    tpu.vector_store %arg15[%c8_27, %c0_28], %90 {strides = array<i32>} : memref<64x64xbf16, #tpu.memory_space<vmem>>, vector<8x32xbf16>,
    %92 = vector.extract_strided_slice %88 {offsets = [0, 32], sizes = [8, 32], strides = [1, 1]} : vector<8x64xf32> to vector<8x32xf32>
    %93 = arith.truncf %92 : vector<8x32xf32> to vector<8x32xbf16>
    %c48_29 = arith.constant 48 : index
    %c32_30 = arith.constant 32 : index
    %94 = vector.load %arg15[%c48_29, %c32_30] : memref<64x64xbf16, #tpu.memory_space<vmem>>, vector<8x32xbf16>
    tpu.vector_store %arg15[%c48_29, %c32_30], %93 {strides = array<i32>} : memref<64x64xbf16, #tpu.memory_space<vmem>>, vector<8x32xbf16>,
    %c16 = arith.constant 16 : index
    %c0_31 = arith.constant 0 : index
    %95 = vector.load %arg14[%c16, %c0_31] : memref<64x256xf32, #tpu.memory_space<vmem>>, vector<8x256xf32>
    %c40 = arith.constant 40 : index
    %c0_32 = arith.constant 0 : index
    %96 = vector.load %arg14[%c40, %c0_32] : memref<64x256xf32, #tpu.memory_space<vmem>>, vector<8x256xf32>
    %97 = arith.select %23, %95, %96 : vector<8x256xi1>, vector<8x256xf32>
    %98 = arith.truncf %88 : vector<8x64xf32> to vector<8x64xbf16>
    %cst_33 = arith.constant dense<0.000000e+00> : vector<8x256xf32>
    %99 = tpu.matmul %98, %42, %cst_33 {dimension_numbers = #tpu.dot_dimension_numbers<[1], [0], [0], [1], [0, 0, 1, 1], [], []>} : vector<8x64xbf16>, vector<64x256xbf16>, vector<8x256xf32> -> vector<8x256xf32>
    %100 = arith.addf %97, %99 : vector<8x256xf32>
    %101 = arith.mulf %100, %31 : vector<8x256xf32>
    %102 = math.tanh %101 : vector<8x256xf32>
    %103 = arith.mulf %102, %31 : vector<8x256xf32>
    %104 = arith.addf %103, %34 : vector<8x256xf32>
    %105 = vector.extract_strided_slice %104 {offsets = [0, 0], sizes = [8, 64], strides = [1, 1]} : vector<8x256xf32> to vector<8x64xf32>
    %106 = vector.extract_strided_slice %104 {offsets = [0, 64], sizes = [8, 64], strides = [1, 1]} : vector<8x256xf32> to vector<8x64xf32>
    %107 = vector.extract_strided_slice %104 {offsets = [0, 128], sizes = [8, 64], strides = [1, 1]} : vector<8x256xf32> to vector<8x64xf32>
    %108 = vector.extract_strided_slice %104 {offsets = [0, 192], sizes = [8, 64], strides = [1, 1]} : vector<8x256xf32> to vector<8x64xf32>
    %109 = arith.mulf %106, %86 : vector<8x64xf32>
    %110 = arith.mulf %105, %107 : vector<8x64xf32>
    %111 = arith.addf %109, %110 : vector<8x64xf32>
    %112 = math.tanh %111 : vector<8x64xf32>
    %113 = arith.mulf %108, %112 : vector<8x64xf32>
    %114 = vector.extract_strided_slice %113 {offsets = [0, 0], sizes = [8, 32], strides = [1, 1]} : vector<8x64xf32> to vector<8x32xf32>
    %115 = arith.truncf %114 : vector<8x32xf32> to vector<8x32xbf16>
    %c16_34 = arith.constant 16 : index
    %c0_35 = arith.constant 0 : index
    %116 = vector.load %arg15[%c16_34, %c0_35] : memref<64x64xbf16, #tpu.memory_space<vmem>>, vector<8x32xbf16>
    tpu.vector_store %arg15[%c16_34, %c0_35], %115 {strides = array<i32>} : memref<64x64xbf16, #tpu.memory_space<vmem>>, vector<8x32xbf16>,
    %117 = vector.extract_strided_slice %113 {offsets = [0, 32], sizes = [8, 32], strides = [1, 1]} : vector<8x64xf32> to vector<8x32xf32>
    %118 = arith.truncf %117 : vector<8x32xf32> to vector<8x32xbf16>
    %c40_36 = arith.constant 40 : index
    %c32_37 = arith.constant 32 : index
    %119 = vector.load %arg15[%c40_36, %c32_37] : memref<64x64xbf16, #tpu.memory_space<vmem>>, vector<8x32xbf16>
    tpu.vector_store %arg15[%c40_36, %c32_37], %118 {strides = array<i32>} : memref<64x64xbf16, #tpu.memory_space<vmem>>, vector<8x32xbf16>,
    %c24 = arith.constant 24 : index
    %c0_38 = arith.constant 0 : index
    %120 = vector.load %arg14[%c24, %c0_38] : memref<64x256xf32, #tpu.memory_space<vmem>>, vector<8x256xf32>
    %c32_39 = arith.constant 32 : index
    %c0_40 = arith.constant 0 : index
    %121 = vector.load %arg14[%c32_39, %c0_40] : memref<64x256xf32, #tpu.memory_space<vmem>>, vector<8x256xf32>
    %122 = arith.select %23, %120, %121 : vector<8x256xi1>, vector<8x256xf32>
    %123 = arith.truncf %113 : vector<8x64xf32> to vector<8x64xbf16>
    %cst_41 = arith.constant dense<0.000000e+00> : vector<8x256xf32>
    %124 = tpu.matmul %123, %42, %cst_41 {dimension_numbers = #tpu.dot_dimension_numbers<[1], [0], [0], [1], [0, 0, 1, 1], [], []>} : vector<8x64xbf16>, vector<64x256xbf16>, vector<8x256xf32> -> vector<8x256xf32>
    %125 = arith.addf %122, %124 : vector<8x256xf32>
    %126 = arith.mulf %125, %31 : vector<8x256xf32>
    %127 = math.tanh %126 : vector<8x256xf32>
    %128 = arith.mulf %127, %31 : vector<8x256xf32>
    %129 = arith.addf %128, %34 : vector<8x256xf32>
    %130 = vector.extract_strided_slice %129 {offsets = [0, 0], sizes = [8, 64], strides = [1, 1]} : vector<8x256xf32> to vector<8x64xf32>
    %131 = vector.extract_strided_slice %129 {offsets = [0, 64], sizes = [8, 64], strides = [1, 1]} : vector<8x256xf32> to vector<8x64xf32>
    %132 = vector.extract_strided_slice %129 {offsets = [0, 128], sizes = [8, 64], strides = [1, 1]} : vector<8x256xf32> to vector<8x64xf32>
    %133 = vector.extract_strided_slice %129 {offsets = [0, 192], sizes = [8, 64], strides = [1, 1]} : vector<8x256xf32> to vector<8x64xf32>
    %134 = arith.mulf %131, %111 : vector<8x64xf32>
    %135 = arith.mulf %130, %132 : vector<8x64xf32>
    %136 = arith.addf %134, %135 : vector<8x64xf32>
    %137 = math.tanh %136 : vector<8x64xf32>
    %138 = arith.mulf %133, %137 : vector<8x64xf32>
    %139 = vector.extract_strided_slice %138 {offsets = [0, 0], sizes = [8, 32], strides = [1, 1]} : vector<8x64xf32> to vector<8x32xf32>
    %140 = arith.truncf %139 : vector<8x32xf32> to vector<8x32xbf16>
    %c24_42 = arith.constant 24 : index
    %c0_43 = arith.constant 0 : index
    %141 = vector.load %arg15[%c24_42, %c0_43] : memref<64x64xbf16, #tpu.memory_space<vmem>>, vector<8x32xbf16>
    tpu.vector_store %arg15[%c24_42, %c0_43], %140 {strides = array<i32>} : memref<64x64xbf16, #tpu.memory_space<vmem>>, vector<8x32xbf16>,
    %142 = vector.extract_strided_slice %138 {offsets = [0, 32], sizes = [8, 32], strides = [1, 1]} : vector<8x64xf32> to vector<8x32xf32>
    %143 = arith.truncf %142 : vector<8x32xf32> to vector<8x32xbf16>
    %c32_44 = arith.constant 32 : index
    %c32_45 = arith.constant 32 : index
    %144 = vector.load %arg15[%c32_44, %c32_45] : memref<64x64xbf16, #tpu.memory_space<vmem>>, vector<8x32xbf16>
    tpu.vector_store %arg15[%c32_44, %c32_45], %143 {strides = array<i32>} : memref<64x64xbf16, #tpu.memory_space<vmem>>, vector<8x32xbf16>,
    %c32_46 = arith.constant 32 : index
    %c0_47 = arith.constant 0 : index
    %145 = vector.load %arg14[%c32_46, %c0_47] : memref<64x256xf32, #tpu.memory_space<vmem>>, vector<8x256xf32>
    %c24_48 = arith.constant 24 : index
    %c0_49 = arith.constant 0 : index
    %146 = vector.load %arg14[%c24_48, %c0_49] : memref<64x256xf32, #tpu.memory_space<vmem>>, vector<8x256xf32>
    %147 = arith.select %23, %145, %146 : vector<8x256xi1>, vector<8x256xf32>
    %148 = arith.truncf %138 : vector<8x64xf32> to vector<8x64xbf16>
    %cst_50 = arith.constant dense<0.000000e+00> : vector<8x256xf32>
    %149 = tpu.matmul %148, %42, %cst_50 {dimension_numbers = #tpu.dot_dimension_numbers<[1], [0], [0], [1], [0, 0, 1, 1], [], []>} : vector<8x64xbf16>, vector<64x256xbf16>, vector<8x256xf32> -> vector<8x256xf32>
    %150 = arith.addf %147, %149 : vector<8x256xf32>
    %151 = arith.mulf %150, %31 : vector<8x256xf32>
    %152 = math.tanh %151 : vector<8x256xf32>
    %153 = arith.mulf %152, %31 : vector<8x256xf32>
    %154 = arith.addf %153, %34 : vector<8x256xf32>
    %155 = vector.extract_strided_slice %154 {offsets = [0, 0], sizes = [8, 64], strides = [1, 1]} : vector<8x256xf32> to vector<8x64xf32>
    %156 = vector.extract_strided_slice %154 {offsets = [0, 64], sizes = [8, 64], strides = [1, 1]} : vector<8x256xf32> to vector<8x64xf32>
    %157 = vector.extract_strided_slice %154 {offsets = [0, 128], sizes = [8, 64], strides = [1, 1]} : vector<8x256xf32> to vector<8x64xf32>
    %158 = vector.extract_strided_slice %154 {offsets = [0, 192], sizes = [8, 64], strides = [1, 1]} : vector<8x256xf32> to vector<8x64xf32>
    %159 = arith.mulf %156, %136 : vector<8x64xf32>
    %160 = arith.mulf %155, %157 : vector<8x64xf32>
    %161 = arith.addf %159, %160 : vector<8x64xf32>
    %162 = math.tanh %161 : vector<8x64xf32>
    %163 = arith.mulf %158, %162 : vector<8x64xf32>
    %164 = vector.extract_strided_slice %163 {offsets = [0, 0], sizes = [8, 32], strides = [1, 1]} : vector<8x64xf32> to vector<8x32xf32>
    %165 = arith.truncf %164 : vector<8x32xf32> to vector<8x32xbf16>
    %c32_51 = arith.constant 32 : index
    %c0_52 = arith.constant 0 : index
    %166 = vector.load %arg15[%c32_51, %c0_52] : memref<64x64xbf16, #tpu.memory_space<vmem>>, vector<8x32xbf16>
    tpu.vector_store %arg15[%c32_51, %c0_52], %165 {strides = array<i32>} : memref<64x64xbf16, #tpu.memory_space<vmem>>, vector<8x32xbf16>,
    %167 = vector.extract_strided_slice %163 {offsets = [0, 32], sizes = [8, 32], strides = [1, 1]} : vector<8x64xf32> to vector<8x32xf32>
    %168 = arith.truncf %167 : vector<8x32xf32> to vector<8x32xbf16>
    %c24_53 = arith.constant 24 : index
    %c32_54 = arith.constant 32 : index
    %169 = vector.load %arg15[%c24_53, %c32_54] : memref<64x64xbf16, #tpu.memory_space<vmem>>, vector<8x32xbf16>
    tpu.vector_store %arg15[%c24_53, %c32_54], %168 {strides = array<i32>} : memref<64x64xbf16, #tpu.memory_space<vmem>>, vector<8x32xbf16>,
    %c40_55 = arith.constant 40 : index
    %c0_56 = arith.constant 0 : index
    %170 = vector.load %arg14[%c40_55, %c0_56] : memref<64x256xf32, #tpu.memory_space<vmem>>, vector<8x256xf32>
    %c16_57 = arith.constant 16 : index
    %c0_58 = arith.constant 0 : index
    %171 = vector.load %arg14[%c16_57, %c0_58] : memref<64x256xf32, #tpu.memory_space<vmem>>, vector<8x256xf32>
    %172 = arith.select %23, %170, %171 : vector<8x256xi1>, vector<8x256xf32>
    %173 = arith.truncf %163 : vector<8x64xf32> to vector<8x64xbf16>
    %cst_59 = arith.constant dense<0.000000e+00> : vector<8x256xf32>
    %174 = tpu.matmul %173, %42, %cst_59 {dimension_numbers = #tpu.dot_dimension_numbers<[1], [0], [0], [1], [0, 0, 1, 1], [], []>} : vector<8x64xbf16>, vector<64x256xbf16>, vector<8x256xf32> -> vector<8x256xf32>
    %175 = arith.addf %172, %174 : vector<8x256xf32>
    %176 = arith.mulf %175, %31 : vector<8x256xf32>
    %177 = math.tanh %176 : vector<8x256xf32>
    %178 = arith.mulf %177, %31 : vector<8x256xf32>
    %179 = arith.addf %178, %34 : vector<8x256xf32>
    %180 = vector.extract_strided_slice %179 {offsets = [0, 0], sizes = [8, 64], strides = [1, 1]} : vector<8x256xf32> to vector<8x64xf32>
    %181 = vector.extract_strided_slice %179 {offsets = [0, 64], sizes = [8, 64], strides = [1, 1]} : vector<8x256xf32> to vector<8x64xf32>
    %182 = vector.extract_strided_slice %179 {offsets = [0, 128], sizes = [8, 64], strides = [1, 1]} : vector<8x256xf32> to vector<8x64xf32>
    %183 = vector.extract_strided_slice %179 {offsets = [0, 192], sizes = [8, 64], strides = [1, 1]} : vector<8x256xf32> to vector<8x64xf32>
    %184 = arith.mulf %181, %161 : vector<8x64xf32>
    %185 = arith.mulf %180, %182 : vector<8x64xf32>
    %186 = arith.addf %184, %185 : vector<8x64xf32>
    %187 = math.tanh %186 : vector<8x64xf32>
    %188 = arith.mulf %183, %187 : vector<8x64xf32>
    %189 = vector.extract_strided_slice %188 {offsets = [0, 0], sizes = [8, 32], strides = [1, 1]} : vector<8x64xf32> to vector<8x32xf32>
    %190 = arith.truncf %189 : vector<8x32xf32> to vector<8x32xbf16>
    %c40_60 = arith.constant 40 : index
    %c0_61 = arith.constant 0 : index
    %191 = vector.load %arg15[%c40_60, %c0_61] : memref<64x64xbf16, #tpu.memory_space<vmem>>, vector<8x32xbf16>
    tpu.vector_store %arg15[%c40_60, %c0_61], %190 {strides = array<i32>} : memref<64x64xbf16, #tpu.memory_space<vmem>>, vector<8x32xbf16>,
    %192 = vector.extract_strided_slice %188 {offsets = [0, 32], sizes = [8, 32], strides = [1, 1]} : vector<8x64xf32> to vector<8x32xf32>
    %193 = arith.truncf %192 : vector<8x32xf32> to vector<8x32xbf16>
    %c16_62 = arith.constant 16 : index
    %c32_63 = arith.constant 32 : index
    %194 = vector.load %arg15[%c16_62, %c32_63] : memref<64x64xbf16, #tpu.memory_space<vmem>>, vector<8x32xbf16>
    tpu.vector_store %arg15[%c16_62, %c32_63], %193 {strides = array<i32>} : memref<64x64xbf16, #tpu.memory_space<vmem>>, vector<8x32xbf16>,
    %c48_64 = arith.constant 48 : index
    %c0_65 = arith.constant 0 : index
    %195 = vector.load %arg14[%c48_64, %c0_65] : memref<64x256xf32, #tpu.memory_space<vmem>>, vector<8x256xf32>
    %c8_66 = arith.constant 8 : index
    %c0_67 = arith.constant 0 : index
    %196 = vector.load %arg14[%c8_66, %c0_67] : memref<64x256xf32, #tpu.memory_space<vmem>>, vector<8x256xf32>
    %197 = arith.select %23, %195, %196 : vector<8x256xi1>, vector<8x256xf32>
    %198 = arith.truncf %188 : vector<8x64xf32> to vector<8x64xbf16>
    %cst_68 = arith.constant dense<0.000000e+00> : vector<8x256xf32>
    %199 = tpu.matmul %198, %42, %cst_68 {dimension_numbers = #tpu.dot_dimension_numbers<[1], [0], [0], [1], [0, 0, 1, 1], [], []>} : vector<8x64xbf16>, vector<64x256xbf16>, vector<8x256xf32> -> vector<8x256xf32>
    %200 = arith.addf %197, %199 : vector<8x256xf32>
    %201 = arith.mulf %200, %31 : vector<8x256xf32>
    %202 = math.tanh %201 : vector<8x256xf32>
    %203 = arith.mulf %202, %31 : vector<8x256xf32>
    %204 = arith.addf %203, %34 : vector<8x256xf32>
    %205 = vector.extract_strided_slice %204 {offsets = [0, 0], sizes = [8, 64], strides = [1, 1]} : vector<8x256xf32> to vector<8x64xf32>
    %206 = vector.extract_strided_slice %204 {offsets = [0, 64], sizes = [8, 64], strides = [1, 1]} : vector<8x256xf32> to vector<8x64xf32>
    %207 = vector.extract_strided_slice %204 {offsets = [0, 128], sizes = [8, 64], strides = [1, 1]} : vector<8x256xf32> to vector<8x64xf32>
    %208 = vector.extract_strided_slice %204 {offsets = [0, 192], sizes = [8, 64], strides = [1, 1]} : vector<8x256xf32> to vector<8x64xf32>
    %209 = arith.mulf %206, %186 : vector<8x64xf32>
    %210 = arith.mulf %205, %207 : vector<8x64xf32>
    %211 = arith.addf %209, %210 : vector<8x64xf32>
    %212 = math.tanh %211 : vector<8x64xf32>
    %213 = arith.mulf %208, %212 : vector<8x64xf32>
    %214 = vector.extract_strided_slice %213 {offsets = [0, 0], sizes = [8, 32], strides = [1, 1]} : vector<8x64xf32> to vector<8x32xf32>
    %215 = arith.truncf %214 : vector<8x32xf32> to vector<8x32xbf16>
    %c48_69 = arith.constant 48 : index
    %c0_70 = arith.constant 0 : index
    %216 = vector.load %arg15[%c48_69, %c0_70] : memref<64x64xbf16, #tpu.memory_space<vmem>>, vector<8x32xbf16>
    tpu.vector_store %arg15[%c48_69, %c0_70], %215 {strides = array<i32>} : memref<64x64xbf16, #tpu.memory_space<vmem>>, vector<8x32xbf16>,
    %217 = vector.extract_strided_slice %213 {offsets = [0, 32], sizes = [8, 32], strides = [1, 1]} : vector<8x64xf32> to vector<8x32xf32>
    %218 = arith.truncf %217 : vector<8x32xf32> to vector<8x32xbf16>
    %c8_71 = arith.constant 8 : index
    %c32_72 = arith.constant 32 : index
    %219 = vector.load %arg15[%c8_71, %c32_72] : memref<64x64xbf16, #tpu.memory_space<vmem>>, vector<8x32xbf16>
    tpu.vector_store %arg15[%c8_71, %c32_72], %218 {strides = array<i32>} : memref<64x64xbf16, #tpu.memory_space<vmem>>, vector<8x32xbf16>,
    %c56_73 = arith.constant 56 : index
    %c0_74 = arith.constant 0 : index
    %220 = vector.load %arg14[%c56_73, %c0_74] : memref<64x256xf32, #tpu.memory_space<vmem>>, vector<8x256xf32>
    %c0_75 = arith.constant 0 : index
    %c0_76 = arith.constant 0 : index
    %221 = vector.load %arg14[%c0_75, %c0_76] : memref<64x256xf32, #tpu.memory_space<vmem>>, vector<8x256xf32>
    %222 = arith.select %23, %220, %221 : vector<8x256xi1>, vector<8x256xf32>
    %223 = arith.truncf %213 : vector<8x64xf32> to vector<8x64xbf16>
    %cst_77 = arith.constant dense<0.000000e+00> : vector<8x256xf32>
    %224 = tpu.matmul %223, %42, %cst_77 {dimension_numbers = #tpu.dot_dimension_numbers<[1], [0], [0], [1], [0, 0, 1, 1], [], []>} : vector<8x64xbf16>, vector<64x256xbf16>, vector<8x256xf32> -> vector<8x256xf32>
    %225 = arith.addf %222, %224 : vector<8x256xf32>
    %226 = arith.mulf %225, %31 : vector<8x256xf32>
    %227 = math.tanh %226 : vector<8x256xf32>
    %228 = arith.mulf %227, %31 : vector<8x256xf32>
    %229 = arith.addf %228, %34 : vector<8x256xf32>
    %230 = vector.extract_strided_slice %229 {offsets = [0, 0], sizes = [8, 64], strides = [1, 1]} : vector<8x256xf32> to vector<8x64xf32>
    %231 = vector.extract_strided_slice %229 {offsets = [0, 64], sizes = [8, 64], strides = [1, 1]} : vector<8x256xf32> to vector<8x64xf32>
    %232 = vector.extract_strided_slice %229 {offsets = [0, 128], sizes = [8, 64], strides = [1, 1]} : vector<8x256xf32> to vector<8x64xf32>
    %233 = vector.extract_strided_slice %229 {offsets = [0, 192], sizes = [8, 64], strides = [1, 1]} : vector<8x256xf32> to vector<8x64xf32>
    %234 = arith.mulf %231, %211 : vector<8x64xf32>
    %235 = arith.mulf %230, %232 : vector<8x64xf32>
    %236 = arith.addf %234, %235 : vector<8x64xf32>
    %237 = math.tanh %236 : vector<8x64xf32>
    %238 = arith.mulf %233, %237 : vector<8x64xf32>
    %239 = vector.extract_strided_slice %238 {offsets = [0, 0], sizes = [8, 32], strides = [1, 1]} : vector<8x64xf32> to vector<8x32xf32>
    %240 = arith.truncf %239 : vector<8x32xf32> to vector<8x32xbf16>
    %c56_78 = arith.constant 56 : index
    %c0_79 = arith.constant 0 : index
    %241 = vector.load %arg15[%c56_78, %c0_79] : memref<64x64xbf16, #tpu.memory_space<vmem>>, vector<8x32xbf16>
    tpu.vector_store %arg15[%c56_78, %c0_79], %240 {strides = array<i32>} : memref<64x64xbf16, #tpu.memory_space<vmem>>, vector<8x32xbf16>,
    %242 = vector.extract_strided_slice %238 {offsets = [0, 32], sizes = [8, 32], strides = [1, 1]} : vector<8x64xf32> to vector<8x32xf32>
    %243 = arith.truncf %242 : vector<8x32xf32> to vector<8x32xbf16>
    %c0_80 = arith.constant 0 : index
    %c32_81 = arith.constant 32 : index
    %244 = vector.load %arg15[%c0_80, %c32_81] : memref<64x64xbf16, #tpu.memory_space<vmem>>, vector<8x32xbf16>
    tpu.vector_store %arg15[%c0_80, %c32_81], %243 {strides = array<i32>} : memref<64x64xbf16, #tpu.memory_space<vmem>>, vector<8x32xbf16>,
    %c0_82 = arith.constant 0 : index
    %c0_83 = arith.constant 0 : index
    %245 = vector.load %arg15[%c0_82, %c0_83] : memref<64x64xbf16, #tpu.memory_space<vmem>>, vector<64x64xbf16>
    %c0_84 = arith.constant 0 : index
    %c0_85 = arith.constant 0 : index
    %246 = vector.load %arg4[%c0_84, %c0_85] : memref<64x256xbf16, #tpu.memory_space<vmem>>, vector<64x256xbf16>
    %cst_86 = arith.constant dense<0.000000e+00> : vector<64x256xf32>
    %247 = tpu.matmul %245, %246, %cst_86 {dimension_numbers = #tpu.dot_dimension_numbers<[1], [0], [0], [1], [0, 0, 1, 1], [], []>} : vector<64x64xbf16>, vector<64x256xbf16>, vector<64x256xf32> -> vector<64x256xf32>
    %c0_87 = arith.constant 0 : index
    %c0_88 = arith.constant 0 : index
    %248 = vector.load %arg6[%c0_87, %c0_88] : memref<1x256xf32, #tpu.memory_space<vmem>>, vector<1x256xf32>
    %249 = vector.broadcast %248 : vector<1x256xf32> to vector<64x256xf32>
    %250 = arith.addf %247, %249 : vector<64x256xf32>
    %c0_89 = arith.constant 0 : index
    %c0_90 = arith.constant 0 : index
    %251 = vector.load %arg14[%c0_89, %c0_90] : memref<64x256xf32, #tpu.memory_space<vmem>>, vector<64x256xf32>
    tpu.vector_store %arg14[%c0_89, %c0_90], %250 {strides = array<i32>} : memref<64x256xf32, #tpu.memory_space<vmem>>, vector<64x256xf32>,
    %c0_91 = arith.constant 0 : index
    %c0_92 = arith.constant 0 : index
    %252 = vector.load %arg5[%c0_91, %c0_92] : memref<64x256xbf16, #tpu.memory_space<vmem>>, vector<64x256xbf16>
    %cst_93 = arith.constant 0.000000e+00 : f32
    %253 = vector.broadcast %cst_93 : f32 to vector<8x64xf32>
    %cst_94 = arith.constant 0.000000e+00 : f32
    %254 = vector.broadcast %cst_94 : f32 to vector<8x64xf32>
    %cst_95 = arith.constant 0.000000e+00 : f32
    %255 = vector.broadcast %cst_95 : f32 to vector<8x64xf32>
    %c0_96 = arith.constant 0 : index
    %c0_97 = arith.constant 0 : index
    %256 = vector.load %arg14[%c0_96, %c0_97] : memref<64x256xf32, #tpu.memory_space<vmem>>, vector<8x256xf32>
    %c56_98 = arith.constant 56 : index
    %c0_99 = arith.constant 0 : index
    %257 = vector.load %arg14[%c56_98, %c0_99] : memref<64x256xf32, #tpu.memory_space<vmem>>, vector<8x256xf32>
    %258 = arith.select %23, %256, %257 : vector<8x256xi1>, vector<8x256xf32>
    %259 = arith.truncf %253 : vector<8x64xf32> to vector<8x64xbf16>
    %cst_100 = arith.constant dense<0.000000e+00> : vector<8x256xf32>
    %260 = tpu.matmul %259, %252, %cst_100 {dimension_numbers = #tpu.dot_dimension_numbers<[1], [0], [0], [1], [0, 0, 1, 1], [], []>} : vector<8x64xbf16>, vector<64x256xbf16>, vector<8x256xf32> -> vector<8x256xf32>
    %261 = arith.addf %258, %260 : vector<8x256xf32>
    %262 = arith.mulf %261, %31 : vector<8x256xf32>
    %263 = math.tanh %262 : vector<8x256xf32>
    %264 = arith.mulf %263, %31 : vector<8x256xf32>
    %265 = arith.addf %264, %34 : vector<8x256xf32>
    %266 = vector.extract_strided_slice %265 {offsets = [0, 0], sizes = [8, 64], strides = [1, 1]} : vector<8x256xf32> to vector<8x64xf32>
    %267 = vector.extract_strided_slice %265 {offsets = [0, 64], sizes = [8, 64], strides = [1, 1]} : vector<8x256xf32> to vector<8x64xf32>
    %268 = vector.extract_strided_slice %265 {offsets = [0, 128], sizes = [8, 64], strides = [1, 1]} : vector<8x256xf32> to vector<8x64xf32>
    %269 = vector.extract_strided_slice %265 {offsets = [0, 192], sizes = [8, 64], strides = [1, 1]} : vector<8x256xf32> to vector<8x64xf32>
    %270 = arith.mulf %267, %254 : vector<8x64xf32>
    %271 = arith.mulf %266, %268 : vector<8x64xf32>
    %272 = arith.addf %270, %271 : vector<8x64xf32>
    %273 = math.tanh %272 : vector<8x64xf32>
    %274 = arith.mulf %269, %273 : vector<8x64xf32>
    %275 = arith.addf %255, %274 : vector<8x64xf32>
    %c8_101 = arith.constant 8 : index
    %c0_102 = arith.constant 0 : index
    %276 = vector.load %arg14[%c8_101, %c0_102] : memref<64x256xf32, #tpu.memory_space<vmem>>, vector<8x256xf32>
    %c48_103 = arith.constant 48 : index
    %c0_104 = arith.constant 0 : index
    %277 = vector.load %arg14[%c48_103, %c0_104] : memref<64x256xf32, #tpu.memory_space<vmem>>, vector<8x256xf32>
    %278 = arith.select %23, %276, %277 : vector<8x256xi1>, vector<8x256xf32>
    %279 = arith.truncf %274 : vector<8x64xf32> to vector<8x64xbf16>
    %cst_105 = arith.constant dense<0.000000e+00> : vector<8x256xf32>
    %280 = tpu.matmul %279, %252, %cst_105 {dimension_numbers = #tpu.dot_dimension_numbers<[1], [0], [0], [1], [0, 0, 1, 1], [], []>} : vector<8x64xbf16>, vector<64x256xbf16>, vector<8x256xf32> -> vector<8x256xf32>
    %281 = arith.addf %278, %280 : vector<8x256xf32>
    %282 = arith.mulf %281, %31 : vector<8x256xf32>
    %283 = math.tanh %282 : vector<8x256xf32>
    %284 = arith.mulf %283, %31 : vector<8x256xf32>
    %285 = arith.addf %284, %34 : vector<8x256xf32>
    %286 = vector.extract_strided_slice %285 {offsets = [0, 0], sizes = [8, 64], strides = [1, 1]} : vector<8x256xf32> to vector<8x64xf32>
    %287 = vector.extract_strided_slice %285 {offsets = [0, 64], sizes = [8, 64], strides = [1, 1]} : vector<8x256xf32> to vector<8x64xf32>
    %288 = vector.extract_strided_slice %285 {offsets = [0, 128], sizes = [8, 64], strides = [1, 1]} : vector<8x256xf32> to vector<8x64xf32>
    %289 = vector.extract_strided_slice %285 {offsets = [0, 192], sizes = [8, 64], strides = [1, 1]} : vector<8x256xf32> to vector<8x64xf32>
    %290 = arith.mulf %287, %272 : vector<8x64xf32>
    %291 = arith.mulf %286, %288 : vector<8x64xf32>
    %292 = arith.addf %290, %291 : vector<8x64xf32>
    %293 = math.tanh %292 : vector<8x64xf32>
    %294 = arith.mulf %289, %293 : vector<8x64xf32>
    %295 = arith.addf %275, %294 : vector<8x64xf32>
    %c16_106 = arith.constant 16 : index
    %c0_107 = arith.constant 0 : index
    %296 = vector.load %arg14[%c16_106, %c0_107] : memref<64x256xf32, #tpu.memory_space<vmem>>, vector<8x256xf32>
    %c40_108 = arith.constant 40 : index
    %c0_109 = arith.constant 0 : index
    %297 = vector.load %arg14[%c40_108, %c0_109] : memref<64x256xf32, #tpu.memory_space<vmem>>, vector<8x256xf32>
    %298 = arith.select %23, %296, %297 : vector<8x256xi1>, vector<8x256xf32>
    %299 = arith.truncf %294 : vector<8x64xf32> to vector<8x64xbf16>
    %cst_110 = arith.constant dense<0.000000e+00> : vector<8x256xf32>
    %300 = tpu.matmul %299, %252, %cst_110 {dimension_numbers = #tpu.dot_dimension_numbers<[1], [0], [0], [1], [0, 0, 1, 1], [], []>} : vector<8x64xbf16>, vector<64x256xbf16>, vector<8x256xf32> -> vector<8x256xf32>
    %301 = arith.addf %298, %300 : vector<8x256xf32>
    %302 = arith.mulf %301, %31 : vector<8x256xf32>
    %303 = math.tanh %302 : vector<8x256xf32>
    %304 = arith.mulf %303, %31 : vector<8x256xf32>
    %305 = arith.addf %304, %34 : vector<8x256xf32>
    %306 = vector.extract_strided_slice %305 {offsets = [0, 0], sizes = [8, 64], strides = [1, 1]} : vector<8x256xf32> to vector<8x64xf32>
    %307 = vector.extract_strided_slice %305 {offsets = [0, 64], sizes = [8, 64], strides = [1, 1]} : vector<8x256xf32> to vector<8x64xf32>
    %308 = vector.extract_strided_slice %305 {offsets = [0, 128], sizes = [8, 64], strides = [1, 1]} : vector<8x256xf32> to vector<8x64xf32>
    %309 = vector.extract_strided_slice %305 {offsets = [0, 192], sizes = [8, 64], strides = [1, 1]} : vector<8x256xf32> to vector<8x64xf32>
    %310 = arith.mulf %307, %292 : vector<8x64xf32>
    %311 = arith.mulf %306, %308 : vector<8x64xf32>
    %312 = arith.addf %310, %311 : vector<8x64xf32>
    %313 = math.tanh %312 : vector<8x64xf32>
    %314 = arith.mulf %309, %313 : vector<8x64xf32>
    %315 = arith.addf %295, %314 : vector<8x64xf32>
    %c24_111 = arith.constant 24 : index
    %c0_112 = arith.constant 0 : index
    %316 = vector.load %arg14[%c24_111, %c0_112] : memref<64x256xf32, #tpu.memory_space<vmem>>, vector<8x256xf32>
    %c32_113 = arith.constant 32 : index
    %c0_114 = arith.constant 0 : index
    %317 = vector.load %arg14[%c32_113, %c0_114] : memref<64x256xf32, #tpu.memory_space<vmem>>, vector<8x256xf32>
    %318 = arith.select %23, %316, %317 : vector<8x256xi1>, vector<8x256xf32>
    %319 = arith.truncf %314 : vector<8x64xf32> to vector<8x64xbf16>
    %cst_115 = arith.constant dense<0.000000e+00> : vector<8x256xf32>
    %320 = tpu.matmul %319, %252, %cst_115 {dimension_numbers = #tpu.dot_dimension_numbers<[1], [0], [0], [1], [0, 0, 1, 1], [], []>} : vector<8x64xbf16>, vector<64x256xbf16>, vector<8x256xf32> -> vector<8x256xf32>
    %321 = arith.addf %318, %320 : vector<8x256xf32>
    %322 = arith.mulf %321, %31 : vector<8x256xf32>
    %323 = math.tanh %322 : vector<8x256xf32>
    %324 = arith.mulf %323, %31 : vector<8x256xf32>
    %325 = arith.addf %324, %34 : vector<8x256xf32>
    %326 = vector.extract_strided_slice %325 {offsets = [0, 0], sizes = [8, 64], strides = [1, 1]} : vector<8x256xf32> to vector<8x64xf32>
    %327 = vector.extract_strided_slice %325 {offsets = [0, 64], sizes = [8, 64], strides = [1, 1]} : vector<8x256xf32> to vector<8x64xf32>
    %328 = vector.extract_strided_slice %325 {offsets = [0, 128], sizes = [8, 64], strides = [1, 1]} : vector<8x256xf32> to vector<8x64xf32>
    %329 = vector.extract_strided_slice %325 {offsets = [0, 192], sizes = [8, 64], strides = [1, 1]} : vector<8x256xf32> to vector<8x64xf32>
    %330 = arith.mulf %327, %312 : vector<8x64xf32>
    %331 = arith.mulf %326, %328 : vector<8x64xf32>
    %332 = arith.addf %330, %331 : vector<8x64xf32>
    %333 = math.tanh %332 : vector<8x64xf32>
    %334 = arith.mulf %329, %333 : vector<8x64xf32>
    %335 = arith.addf %315, %334 : vector<8x64xf32>
    %c32_116 = arith.constant 32 : index
    %c0_117 = arith.constant 0 : index
    %336 = vector.load %arg14[%c32_116, %c0_117] : memref<64x256xf32, #tpu.memory_space<vmem>>, vector<8x256xf32>
    %c24_118 = arith.constant 24 : index
    %c0_119 = arith.constant 0 : index
    %337 = vector.load %arg14[%c24_118, %c0_119] : memref<64x256xf32, #tpu.memory_space<vmem>>, vector<8x256xf32>
    %338 = arith.select %23, %336, %337 : vector<8x256xi1>, vector<8x256xf32>
    %339 = arith.truncf %334 : vector<8x64xf32> to vector<8x64xbf16>
    %cst_120 = arith.constant dense<0.000000e+00> : vector<8x256xf32>
    %340 = tpu.matmul %339, %252, %cst_120 {dimension_numbers = #tpu.dot_dimension_numbers<[1], [0], [0], [1], [0, 0, 1, 1], [], []>} : vector<8x64xbf16>, vector<64x256xbf16>, vector<8x256xf32> -> vector<8x256xf32>
    %341 = arith.addf %338, %340 : vector<8x256xf32>
    %342 = arith.mulf %341, %31 : vector<8x256xf32>
    %343 = math.tanh %342 : vector<8x256xf32>
    %344 = arith.mulf %343, %31 : vector<8x256xf32>
    %345 = arith.addf %344, %34 : vector<8x256xf32>
    %346 = vector.extract_strided_slice %345 {offsets = [0, 0], sizes = [8, 64], strides = [1, 1]} : vector<8x256xf32> to vector<8x64xf32>
    %347 = vector.extract_strided_slice %345 {offsets = [0, 64], sizes = [8, 64], strides = [1, 1]} : vector<8x256xf32> to vector<8x64xf32>
    %348 = vector.extract_strided_slice %345 {offsets = [0, 128], sizes = [8, 64], strides = [1, 1]} : vector<8x256xf32> to vector<8x64xf32>
    %349 = vector.extract_strided_slice %345 {offsets = [0, 192], sizes = [8, 64], strides = [1, 1]} : vector<8x256xf32> to vector<8x64xf32>
    %350 = arith.mulf %347, %332 : vector<8x64xf32>
    %351 = arith.mulf %346, %348 : vector<8x64xf32>
    %352 = arith.addf %350, %351 : vector<8x64xf32>
    %353 = math.tanh %352 : vector<8x64xf32>
    %354 = arith.mulf %349, %353 : vector<8x64xf32>
    %355 = arith.addf %335, %354 : vector<8x64xf32>
    %c40_121 = arith.constant 40 : index
    %c0_122 = arith.constant 0 : index
    %356 = vector.load %arg14[%c40_121, %c0_122] : memref<64x256xf32, #tpu.memory_space<vmem>>, vector<8x256xf32>
    %c16_123 = arith.constant 16 : index
    %c0_124 = arith.constant 0 : index
    %357 = vector.load %arg14[%c16_123, %c0_124] : memref<64x256xf32, #tpu.memory_space<vmem>>, vector<8x256xf32>
    %358 = arith.select %23, %356, %357 : vector<8x256xi1>, vector<8x256xf32>
    %359 = arith.truncf %354 : vector<8x64xf32> to vector<8x64xbf16>
    %cst_125 = arith.constant dense<0.000000e+00> : vector<8x256xf32>
    %360 = tpu.matmul %359, %252, %cst_125 {dimension_numbers = #tpu.dot_dimension_numbers<[1], [0], [0], [1], [0, 0, 1, 1], [], []>} : vector<8x64xbf16>, vector<64x256xbf16>, vector<8x256xf32> -> vector<8x256xf32>
    %361 = arith.addf %358, %360 : vector<8x256xf32>
    %362 = arith.mulf %361, %31 : vector<8x256xf32>
    %363 = math.tanh %362 : vector<8x256xf32>
    %364 = arith.mulf %363, %31 : vector<8x256xf32>
    %365 = arith.addf %364, %34 : vector<8x256xf32>
    %366 = vector.extract_strided_slice %365 {offsets = [0, 0], sizes = [8, 64], strides = [1, 1]} : vector<8x256xf32> to vector<8x64xf32>
    %367 = vector.extract_strided_slice %365 {offsets = [0, 64], sizes = [8, 64], strides = [1, 1]} : vector<8x256xf32> to vector<8x64xf32>
    %368 = vector.extract_strided_slice %365 {offsets = [0, 128], sizes = [8, 64], strides = [1, 1]} : vector<8x256xf32> to vector<8x64xf32>
    %369 = vector.extract_strided_slice %365 {offsets = [0, 192], sizes = [8, 64], strides = [1, 1]} : vector<8x256xf32> to vector<8x64xf32>
    %370 = arith.mulf %367, %352 : vector<8x64xf32>
    %371 = arith.mulf %366, %368 : vector<8x64xf32>
    %372 = arith.addf %370, %371 : vector<8x64xf32>
    %373 = math.tanh %372 : vector<8x64xf32>
    %374 = arith.mulf %369, %373 : vector<8x64xf32>
    %375 = arith.addf %355, %374 : vector<8x64xf32>
    %c48_126 = arith.constant 48 : index
    %c0_127 = arith.constant 0 : index
    %376 = vector.load %arg14[%c48_126, %c0_127] : memref<64x256xf32, #tpu.memory_space<vmem>>, vector<8x256xf32>
    %c8_128 = arith.constant 8 : index
    %c0_129 = arith.constant 0 : index
    %377 = vector.load %arg14[%c8_128, %c0_129] : memref<64x256xf32, #tpu.memory_space<vmem>>, vector<8x256xf32>
    %378 = arith.select %23, %376, %377 : vector<8x256xi1>, vector<8x256xf32>
    %379 = arith.truncf %374 : vector<8x64xf32> to vector<8x64xbf16>
    %cst_130 = arith.constant dense<0.000000e+00> : vector<8x256xf32>
    %380 = tpu.matmul %379, %252, %cst_130 {dimension_numbers = #tpu.dot_dimension_numbers<[1], [0], [0], [1], [0, 0, 1, 1], [], []>} : vector<8x64xbf16>, vector<64x256xbf16>, vector<8x256xf32> -> vector<8x256xf32>
    %381 = arith.addf %378, %380 : vector<8x256xf32>
    %382 = arith.mulf %381, %31 : vector<8x256xf32>
    %383 = math.tanh %382 : vector<8x256xf32>
    %384 = arith.mulf %383, %31 : vector<8x256xf32>
    %385 = arith.addf %384, %34 : vector<8x256xf32>
    %386 = vector.extract_strided_slice %385 {offsets = [0, 0], sizes = [8, 64], strides = [1, 1]} : vector<8x256xf32> to vector<8x64xf32>
    %387 = vector.extract_strided_slice %385 {offsets = [0, 64], sizes = [8, 64], strides = [1, 1]} : vector<8x256xf32> to vector<8x64xf32>
    %388 = vector.extract_strided_slice %385 {offsets = [0, 128], sizes = [8, 64], strides = [1, 1]} : vector<8x256xf32> to vector<8x64xf32>
    %389 = vector.extract_strided_slice %385 {offsets = [0, 192], sizes = [8, 64], strides = [1, 1]} : vector<8x256xf32> to vector<8x64xf32>
    %390 = arith.mulf %387, %372 : vector<8x64xf32>
    %391 = arith.mulf %386, %388 : vector<8x64xf32>
    %392 = arith.addf %390, %391 : vector<8x64xf32>
    %393 = math.tanh %392 : vector<8x64xf32>
    %394 = arith.mulf %389, %393 : vector<8x64xf32>
    %395 = arith.addf %375, %394 : vector<8x64xf32>
    %c56_131 = arith.constant 56 : index
    %c0_132 = arith.constant 0 : index
    %396 = vector.load %arg14[%c56_131, %c0_132] : memref<64x256xf32, #tpu.memory_space<vmem>>, vector<8x256xf32>
    %c0_133 = arith.constant 0 : index
    %c0_134 = arith.constant 0 : index
    %397 = vector.load %arg14[%c0_133, %c0_134] : memref<64x256xf32, #tpu.memory_space<vmem>>, vector<8x256xf32>
    %398 = arith.select %23, %396, %397 : vector<8x256xi1>, vector<8x256xf32>
    %399 = arith.truncf %394 : vector<8x64xf32> to vector<8x64xbf16>
    %cst_135 = arith.constant dense<0.000000e+00> : vector<8x256xf32>
    %400 = tpu.matmul %399, %252, %cst_135 {dimension_numbers = #tpu.dot_dimension_numbers<[1], [0], [0], [1], [0, 0, 1, 1], [], []>} : vector<8x64xbf16>, vector<64x256xbf16>, vector<8x256xf32> -> vector<8x256xf32>
    %401 = arith.addf %398, %400 : vector<8x256xf32>
    %402 = arith.mulf %401, %31 : vector<8x256xf32>
    %403 = math.tanh %402 : vector<8x256xf32>
    %404 = arith.mulf %403, %31 : vector<8x256xf32>
    %405 = arith.addf %404, %34 : vector<8x256xf32>
    %406 = vector.extract_strided_slice %405 {offsets = [0, 0], sizes = [8, 64], strides = [1, 1]} : vector<8x256xf32> to vector<8x64xf32>
    %407 = vector.extract_strided_slice %405 {offsets = [0, 64], sizes = [8, 64], strides = [1, 1]} : vector<8x256xf32> to vector<8x64xf32>
    %408 = vector.extract_strided_slice %405 {offsets = [0, 128], sizes = [8, 64], strides = [1, 1]} : vector<8x256xf32> to vector<8x64xf32>
    %409 = vector.extract_strided_slice %405 {offsets = [0, 192], sizes = [8, 64], strides = [1, 1]} : vector<8x256xf32> to vector<8x64xf32>
    %410 = arith.mulf %407, %392 : vector<8x64xf32>
    %411 = arith.mulf %406, %408 : vector<8x64xf32>
    %412 = arith.addf %410, %411 : vector<8x64xf32>
    %413 = math.tanh %412 : vector<8x64xf32>
    %414 = arith.mulf %409, %413 : vector<8x64xf32>
    %415 = arith.addf %395, %414 : vector<8x64xf32>
    %cst_136 = arith.constant 1.250000e-01 : f32
    %416 = vector.broadcast %cst_136 : f32 to vector<8x64xf32>
    %417 = arith.mulf %415, %416 : vector<8x64xf32>
    %c0_137 = arith.constant 0 : index
    %c0_138 = arith.constant 0 : index
    %418 = vector.load %arg7[%c0_137, %c0_138] : memref<64x128xf32, #tpu.memory_space<vmem>>, vector<64x128xf32>
    %cst_139 = arith.constant dense<0.000000e+00> : vector<8x128xf32>
    %419 = tpu.matmul %417, %418, %cst_139 {dimension_numbers = #tpu.dot_dimension_numbers<[1], [0], [0], [1], [0, 0, 1, 1], [], []>} : vector<8x64xf32>, vector<64x128xf32>, vector<8x128xf32> -> vector<8x128xf32>
    %c0_140 = arith.constant 0 : index
    %c0_141 = arith.constant 0 : index
    %420 = vector.load %arg8[%c0_140, %c0_141] : memref<1x128xf32, #tpu.memory_space<vmem>>, vector<1x128xf32>
    %421 = vector.broadcast %420 : vector<1x128xf32> to vector<8x128xf32>
    %422 = arith.addf %419, %421 : vector<8x128xf32>
    %cst_142 = arith.constant 0.000000e+00 : f32
    %423 = vector.broadcast %cst_142 : f32 to vector<8x128xf32>
    %424 = arith.cmpf ogt, %422, %423 : vector<8x128xf32>
    %cst_143 = arith.constant 0.00999999977 : f32
    %425 = vector.broadcast %cst_143 : f32 to vector<8x128xf32>
    %426 = arith.mulf %425, %422 : vector<8x128xf32>
    %427 = arith.select %424, %422, %426 : vector<8x128xi1>, vector<8x128xf32>
    %c0_144 = arith.constant 0 : index
    %c0_145 = arith.constant 0 : index
    %428 = vector.load %arg9[%c0_144, %c0_145] : memref<128x128xf32, #tpu.memory_space<vmem>>, vector<128x128xf32>
    %cst_146 = arith.constant dense<0.000000e+00> : vector<8x128xf32>
    %429 = tpu.matmul %427, %428, %cst_146 {dimension_numbers = #tpu.dot_dimension_numbers<[1], [0], [0], [1], [0, 0, 1, 1], [], []>} : vector<8x128xf32>, vector<128x128xf32>, vector<8x128xf32> -> vector<8x128xf32>
    %c0_147 = arith.constant 0 : index
    %c0_148 = arith.constant 0 : index
    %430 = vector.load %arg10[%c0_147, %c0_148] : memref<1x128xf32, #tpu.memory_space<vmem>>, vector<1x128xf32>
    %431 = vector.broadcast %430 : vector<1x128xf32> to vector<8x128xf32>
    %432 = arith.addf %429, %431 : vector<8x128xf32>
    %cst_149 = arith.constant 0.000000e+00 : f32
    %433 = vector.broadcast %cst_149 : f32 to vector<8x128xf32>
    %434 = arith.cmpf ogt, %432, %433 : vector<8x128xf32>
    %cst_150 = arith.constant 0.00999999977 : f32
    %435 = vector.broadcast %cst_150 : f32 to vector<8x128xf32>
    %436 = arith.mulf %435, %432 : vector<8x128xf32>
    %437 = arith.select %434, %432, %436 : vector<8x128xi1>, vector<8x128xf32>
    %c0_151 = arith.constant 0 : index
    %c0_152 = arith.constant 0 : index
    %438 = vector.load %arg11[%c0_151, %c0_152] : memref<128x128xf32, #tpu.memory_space<vmem>>, vector<128x128xf32>
    %cst_153 = arith.constant dense<0.000000e+00> : vector<8x128xf32>
    %439 = tpu.matmul %437, %438, %cst_153 {dimension_numbers = #tpu.dot_dimension_numbers<[1], [0], [0], [1], [0, 0, 1, 1], [], []>} : vector<8x128xf32>, vector<128x128xf32>, vector<8x128xf32> -> vector<8x128xf32>
    %c0_154 = arith.constant 0 : index
    %c0_155 = arith.constant 0 : index
    %440 = vector.load %arg12[%c0_154, %c0_155] : memref<1x128xf32, #tpu.memory_space<vmem>>, vector<1x128xf32>
    %441 = vector.broadcast %440 : vector<1x128xf32> to vector<8x128xf32>
    %442 = arith.addf %439, %441 : vector<8x128xf32>
    %c0_156 = arith.constant 0 : index
    %c0_157 = arith.constant 0 : index
    %443 = vector.load %arg13[%c0_156, %c0_157] : memref<8x128xf32, #tpu.memory_space<vmem>>, vector<8x128xf32>
    tpu.vector_store %arg13[%c0_156, %c0_157], %442 {strides = array<i32>} : memref<8x128xf32, #tpu.memory_space<vmem>>, vector<8x128xf32>,
    return
  }
}

</mosaic_0001>

<llo_original>
// kernel: bilstm_model_forward.1
$region0: #{bilstm_model_forward.1}
  #allocation0 [shape = 'u32[]', space=smem, size = 0x4, offset = 0x4, fixed_abs, tag = 'smem constant byte address 0x4 - core index']
  #allocation1 [shape = 'u32[144,128]{1,0:T(1,128)}', space=vmem, size = 0x12000, scoped, tag = 'internal scratch']
  #allocation2 [shape = 'f32[64,256]{1,0:T(8,128)}', space=vmem, size = 0x10000, scoped, tag = 'scratch operand']
  #allocation3 [shape = 'bf16[64,64]{1,0:T(8,128)(2,1)}', space=vmem, size = 0x4000, scoped, tag = 'scratch operand']
  %s0 = inlined_call_operand.vmem [shape: bf16[64,16], index: 0, kind: input, shape index: {}]
  %s1 = inlined_call_operand.vmem [shape: bf16[16,256], index: 1, kind: input, shape index: {}]
  %s2 = inlined_call_operand.hbm [shape: bf16[64,256], index: 2, kind: input, shape index: {}]
  %s3 = inlined_call_operand.vmem [shape: f32[1,256], index: 3, kind: input, shape index: {}]
  %s4 = inlined_call_operand.hbm [shape: bf16[64,256], index: 4, kind: input, shape index: {}]
  %s5 = inlined_call_operand.hbm [shape: bf16[64,256], index: 5, kind: input, shape index: {}]
  %s6 = inlined_call_operand.vmem [shape: f32[1,256], index: 6, kind: input, shape index: {}]
  %s7 = inlined_call_operand.hbm [shape: f32[64,128], index: 7, kind: input, shape index: {}]
  %s8 = inlined_call_operand.hbm [shape: f32[1,128], index: 8, kind: input, shape index: {}]
  %s9 = inlined_call_operand.hbm [shape: f32[128,128], index: 9, kind: input, shape index: {}]
  %s10 = inlined_call_operand.hbm [shape: f32[1,128], index: 10, kind: input, shape index: {}]
  %s11 = inlined_call_operand.vmem [shape: f32[128,128], index: 11, kind: input, shape index: {}]
  %s12 = inlined_call_operand.vmem [shape: f32[1,128], index: 12, kind: input, shape index: {}]
  %s13 = inlined_call_operand.vmem [shape: f32[8,128], index: 13, kind: output, shape index: {}]
  %s14 = sld [smem:[#allocation0]]
  $region90: #{bilstm_model_forward.1} parent=0
    _
  %s16 = ssub.s32 1, %s14
  %s17 = scalar_select 0, %s16, %s14
  $region1: #{bilstm_model_forward.1} parent=0
    #allocation4 [shape = 'u8[32768]{0}', space=vmem, size = 0x8000, scoped, tag = 'input window, operand 2, single buffered']
    #allocation5 [shape = 's32[1]{0}', space=sflag, size = 0x4, scoped, tag = 'scoped memory for bilstm_model_forward.1']
    #allocation6 [shape = 'u8[32768]{0}', space=vmem, size = 0x8000, scoped, tag = 'input window, operand 4, single buffered']
    #allocation7 [shape = 's32[1]{0}', space=sflag, size = 0x4, scoped, tag = 'scoped memory for bilstm_model_forward.1']
    #allocation8 [shape = 'u8[32768]{0}', space=vmem, size = 0x8000, scoped, tag = 'input window, operand 5, single buffered']
    #allocation9 [shape = 'u8[32768]{0}', space=vmem, size = 0x8000, scoped, tag = 'input window, operand 7, single buffered']
    #allocation10 [shape = 's32[1]{0}', space=sflag, size = 0x4, scoped, tag = 'scoped memory for bilstm_model_forward.1']
    #allocation11 [shape = 'u8[512]{0}', space=vmem, size = 0x400, scoped, tag = 'input window, operand 8, single buffered']
    #allocation12 [shape = 'u8[65536]{0}', space=vmem, size = 0x10000, scoped, tag = 'input window, operand 9, single buffered']
    #allocation13 [shape = 's32[1]{0}', space=sflag, size = 0x4, scoped, tag = 'scoped memory for bilstm_model_forward.1']
    #allocation14 [shape = 'u8[512]{0}', space=vmem, size = 0x400, scoped, tag = 'input window, operand 10, single buffered']
    %18 = vsyncpa [#allocation5], 0
    %19 = vsyncpa [#allocation7], 0
    %20 = vsyncpa [#allocation10], 0
    %21 = vsyncpa [#allocation13], 0
    // Predicated region
    $region2: #{bilstm_model_forward.1} parent=1 // pred_check
      _
    $region3: #{bilstm_model_forward.1} parent=1 // pred_check_branch
      %23 = sbr.rel (0) target = $region5
    $region4: #{bilstm_model_forward.1} parent=1 // pred_region
      _
    $region5: #{bilstm_model_forward.1} parent=1 // pred_fallthru
      _
    // Predicated region
    $region6: #{bilstm_model_forward.1} parent=1 // pred_check
      _
    $region7: #{bilstm_model_forward.1} parent=1 // pred_check_branch
      %25 = sbr.rel (0) target = $region9
    $region8: #{bilstm_model_forward.1} parent=1 // pred_region
      _
    $region9: #{bilstm_model_forward.1} parent=1 // pred_fallthru
      _
    // Predicated region
    $region10: #{bilstm_model_forward.1} parent=1 // pred_check
      _
    $region11: #{bilstm_model_forward.1} parent=1 // pred_check_branch
      %27 = sbr.rel (0) target = $region13
    $region12: #{bilstm_model_forward.1} parent=1 // pred_region
      %s29 = ssub.s32 1024, 1024
      %30 = vsyncadd [#allocation5], %s29
      %s31 = sshll.u32 [#allocation4], 4
      %s32 = int_to_ptr.vmem [resolvable:$true] %s31
      %37 = dma.hbm_to_vmem [thread:$0]  %s2, 1024, %s32, [#allocation5], 128, 128, 8
    $region13: #{bilstm_model_forward.1} parent=1 // pred_fallthru
      _
    // Predicated region
    $region14: #{bilstm_model_forward.1} parent=1 // pred_check
      _
    $region15: #{bilstm_model_forward.1} parent=1 // pred_check_branch
      %39 = sbr.rel (0) target = $region17
    $region16: #{bilstm_model_forward.1} parent=1 // pred_region
      _
    $region17: #{bilstm_model_forward.1} parent=1 // pred_fallthru
      _
    // Predicated region
    $region18: #{bilstm_model_forward.1} parent=1 // pred_check
      _
    $region19: #{bilstm_model_forward.1} parent=1 // pred_check_branch
      %41 = sbr.rel (0) target = $region21
    $region20: #{bilstm_model_forward.1} parent=1 // pred_region
      %s43 = ssub.s32 1024, 1024
      %44 = vsyncadd [#allocation7], %s43
      %s45 = sshll.u32 [#allocation6], 4
      %s46 = int_to_ptr.vmem [resolvable:$true] %s45
      %51 = dma.hbm_to_vmem [thread:$0]  %s4, 1024, %s46, [#allocation7], 128, 128, 8
    $region21: #{bilstm_model_forward.1} parent=1 // pred_fallthru
      _
    // Predicated region
    $region22: #{bilstm_model_forward.1} parent=1 // pred_check
      _
    $region23: #{bilstm_model_forward.1} parent=1 // pred_check_branch
      %53 = sbr.rel (0) target = $region25
    $region24: #{bilstm_model_forward.1} parent=1 // pred_region
      %s55 = ssub.s32 1024, 1024
      %56 = vsyncadd [#allocation7], %s55
      %s57 = sshll.u32 [#allocation8], 4
      %s58 = int_to_ptr.vmem [resolvable:$true] %s57
      %63 = dma.hbm_to_vmem [thread:$0]  %s5, 1024, %s58, [#allocation7], 128, 128, 8
    $region25: #{bilstm_model_forward.1} parent=1 // pred_fallthru
      _
    // Predicated region
    $region26: #{bilstm_model_forward.1} parent=1 // pred_check
      _
    $region27: #{bilstm_model_forward.1} parent=1 // pred_check_branch
      %65 = sbr.rel (0) target = $region29
    $region28: #{bilstm_model_forward.1} parent=1 // pred_region
      _
    $region29: #{bilstm_model_forward.1} parent=1 // pred_fallthru
      _
    // Predicated region
    $region30: #{bilstm_model_forward.1} parent=1 // pred_check
      _
    $region31: #{bilstm_model_forward.1} parent=1 // pred_check_branch
      %67 = sbr.rel (0) target = $region33
    $region32: #{bilstm_model_forward.1} parent=1 // pred_region
      %s69 = ssub.s32 1024, 1024
      %70 = vsyncadd [#allocation10], %s69
      %s71 = sshll.u32 [#allocation9], 4
      %s72 = int_to_ptr.vmem [resolvable:$true] %s71
      %77 = dma.hbm_to_vmem [thread:$0]  %s7, 1024, %s72, [#allocation10], 128, 128, 8
    $region33: #{bilstm_model_forward.1} parent=1 // pred_fallthru
      _
    // Predicated region
    $region34: #{bilstm_model_forward.1} parent=1 // pred_check
      _
    $region35: #{bilstm_model_forward.1} parent=1 // pred_check_branch
      %79 = sbr.rel (0) target = $region37
    $region36: #{bilstm_model_forward.1} parent=1 // pred_region
      %s81 = ssub.s32 16, 16
      %82 = vsyncadd [#allocation10], %s81
      %s84 = sshll.u32 [#allocation11], 4
      %s85 = int_to_ptr.vmem [resolvable:$true] %s84
      %87 = dma.hbm_to_vmem [thread:$0]  %s8, 16, %s85, [#allocation10]
    $region37: #{bilstm_model_forward.1} parent=1 // pred_fallthru
      _
    // Predicated region
    $region38: #{bilstm_model_forward.1} parent=1 // pred_check
      _
    $region39: #{bilstm_model_forward.1} parent=1 // pred_check_branch
      %89 = sbr.rel (0) target = $region41
    $region40: #{bilstm_model_forward.1} parent=1 // pred_region
      %s91 = ssub.s32 2048, 2048
      %92 = vsyncadd [#allocation13], %s91
      %s93 = sshll.u32 [#allocation12], 4
      %s94 = int_to_ptr.vmem [resolvable:$true] %s93
      %99 = dma.hbm_to_vmem [thread:$0]  %s9, 2048, %s94, [#allocation13], 128, 128, 8
    $region41: #{bilstm_model_forward.1} parent=1 // pred_fallthru
      _
    // Predicated region
    $region42: #{bilstm_model_forward.1} parent=1 // pred_check
      _
    $region43: #{bilstm_model_forward.1} parent=1 // pred_check_branch
      %101 = sbr.rel (0) target = $region45
    $region44: #{bilstm_model_forward.1} parent=1 // pred_region
      %s103 = ssub.s32 16, 16
      %104 = vsyncadd [#allocation13], %s103
      %s106 = sshll.u32 [#allocation14], 4
      %s107 = int_to_ptr.vmem [resolvable:$true] %s106
      %109 = dma.hbm_to_vmem [thread:$0]  %s10, 16, %s107, [#allocation13]
    $region45: #{bilstm_model_forward.1} parent=1 // pred_fallthru
      _
    // Predicated region
    $region46: #{bilstm_model_forward.1} parent=1 // pred_check
      _
    $region47: #{bilstm_model_forward.1} parent=1 // pred_check_branch
      %111 = sbr.rel (0) target = $region49
    $region48: #{bilstm_model_forward.1} parent=1 // pred_region
      _
    $region49: #{bilstm_model_forward.1} parent=1 // pred_fallthru
      _
    // Predicated region
    $region50: #{bilstm_model_forward.1} parent=1 // pred_check
      _
    $region51: #{bilstm_model_forward.1} parent=1 // pred_check_branch
      %113 = sbr.rel (0) target = $region53
    $region52: #{bilstm_model_forward.1} parent=1 // pred_region
      _
    $region53: #{bilstm_model_forward.1} parent=1 // pred_fallthru
      _
    // Predicated region
    $region54: #{bilstm_model_forward.1} parent=1 // pred_check
      _
    $region55: #{bilstm_model_forward.1} parent=1 // pred_check_branch
      %115 = sbr.rel (0) target = $region57
    $region56: #{bilstm_model_forward.1} parent=1 // pred_region
      %116 = dma.done [#allocation5], 1024
    $region57: #{bilstm_model_forward.1} parent=1 // pred_fallthru
      _
    // Predicated region
    $region58: #{bilstm_model_forward.1} parent=1 // pred_check
      _
    $region59: #{bilstm_model_forward.1} parent=1 // pred_check_branch
      %118 = sbr.rel (0) target = $region61
    $region60: #{bilstm_model_forward.1} parent=1 // pred_region
      %119 = dma.done [#allocation7], 1024
    $region61: #{bilstm_model_forward.1} parent=1 // pred_fallthru
      _
    // Predicated region
    $region62: #{bilstm_model_forward.1} parent=1 // pred_check
      _
    $region63: #{bilstm_model_forward.1} parent=1 // pred_check_branch
      %121 = sbr.rel (0) target = $region65
    $region64: #{bilstm_model_forward.1} parent=1 // pred_region
      %122 = dma.done [#allocation7], 1024
    $region65: #{bilstm_model_forward.1} parent=1 // pred_fallthru
      _
    // Predicated region
    $region66: #{bilstm_model_forward.1} parent=1 // pred_check
      _
    $region67: #{bilstm_model_forward.1} parent=1 // pred_check_branch
      %124 = sbr.rel (0) target = $region69
    $region68: #{bilstm_model_forward.1} parent=1 // pred_region
      %125 = dma.done [#allocation10], 1024
    $region69: #{bilstm_model_forward.1} parent=1 // pred_fallthru
      _
    // Predicated region
    $region70: #{bilstm_model_forward.1} parent=1 // pred_check
      _
    $region71: #{bilstm_model_forward.1} parent=1 // pred_check_branch
      %127 = sbr.rel (0) target = $region73
    $region72: #{bilstm_model_forward.1} parent=1 // pred_region
      %128 = dma.done [#allocation10], 16
    $region73: #{bilstm_model_forward.1} parent=1 // pred_fallthru
      _
    // Predicated region
    $region74: #{bilstm_model_forward.1} parent=1 // pred_check
      _
    $region75: #{bilstm_model_forward.1} parent=1 // pred_check_branch
      %130 = sbr.rel (0) target = $region77
    $region76: #{bilstm_model_forward.1} parent=1 // pred_region
      %131 = dma.done [#allocation13], 2048
    $region77: #{bilstm_model_forward.1} parent=1 // pred_fallthru
      _
    // Predicated region
    $region78: #{bilstm_model_forward.1} parent=1 // pred_check
      _
    $region79: #{bilstm_model_forward.1} parent=1 // pred_check_branch
      %133 = sbr.rel (0) target = $region81
    $region80: #{bilstm_model_forward.1} parent=1 // pred_region
      %134 = dma.done [#allocation13], 16
    $region81: #{bilstm_model_forward.1} parent=1 // pred_fallthru
      _
    %v136 = vlaneseq
    %v137 = vand.u32 %v136, 127
    %v138 = vadd.s32 %v137, 128
    %vm139 = vcmp.ge.s32.totalorder %v137, 0
    %vm140 = vcmp.ge.s32.totalorder %v138, 0
    %vm141 = vcmp.lt.s32.totalorder %v137, 32
    %vm142 = vcmp.lt.s32.totalorder %v138, 32
    %vm143 = vmand %vm139, %vm141
    %vm144 = vmand %vm140, %vm142
    %vm145 = vcmp.ge.s32.totalorder %v137, 64
    %vm146 = vcmp.ge.s32.totalorder %v138, 64
    %vm147 = vcmp.lt.s32.totalorder %v137, 96
    %vm148 = vcmp.lt.s32.totalorder %v138, 96
    %vm149 = vmand %vm145, %vm147
    %vm150 = vmand %vm146, %vm148
    %vm151 = vmor %vm143, %vm149
    %vm152 = vmor %vm144, %vm150
    %vm153 = vcmp.ge.s32.totalorder %v137, 128
    %vm154 = vcmp.ge.s32.totalorder %v138, 128
    %vm155 = vcmp.lt.s32.totalorder %v137, 160
    %vm156 = vcmp.lt.s32.totalorder %v138, 160
    %vm157 = vmand %vm153, %vm155
    %vm158 = vmand %vm154, %vm156
    %vm159 = vmor %vm151, %vm157
    %vm160 = vmor %vm152, %vm158
    %vm161 = vcmp.ge.s32.totalorder %v137, 192
    %vm162 = vcmp.ge.s32.totalorder %v138, 192
    %vm163 = vcmp.lt.s32.totalorder %v137, 224
    %vm164 = vcmp.lt.s32.totalorder %v138, 224
    %vm165 = vmand %vm161, %vm163
    %vm166 = vmand %vm162, %vm164
    %vm167 = vmor %vm159, %vm165
    %vm168 = vmor %vm160, %vm166
    %vm169 = vcmp.lt.s32.totalorder %v137, 192
    %vm170 = vcmp.lt.s32.totalorder %v138, 192
    %vm171 = vmand %vm153, %vm169
    %vm172 = vmand %vm154, %vm170
    %v173 = vsel %vm171, 1.0, 0.5
    %v174 = vsel %vm172, 1.0, 0.5
    %v175 = vsel %vm171, 0.0, 0.5
    %v176 = vsel %vm172, 0.0, 0.5
    %v177 = vld [vmem:[%s0] sm:$0xf]
    %v178 = vld [vmem:[%s0 + $0x4] sm:$0xf]
    %v179 = vld [vmem:[%s0 + $0x8] sm:$0xf]
    %v180 = vld [vmem:[%s0 + $0xc] sm:$0xf]
    %v181 = vld [vmem:[%s0 + $0x10] sm:$0xf]
    %v182 = vld [vmem:[%s0 + $0x14] sm:$0xf]
    %v183 = vld [vmem:[%s0 + $0x18] sm:$0xf]
    %v184 = vld [vmem:[%s0 + $0x1c] sm:$0xf]
    %v185 = vld [vmem:[%s1] sm:$0xff]
    %v186 = vld [vmem:[%s1 + $0x8] sm:$0xff]
    %v187 = vld [vmem:[%s3] sm:$0x3]
    %v189 = vlaneseq
    %v190 = vshrl.u32 %v189, 7
    %v191 = vsub.s32 0, %v190
    %v192 = vrot.slane %v187, %v191
    %v193 = vlaneseq
    %v194 = vshrl.u32 %v193, 7
    %v195 = vsub.s32 1, %v194
    %v196 = vrot.slane %v187, %v195
    %v207 = vunpack.c.l.b16 %v177
    %v208 = vunpack.c.l.b16 %v178
    %v209 = vunpack.c.l.b16 %v179
    %v210 = vunpack.c.l.b16 %v180
    %v211 = vunpack.c.l.b16 %v181
    %v212 = vunpack.c.l.b16 %v182
    %v213 = vunpack.c.l.b16 %v183
    %v214 = vunpack.c.l.b16 %v184
    %v215 = vpack.c.b16 %v208, %v207
    %v216 = vpack.c.b16 %v210, %v209
    %v217 = vpack.c.b16 %v212, %v211
    %v218 = vpack.c.b16 %v214, %v213
    %v221 = vunpack.c.l.b16 %v185
    %v222 = vunpack.c.h.b16 %v185
    %v223 = vunpack.c.l.b16 %v186
    %v224 = vunpack.c.h.b16 %v186
    %v225 = vpack.c.b16 %v223, %v221
    %v226 = vpack.c.b16 %v224, %v222
    %vm229 = vcmask 130048
    %v231 = vsel %vm229, %v215, 0
    %v234 = vsel %vm229, %v216, 0
    %v237 = vsel %vm229, %v217, 0
    %v240 = vsel %vm229, %v218, 0
    %242 = vmatprep.subr.bf16.mxu0 0
    %243 = vmatpush1.bf16.msra.mxu0 0
    %244 = vmatprep.subr.bf16.mxu0 0
    %245 = vmatpush1.bf16.msra.mxu0 0
    %246 = vmatprep.subr.bf16.mxu0 0
    %247 = vmatpush1.bf16.msra.mxu0 0
    %248 = vmatprep.subr.bf16.mxu0 0
    %249 = vmatpush1.bf16.msra.mxu0 0
    %250 = vmatprep.subr.bf16.mxu0 0
    %251 = vmatpush1.bf16.msra.mxu0 0
    %252 = vmatprep.subr.bf16.mxu0 0
    %253 = vmatpush1.bf16.msra.mxu0 0
    %254 = vmatprep.subr.bf16.mxu0 0
    %255 = vmatpush1.bf16.msra.mxu0 0
    %256 = vmatprep.subr.bf16.mxu0 %v226
    %257 = vmatpush1.bf16.msra.mxu0 %v225
    %258 = vmatprep.subr.bf16.mxu0 0
    %259 = vmatpush2.bf16.msra.mxu0 0
    %260 = vmatprep.subr.bf16.mxu0 0
    %261 = vmatpush2.bf16.msra.mxu0 0
    %262 = vmatprep.subr.bf16.mxu0 0
    %263 = vmatpush2.bf16.msra.mxu0 0
    %264 = vmatprep.subr.bf16.mxu0 0
    %265 = vmatpush2.bf16.msra.mxu0 0
    %266 = vmatprep.subr.bf16.mxu0 0
    %267 = vmatpush2.bf16.msra.mxu0 0
    %268 = vmatprep.subr.bf16.mxu0 0
    %269 = vmatpush2.bf16.msra.mxu0 0
    %270 = vmatprep.subr.bf16.mxu0 0
    %271 = vmatpush2.bf16.msra.mxu0 0
    %272 = vmatprep.subr.bf16.mxu0 0
    %273 = vmatpush2.bf16.msra.mxu0 0
    %274 = vmatprep.mubr.bf16.mxu0 0
    %275 = vmatmul.mubr.bf16.gmra.mxu0 %v231
    %v276 = vpop.f32.mrf.mxu0
    %v277 = vadd.f32 %v192, %v276
    %v278 = vpop.f32.mrf.mxu0
    %v279 = vadd.f32 %v196, %v278
    %v280 = vpop.f32.mrf.mxu0
    %v281 = vadd.f32 %v192, %v280
    %v282 = vpop.f32.mrf.mxu0
    %v283 = vadd.f32 %v196, %v282
    %284 = vmatprep.mubr.bf16.mxu0 0
    %285 = vmatmul.mubr.bf16.gmra.mxu0 %v234
    %v286 = vpop.f32.mrf.mxu0
    %v287 = vadd.f32 %v192, %v286
    %v288 = vpop.f32.mrf.mxu0
    %v289 = vadd.f32 %v196, %v288
    %v290 = vpop.f32.mrf.mxu0
    %v291 = vadd.f32 %v192, %v290
    %v292 = vpop.f32.mrf.mxu0
    %v293 = vadd.f32 %v196, %v292
    %294 = vmatprep.mubr.bf16.mxu0 0
    %295 = vmatmul.mubr.bf16.gmra.mxu0 %v237
    %v296 = vpop.f32.mrf.mxu0
    %v297 = vadd.f32 %v192, %v296
    %v298 = vpop.f32.mrf.mxu0
    %v299 = vadd.f32 %v196, %v298
    %v300 = vpop.f32.mrf.mxu0
    %v301 = vadd.f32 %v192, %v300
    %v302 = vpop.f32.mrf.mxu0
    %v303 = vadd.f32 %v196, %v302
    %304 = vmatprep.mubr.bf16.mxu0 0
    %305 = vmatmul.mubr.bf16.gmra.mxu0 %v240
    %v306 = vpop.f32.mrf.mxu0
    %v307 = vadd.f32 %v192, %v306
    %v308 = vpop.f32.mrf.mxu0
    %v309 = vadd.f32 %v196, %v308
    %v310 = vpop.f32.mrf.mxu0
    %v311 = vadd.f32 %v192, %v310
    %v312 = vpop.f32.mrf.mxu0
    %v313 = vadd.f32 %v196, %v312
    %314 = vdwg.mxu0
    %315 = vst [vmem:[#allocation2] sm:$0xff] %v277
    %316 = vst [vmem:[#allocation2 + $0x8] sm:$0xff] %v279
    %317 = vst [vmem:[#allocation2 + $0x10] sm:$0xff] %v281
    %318 = vst [vmem:[#allocation2 + $0x18] sm:$0xff] %v283
    %319 = vst [vmem:[#allocation2 + $0x20] sm:$0xff] %v287
    %320 = vst [vmem:[#allocation2 + $0x28] sm:$0xff] %v289
    %321 = vst [vmem:[#allocation2 + $0x30] sm:$0xff] %v291
    %322 = vst [vmem:[#allocation2 + $0x38] sm:$0xff] %v293
    %323 = vst [vmem:[#allocation2 + $0x40] sm:$0xff] %v297
    %324 = vst [vmem:[#allocation2 + $0x48] sm:$0xff] %v299
    %325 = vst [vmem:[#allocation2 + $0x50] sm:$0xff] %v301
    %326 = vst [vmem:[#allocation2 + $0x58] sm:$0xff] %v303
    %327 = vst [vmem:[#allocation2 + $0x60] sm:$0xff] %v307
    %328 = vst [vmem:[#allocation2 + $0x68] sm:$0xff] %v309
    %329 = vst [vmem:[#allocation2 + $0x70] sm:$0xff] %v311
    %330 = vst [vmem:[#allocation2 + $0x78] sm:$0xff] %v313
    %v331 = vld [vmem:[#allocation4] sm:$0xff]
    %v332 = vld [vmem:[#allocation4 + $0x8] sm:$0xff]
    %v333 = vld [vmem:[#allocation4 + $0x10] sm:$0xff]
    %v334 = vld [vmem:[#allocation4 + $0x18] sm:$0xff]
    %v335 = vld [vmem:[#allocation4 + $0x20] sm:$0xff]
    %v336 = vld [vmem:[#allocation4 + $0x28] sm:$0xff]
    %v337 = vld [vmem:[#allocation4 + $0x30] sm:$0xff]
    %v338 = vld [vmem:[#allocation4 + $0x38] sm:$0xff]
    %v339 = vld [vmem:[#allocation2] sm:$0xff]
    %v340 = vld [vmem:[#allocation2 + $0x8] sm:$0xff]
    %v341 = vld [vmem:[#allocation2 + $0x70] sm:$0xff]
    %v342 = vld [vmem:[#allocation2 + $0x78] sm:$0xff]
    %v343 = vsel %vm167, %v339, %v341
    %v344 = vsel %vm168, %v340, %v342
    %v353 = vunpack.c.l.b16 %v331
    %v354 = vunpack.c.h.b16 %v331
    %v355 = vunpack.c.l.b16 %v332
    %v356 = vunpack.c.h.b16 %v332
    %v357 = vunpack.c.l.b16 %v333
    %v358 = vunpack.c.h.b16 %v333
    %v359 = vunpack.c.l.b16 %v334
    %v360 = vunpack.c.h.b16 %v334
    %v361 = vunpack.c.l.b16 %v335
    %v362 = vunpack.c.h.b16 %v335
    %v363 = vunpack.c.l.b16 %v336
    %v364 = vunpack.c.h.b16 %v336
    %v365 = vunpack.c.l.b16 %v337
    %v366 = vunpack.c.h.b16 %v337
    %v367 = vunpack.c.l.b16 %v338
    %v368 = vunpack.c.h.b16 %v338
    %v369 = vpack.c.b16 %v355, %v353
    %v370 = vpack.c.b16 %v356, %v354
    %v371 = vpack.c.b16 %v359, %v357
    %v372 = vpack.c.b16 %v360, %v358
    %v373 = vpack.c.b16 %v363, %v361
    %v374 = vpack.c.b16 %v364, %v362
    %v375 = vpack.c.b16 %v367, %v365
    %v376 = vpack.c.b16 %v368, %v366
    %vm385 = vcmask 523264
    %v387 = vsel %vm385, 0, 0
    %389 = vmatprep.subr.bf16.mxu0 0
    %390 = vmatpush1.bf16.msra.mxu0 0
    %391 = vmatprep.subr.bf16.mxu0 0
    %392 = vmatpush1.bf16.msra.mxu0 0
    %393 = vmatprep.subr.bf16.mxu0 0
    %394 = vmatpush1.bf16.msra.mxu0 0
    %395 = vmatprep.subr.bf16.mxu0 0
    %396 = vmatpush1.bf16.msra.mxu0 0
    %397 = vmatprep.subr.bf16.mxu0 %v376
    %398 = vmatpush1.bf16.msra.mxu0 %v375
    %399 = vmatprep.subr.bf16.mxu0 %v374
    %400 = vmatpush1.bf16.msra.mxu0 %v373
    %401 = vmatprep.subr.bf16.mxu0 %v372
    %402 = vmatpush1.bf16.msra.mxu0 %v371
    %403 = vmatprep.subr.bf16.mxu0 %v370
    %404 = vmatpush1.bf16.msra.mxu0 %v369
    %405 = vmatprep.subr.bf16.mxu0 0
    %406 = vmatpush2.bf16.msra.mxu0 0
    %407 = vmatprep.subr.bf16.mxu0 0
    %408 = vmatpush2.bf16.msra.mxu0 0
    %409 = vmatprep.subr.bf16.mxu0 0
    %410 = vmatpush2.bf16.msra.mxu0 0
    %411 = vmatprep.subr.bf16.mxu0 0
    %412 = vmatpush2.bf16.msra.mxu0 0
    %413 = vmatprep.subr.bf16.mxu0 0
    %414 = vmatpush2.bf16.msra.mxu0 0
    %415 = vmatprep.subr.bf16.mxu0 0
    %416 = vmatpush2.bf16.msra.mxu0 0
    %417 = vmatprep.subr.bf16.mxu0 0
    %418 = vmatpush2.bf16.msra.mxu0 0
    %419 = vmatprep.subr.bf16.mxu0 0
    %420 = vmatpush2.bf16.msra.mxu0 0
    %421 = vmatprep.mubr.bf16.mxu0 0
    %422 = vmatmul.mubr.bf16.gmra.mxu0 %v387
    %v423 = vpop.f32.mrf.mxu0
    %v424 = vadd.f32 0.0, %v423
    %v425 = vpop.f32.mrf.mxu0
    %v426 = vadd.f32 0.0, %v425
    %v427 = vpop.f32.mrf.mxu0
    %v428 = vpop.f32.mrf.mxu0
    %429 = vdwg.mxu0
    %v430 = vadd.f32 %v343, %v424
    %v431 = vadd.f32 %v344, %v426
    %v432 = vmul.f32 %v430, %v173
    %v433 = vmul.f32 %v431, %v174
    %v434 = vtanh.pop %v432
    %v435 = vtanh.pop %v433
    %v436 = vmul.f32 %v434, %v173
    %v437 = vmul.f32 %v435, %v174
    %v438 = vadd.f32 %v436, %v175
    %v439 = vadd.f32 %v437, %v176
    %v440 = vmul.f32 %v438, 0.0
    %v441 = vmul.f32 %v438, %v439
    %443 = vrot.lane.b32.xlu0 %v441, 64
    %v444 = vpop.permute.xlu0 %443
    %v446 = vadd.f32 %v440, %v444
    %v447 = vtanh.pop %v446
    %v448 = vmul.f32 %v439, %v447
    %v449 = vpack.c.bf16 %v448, %v448
    %v451 = vunpack.c.l.b16 %v449
    %v452 = vpack.c.b16 %v451, %v451
    %453 = vrot.lane.b32.xlu0 %v452, 64
    %v454 = vpop.permute.xlu0 %453
    %vm456 = vcmask 257024
    %457 = vst.msk [vmem:[#allocation3] sm:$0xf] %vm456, %v454
    %vm458 = vcmask 519424
    %459 = vst.msk [vmem:[#allocation3 + $0x1c] sm:$0xf] %vm458, %v454
    %v460 = vld [vmem:[#allocation2 + $0x10] sm:$0xff]
    %v461 = vld [vmem:[#allocation2 + $0x18] sm:$0xff]
    %v462 = vld [vmem:[#allocation2 + $0x60] sm:$0xff]
    %v463 = vld [vmem:[#allocation2 + $0x68] sm:$0xff]
    %v464 = vsel %vm167, %v460, %v462
    %v465 = vsel %vm168, %v461, %v463
    %466 = vrot.lane.b32.xlu0 %v449, 64
    %v467 = vpop.permute.xlu0 %466
    %v469 = vsel %vm385, %v467, 0
    %471 = vmatprep.subr.bf16.mxu0 0
    %472 = vmatpush1.bf16.msra.mxu0 0
    %473 = vmatprep.subr.bf16.mxu0 0
    %474 = vmatpush1.bf16.msra.mxu0 0
    %475 = vmatprep.subr.bf16.mxu0 0
    %476 = vmatpush1.bf16.msra.mxu0 0
    %477 = vmatprep.subr.bf16.mxu0 0
    %478 = vmatpush1.bf16.msra.mxu0 0
    %479 = vmatprep.subr.bf16.mxu0 %v376
    %480 = vmatpush1.bf16.msra.mxu0 %v375
    %481 = vmatprep.subr.bf16.mxu0 %v374
    %482 = vmatpush1.bf16.msra.mxu0 %v373
    %483 = vmatprep.subr.bf16.mxu0 %v372
    %484 = vmatpush1.bf16.msra.mxu0 %v371
    %485 = vmatprep.subr.bf16.mxu0 %v370
    %486 = vmatpush1.bf16.msra.mxu0 %v369
    %487 = vmatprep.subr.bf16.mxu0 0
    %488 = vmatpush2.bf16.msra.mxu0 0
    %489 = vmatprep.subr.bf16.mxu0 0
    %490 = vmatpush2.bf16.msra.mxu0 0
    %491 = vmatprep.subr.bf16.mxu0 0
    %492 = vmatpush2.bf16.msra.mxu0 0
    %493 = vmatprep.subr.bf16.mxu0 0
    %494 = vmatpush2.bf16.msra.mxu0 0
    %495 = vmatprep.subr.bf16.mxu0 0
    %496 = vmatpush2.bf16.msra.mxu0 0
    %497 = vmatprep.subr.bf16.mxu0 0
    %498 = vmatpush2.bf16.msra.mxu0 0
    %499 = vmatprep.subr.bf16.mxu0 0
    %500 = vmatpush2.bf16.msra.mxu0 0
    %501 = vmatprep.subr.bf16.mxu0 0
    %502 = vmatpush2.bf16.msra.mxu0 0
    %503 = vmatprep.mubr.bf16.mxu0 0
    %504 = vmatmul.mubr.bf16.gmra.mxu0 %v469
    %v505 = vpop.f32.mrf.mxu0
    %v506 = vadd.f32 0.0, %v505
    %v507 = vpop.f32.mrf.mxu0
    %v508 = vadd.f32 0.0, %v507
    %v509 = vpop.f32.mrf.mxu0
    %v510 = vpop.f32.mrf.mxu0
    %511 = vdwg.mxu0
    %v512 = vadd.f32 %v464, %v506
    %v513 = vadd.f32 %v465, %v508
    %v514 = vmul.f32 %v512, %v173
    %v515 = vmul.f32 %v513, %v174
    %v516 = vtanh.pop %v514
    %v517 = vtanh.pop %v515
    %v518 = vmul.f32 %v516, %v173
    %v519 = vmul.f32 %v517, %v174
    %v520 = vadd.f32 %v518, %v175
    %v521 = vadd.f32 %v519, %v176
    %v522 = vmul.f32 %v520, %v446
    %v523 = vmul.f32 %v520, %v521
    %525 = vrot.lane.b32.xlu0 %v523, 64
    %v526 = vpop.permute.xlu0 %525
    %v528 = vadd.f32 %v522, %v526
    %v529 = vtanh.pop %v528
    %v530 = vmul.f32 %v521, %v529
    %v531 = vpack.c.bf16 %v530, %v530
    %v533 = vunpack.c.l.b16 %v531
    %v534 = vpack.c.b16 %v533, %v533
    %535 = vrot.lane.b32.xlu0 %v534, 64
    %v536 = vpop.permute.xlu0 %535
    %538 = vst.msk [vmem:[#allocation3 + $0x4] sm:$0xf] %vm456, %v536
    %539 = vst.msk [vmem:[#allocation3 + $0x18] sm:$0xf] %vm458, %v536
    %v540 = vld [vmem:[#allocation2 + $0x20] sm:$0xff]
    %v541 = vld [vmem:[#allocation2 + $0x28] sm:$0xff]
    %v542 = vld [vmem:[#allocation2 + $0x50] sm:$0xff]
    %v543 = vld [vmem:[#allocation2 + $0x58] sm:$0xff]
    %v544 = vsel %vm167, %v540, %v542
    %v545 = vsel %vm168, %v541, %v543
    %546 = vrot.lane.b32.xlu0 %v531, 64
    %v547 = vpop.permute.xlu0 %546
    %v549 = vsel %vm385, %v547, 0
    %551 = vmatprep.subr.bf16.mxu0 0
    %552 = vmatpush1.bf16.msra.mxu0 0
    %553 = vmatprep.subr.bf16.mxu0 0
    %554 = vmatpush1.bf16.msra.mxu0 0
    %555 = vmatprep.subr.bf16.mxu0 0
    %556 = vmatpush1.bf16.msra.mxu0 0
    %557 = vmatprep.subr.bf16.mxu0 0
    %558 = vmatpush1.bf16.msra.mxu0 0
    %559 = vmatprep.subr.bf16.mxu0 %v376
    %560 = vmatpush1.bf16.msra.mxu0 %v375
    %561 = vmatprep.subr.bf16.mxu0 %v374
    %562 = vmatpush1.bf16.msra.mxu0 %v373
    %563 = vmatprep.subr.bf16.mxu0 %v372
    %564 = vmatpush1.bf16.msra.mxu0 %v371
    %565 = vmatprep.subr.bf16.mxu0 %v370
    %566 = vmatpush1.bf16.msra.mxu0 %v369
    %567 = vmatprep.subr.bf16.mxu0 0
    %568 = vmatpush2.bf16.msra.mxu0 0
    %569 = vmatprep.subr.bf16.mxu0 0
    %570 = vmatpush2.bf16.msra.mxu0 0
    %571 = vmatprep.subr.bf16.mxu0 0
    %572 = vmatpush2.bf16.msra.mxu0 0
    %573 = vmatprep.subr.bf16.mxu0 0
    %574 = vmatpush2.bf16.msra.mxu0 0
    %575 = vmatprep.subr.bf16.mxu0 0
    %576 = vmatpush2.bf16.msra.mxu0 0
    %577 = vmatprep.subr.bf16.mxu0 0
    %578 = vmatpush2.bf16.msra.mxu0 0
    %579 = vmatprep.subr.bf16.mxu0 0
    %580 = vmatpush2.bf16.msra.mxu0 0
    %581 = vmatprep.subr.bf16.mxu0 0
    %582 = vmatpush2.bf16.msra.mxu0 0
    %583 = vmatprep.mubr.bf16.mxu0 0
    %584 = vmatmul.mubr.bf16.gmra.mxu0 %v549
    %v585 = vpop.f32.mrf.mxu0
    %v586 = vadd.f32 0.0, %v585
    %v587 = vpop.f32.mrf.mxu0
    %v588 = vadd.f32 0.0, %v587
    %v589 = vpop.f32.mrf.mxu0
    %v590 = vpop.f32.mrf.mxu0
    %591 = vdwg.mxu0
    %v592 = vadd.f32 %v544, %v586
    %v593 = vadd.f32 %v545, %v588
    %v594 = vmul.f32 %v592, %v173
    %v595 = vmul.f32 %v593, %v174
    %v596 = vtanh.pop %v594
    %v597 = vtanh.pop %v595
    %v598 = vmul.f32 %v596, %v173
    %v599 = vmul.f32 %v597, %v174
    %v600 = vadd.f32 %v598, %v175
    %v601 = vadd.f32 %v599, %v176
    %v602 = vmul.f32 %v600, %v528
    %v603 = vmul.f32 %v600, %v601
    %605 = vrot.lane.b32.xlu0 %v603, 64
    %v606 = vpop.permute.xlu0 %605
    %v608 = vadd.f32 %v602, %v606
    %v609 = vtanh.pop %v608
    %v610 = vmul.f32 %v601, %v609
    %v611 = vpack.c.bf16 %v610, %v610
    %v613 = vunpack.c.l.b16 %v611
    %v614 = vpack.c.b16 %v613, %v613
    %615 = vrot.lane.b32.xlu0 %v614, 64
    %v616 = vpop.permute.xlu0 %615
    %618 = vst.msk [vmem:[#allocation3 + $0x8] sm:$0xf] %vm456, %v616
    %619 = vst.msk [vmem:[#allocation3 + $0x14] sm:$0xf] %vm458, %v616
    %v620 = vld [vmem:[#allocation2 + $0x30] sm:$0xff]
    %v621 = vld [vmem:[#allocation2 + $0x38] sm:$0xff]
    %v622 = vld [vmem:[#allocation2 + $0x40] sm:$0xff]
    %v623 = vld [vmem:[#allocation2 + $0x48] sm:$0xff]
    %v624 = vsel %vm167, %v620, %v622
    %v625 = vsel %vm168, %v621, %v623
    %626 = vrot.lane.b32.xlu0 %v611, 64
    %v627 = vpop.permute.xlu0 %626
    %v629 = vsel %vm385, %v627, 0
    %631 = vmatprep.subr.bf16.mxu0 0
    %632 = vmatpush1.bf16.msra.mxu0 0
    %633 = vmatprep.subr.bf16.mxu0 0
    %634 = vmatpush1.bf16.msra.mxu0 0
    %635 = vmatprep.subr.bf16.mxu0 0
    %636 = vmatpush1.bf16.msra.mxu0 0
    %637 = vmatprep.subr.bf16.mxu0 0
    %638 = vmatpush1.bf16.msra.mxu0 0
    %639 = vmatprep.subr.bf16.mxu0 %v376
    %640 = vmatpush1.bf16.msra.mxu0 %v375
    %641 = vmatprep.subr.bf16.mxu0 %v374
    %642 = vmatpush1.bf16.msra.mxu0 %v373
    %643 = vmatprep.subr.bf16.mxu0 %v372
    %644 = vmatpush1.bf16.msra.mxu0 %v371
    %645 = vmatprep.subr.bf16.mxu0 %v370
    %646 = vmatpush1.bf16.msra.mxu0 %v369
    %647 = vmatprep.subr.bf16.mxu0 0
    %648 = vmatpush2.bf16.msra.mxu0 0
    %649 = vmatprep.subr.bf16.mxu0 0
    %650 = vmatpush2.bf16.msra.mxu0 0
    %651 = vmatprep.subr.bf16.mxu0 0
    %652 = vmatpush2.bf16.msra.mxu0 0
    %653 = vmatprep.subr.bf16.mxu0 0
    %654 = vmatpush2.bf16.msra.mxu0 0
    %655 = vmatprep.subr.bf16.mxu0 0
    %656 = vmatpush2.bf16.msra.mxu0 0
    %657 = vmatprep.subr.bf16.mxu0 0
    %658 = vmatpush2.bf16.msra.mxu0 0
    %659 = vmatprep.subr.bf16.mxu0 0
    %660 = vmatpush2.bf16.msra.mxu0 0
    %661 = vmatprep.subr.bf16.mxu0 0
    %662 = vmatpush2.bf16.msra.mxu0 0
    %663 = vmatprep.mubr.bf16.mxu0 0
    %664 = vmatmul.mubr.bf16.gmra.mxu0 %v629
    %v665 = vpop.f32.mrf.mxu0
    %v666 = vadd.f32 0.0, %v665
    %v667 = vpop.f32.mrf.mxu0
    %v668 = vadd.f32 0.0, %v667
    %v669 = vpop.f32.mrf.mxu0
    %v670 = vpop.f32.mrf.mxu0
    %671 = vdwg.mxu0
    %v672 = vadd.f32 %v624, %v666
    %v673 = vadd.f32 %v625, %v668
    %v674 = vmul.f32 %v672, %v173
    %v675 = vmul.f32 %v673, %v174
    %v676 = vtanh.pop %v674
    %v677 = vtanh.pop %v675
    %v678 = vmul.f32 %v676, %v173
    %v679 = vmul.f32 %v677, %v174
    %v680 = vadd.f32 %v678, %v175
    %v681 = vadd.f32 %v679, %v176
    %v682 = vmul.f32 %v680, %v608
    %v683 = vmul.f32 %v680, %v681
    %685 = vrot.lane.b32.xlu0 %v683, 64
    %v686 = vpop.permute.xlu0 %685
    %v688 = vadd.f32 %v682, %v686
    %v689 = vtanh.pop %v688
    %v690 = vmul.f32 %v681, %v689
    %v691 = vpack.c.bf16 %v690, %v690
    %v693 = vunpack.c.l.b16 %v691
    %v694 = vpack.c.b16 %v693, %v693
    %695 = vrot.lane.b32.xlu0 %v694, 64
    %v696 = vpop.permute.xlu0 %695
    %698 = vst.msk [vmem:[#allocation3 + $0xc] sm:$0xf] %vm456, %v696
    %699 = vst.msk [vmem:[#allocation3 + $0x10] sm:$0xf] %vm458, %v696
    %v700 = vld [vmem:[#allocation2 + $0x40] sm:$0xff]
    %v701 = vld [vmem:[#allocation2 + $0x48] sm:$0xff]
    %v702 = vld [vmem:[#allocation2 + $0x30] sm:$0xff]
    %v703 = vld [vmem:[#allocation2 + $0x38] sm:$0xff]
    %v704 = vsel %vm167, %v700, %v702
    %v705 = vsel %vm168, %v701, %v703
    %706 = vrot.lane.b32.xlu0 %v691, 64
    %v707 = vpop.permute.xlu0 %706
    %v709 = vsel %vm385, %v707, 0
    %711 = vmatprep.subr.bf16.mxu0 0
    %712 = vmatpush1.bf16.msra.mxu0 0
    %713 = vmatprep.subr.bf16.mxu0 0
    %714 = vmatpush1.bf16.msra.mxu0 0
    %715 = vmatprep.subr.bf16.mxu0 0
    %716 = vmatpush1.bf16.msra.mxu0 0
    %717 = vmatprep.subr.bf16.mxu0 0
    %718 = vmatpush1.bf16.msra.mxu0 0
    %719 = vmatprep.subr.bf16.mxu0 %v376
    %720 = vmatpush1.bf16.msra.mxu0 %v375
    %721 = vmatprep.subr.bf16.mxu0 %v374
    %722 = vmatpush1.bf16.msra.mxu0 %v373
    %723 = vmatprep.subr.bf16.mxu0 %v372
    %724 = vmatpush1.bf16.msra.mxu0 %v371
    %725 = vmatprep.subr.bf16.mxu0 %v370
    %726 = vmatpush1.bf16.msra.mxu0 %v369
    %727 = vmatprep.subr.bf16.mxu0 0
    %728 = vmatpush2.bf16.msra.mxu0 0
    %729 = vmatprep.subr.bf16.mxu0 0
    %730 = vmatpush2.bf16.msra.mxu0 0
    %731 = vmatprep.subr.bf16.mxu0 0
    %732 = vmatpush2.bf16.msra.mxu0 0
    %733 = vmatprep.subr.bf16.mxu0 0
    %734 = vmatpush2.bf16.msra.mxu0 0
    %735 = vmatprep.subr.bf16.mxu0 0
    %736 = vmatpush2.bf16.msra.mxu0 0
    %737 = vmatprep.subr.bf16.mxu0 0
    %738 = vmatpush2.bf16.msra.mxu0 0
    %739 = vmatprep.subr.bf16.mxu0 0
    %740 = vmatpush2.bf16.msra.mxu0 0
    %741 = vmatprep.subr.bf16.mxu0 0
    %742 = vmatpush2.bf16.msra.mxu0 0
    %743 = vmatprep.mubr.bf16.mxu0 0
    %744 = vmatmul.mubr.bf16.gmra.mxu0 %v709
    %v745 = vpop.f32.mrf.mxu0
    %v746 = vadd.f32 0.0, %v745
    %v747 = vpop.f32.mrf.mxu0
    %v748 = vadd.f32 0.0, %v747
    %v749 = vpop.f32.mrf.mxu0
    %v750 = vpop.f32.mrf.mxu0
    %751 = vdwg.mxu0
    %v752 = vadd.f32 %v704, %v746
    %v753 = vadd.f32 %v705, %v748
    %v754 = vmul.f32 %v752, %v173
    %v755 = vmul.f32 %v753, %v174
    %v756 = vtanh.pop %v754
    %v757 = vtanh.pop %v755
    %v758 = vmul.f32 %v756, %v173
    %v759 = vmul.f32 %v757, %v174
    %v760 = vadd.f32 %v758, %v175
    %v761 = vadd.f32 %v759, %v176
    %v762 = vmul.f32 %v760, %v688
    %v763 = vmul.f32 %v760, %v761
    %765 = vrot.lane.b32.xlu0 %v763, 64
    %v766 = vpop.permute.xlu0 %765
    %v768 = vadd.f32 %v762, %v766
    %v769 = vtanh.pop %v768
    %v770 = vmul.f32 %v761, %v769
    %v771 = vpack.c.bf16 %v770, %v770
    %v773 = vunpack.c.l.b16 %v771
    %v774 = vpack.c.b16 %v773, %v773
    %775 = vrot.lane.b32.xlu0 %v774, 64
    %v776 = vpop.permute.xlu0 %775
    %778 = vst.msk [vmem:[#allocation3 + $0x10] sm:$0xf] %vm456, %v776
    %779 = vst.msk [vmem:[#allocation3 + $0xc] sm:$0xf] %vm458, %v776
    %v780 = vld [vmem:[#allocation2 + $0x50] sm:$0xff]
    %v781 = vld [vmem:[#allocation2 + $0x58] sm:$0xff]
    %v782 = vld [vmem:[#allocation2 + $0x20] sm:$0xff]
    %v783 = vld [vmem:[#allocation2 + $0x28] sm:$0xff]
    %v784 = vsel %vm167, %v780, %v782
    %v785 = vsel %vm168, %v781, %v783
    %786 = vrot.lane.b32.xlu0 %v771, 64
    %v787 = vpop.permute.xlu0 %786
    %v789 = vsel %vm385, %v787, 0
    %791 = vmatprep.subr.bf16.mxu0 0
    %792 = vmatpush1.bf16.msra.mxu0 0
    %793 = vmatprep.subr.bf16.mxu0 0
    %794 = vmatpush1.bf16.msra.mxu0 0
    %795 = vmatprep.subr.bf16.mxu0 0
    %796 = vmatpush1.bf16.msra.mxu0 0
    %797 = vmatprep.subr.bf16.mxu0 0
    %798 = vmatpush1.bf16.msra.mxu0 0
    %799 = vmatprep.subr.bf16.mxu0 %v376
    %800 = vmatpush1.bf16.msra.mxu0 %v375
    %801 = vmatprep.subr.bf16.mxu0 %v374
    %802 = vmatpush1.bf16.msra.mxu0 %v373
    %803 = vmatprep.subr.bf16.mxu0 %v372
    %804 = vmatpush1.bf16.msra.mxu0 %v371
    %805 = vmatprep.subr.bf16.mxu0 %v370
    %806 = vmatpush1.bf16.msra.mxu0 %v369
    %807 = vmatprep.subr.bf16.mxu0 0
    %808 = vmatpush2.bf16.msra.mxu0 0
    %809 = vmatprep.subr.bf16.mxu0 0
    %810 = vmatpush2.bf16.msra.mxu0 0
    %811 = vmatprep.subr.bf16.mxu0 0
    %812 = vmatpush2.bf16.msra.mxu0 0
    %813 = vmatprep.subr.bf16.mxu0 0
    %814 = vmatpush2.bf16.msra.mxu0 0
    %815 = vmatprep.subr.bf16.mxu0 0
    %816 = vmatpush2.bf16.msra.mxu0 0
    %817 = vmatprep.subr.bf16.mxu0 0
    %818 = vmatpush2.bf16.msra.mxu0 0
    %819 = vmatprep.subr.bf16.mxu0 0
    %820 = vmatpush2.bf16.msra.mxu0 0
    %821 = vmatprep.subr.bf16.mxu0 0
    %822 = vmatpush2.bf16.msra.mxu0 0
    %823 = vmatprep.mubr.bf16.mxu0 0
    %824 = vmatmul.mubr.bf16.gmra.mxu0 %v789
    %v825 = vpop.f32.mrf.mxu0
    %v826 = vadd.f32 0.0, %v825
    %v827 = vpop.f32.mrf.mxu0
    %v828 = vadd.f32 0.0, %v827
    %v829 = vpop.f32.mrf.mxu0
    %v830 = vpop.f32.mrf.mxu0
    %831 = vdwg.mxu0
    %v832 = vadd.f32 %v784, %v826
    %v833 = vadd.f32 %v785, %v828
    %v834 = vmul.f32 %v832, %v173
    %v835 = vmul.f32 %v833, %v174
    %v836 = vtanh.pop %v834
    %v837 = vtanh.pop %v835
    %v838 = vmul.f32 %v836, %v173
    %v839 = vmul.f32 %v837, %v174
    %v840 = vadd.f32 %v838, %v175
    %v841 = vadd.f32 %v839, %v176
    %v842 = vmul.f32 %v840, %v768
    %v843 = vmul.f32 %v840, %v841
    %845 = vrot.lane.b32.xlu0 %v843, 64
    %v846 = vpop.permute.xlu0 %845
    %v848 = vadd.f32 %v842, %v846
    %v849 = vtanh.pop %v848
    %v850 = vmul.f32 %v841, %v849
    %v851 = vpack.c.bf16 %v850, %v850
    %v853 = vunpack.c.l.b16 %v851
    %v854 = vpack.c.b16 %v853, %v853
    %855 = vrot.lane.b32.xlu0 %v854, 64
    %v856 = vpop.permute.xlu0 %855
    %858 = vst.msk [vmem:[#allocation3 + $0x14] sm:$0xf] %vm456, %v856
    %859 = vst.msk [vmem:[#allocation3 + $0x8] sm:$0xf] %vm458, %v856
    %v860 = vld [vmem:[#allocation2 + $0x60] sm:$0xff]
    %v861 = vld [vmem:[#allocation2 + $0x68] sm:$0xff]
    %v862 = vld [vmem:[#allocation2 + $0x10] sm:$0xff]
    %v863 = vld [vmem:[#allocation2 + $0x18] sm:$0xff]
    %v864 = vsel %vm167, %v860, %v862
    %v865 = vsel %vm168, %v861, %v863
    %866 = vrot.lane.b32.xlu0 %v851, 64
    %v867 = vpop.permute.xlu0 %866
    %v869 = vsel %vm385, %v867, 0
    %871 = vmatprep.subr.bf16.mxu0 0
    %872 = vmatpush1.bf16.msra.mxu0 0
    %873 = vmatprep.subr.bf16.mxu0 0
    %874 = vmatpush1.bf16.msra.mxu0 0
    %875 = vmatprep.subr.bf16.mxu0 0
    %876 = vmatpush1.bf16.msra.mxu0 0
    %877 = vmatprep.subr.bf16.mxu0 0
    %878 = vmatpush1.bf16.msra.mxu0 0
    %879 = vmatprep.subr.bf16.mxu0 %v376
    %880 = vmatpush1.bf16.msra.mxu0 %v375
    %881 = vmatprep.subr.bf16.mxu0 %v374
    %882 = vmatpush1.bf16.msra.mxu0 %v373
    %883 = vmatprep.subr.bf16.mxu0 %v372
    %884 = vmatpush1.bf16.msra.mxu0 %v371
    %885 = vmatprep.subr.bf16.mxu0 %v370
    %886 = vmatpush1.bf16.msra.mxu0 %v369
    %887 = vmatprep.subr.bf16.mxu0 0
    %888 = vmatpush2.bf16.msra.mxu0 0
    %889 = vmatprep.subr.bf16.mxu0 0
    %890 = vmatpush2.bf16.msra.mxu0 0
    %891 = vmatprep.subr.bf16.mxu0 0
    %892 = vmatpush2.bf16.msra.mxu0 0
    %893 = vmatprep.subr.bf16.mxu0 0
    %894 = vmatpush2.bf16.msra.mxu0 0
    %895 = vmatprep.subr.bf16.mxu0 0
    %896 = vmatpush2.bf16.msra.mxu0 0
    %897 = vmatprep.subr.bf16.mxu0 0
    %898 = vmatpush2.bf16.msra.mxu0 0
    %899 = vmatprep.subr.bf16.mxu0 0
    %900 = vmatpush2.bf16.msra.mxu0 0
    %901 = vmatprep.subr.bf16.mxu0 0
    %902 = vmatpush2.bf16.msra.mxu0 0
    %903 = vmatprep.mubr.bf16.mxu0 0
    %904 = vmatmul.mubr.bf16.gmra.mxu0 %v869
    %v905 = vpop.f32.mrf.mxu0
    %v906 = vadd.f32 0.0, %v905
    %v907 = vpop.f32.mrf.mxu0
    %v908 = vadd.f32 0.0, %v907
    %v909 = vpop.f32.mrf.mxu0
    %v910 = vpop.f32.mrf.mxu0
    %911 = vdwg.mxu0
    %v912 = vadd.f32 %v864, %v906
    %v913 = vadd.f32 %v865, %v908
    %v914 = vmul.f32 %v912, %v173
    %v915 = vmul.f32 %v913, %v174
    %v916 = vtanh.pop %v914
    %v917 = vtanh.pop %v915
    %v918 = vmul.f32 %v916, %v173
    %v919 = vmul.f32 %v917, %v174
    %v920 = vadd.f32 %v918, %v175
    %v921 = vadd.f32 %v919, %v176
    %v922 = vmul.f32 %v920, %v848
    %v923 = vmul.f32 %v920, %v921
    %925 = vrot.lane.b32.xlu0 %v923, 64
    %v926 = vpop.permute.xlu0 %925
    %v928 = vadd.f32 %v922, %v926
    %v929 = vtanh.pop %v928
    %v930 = vmul.f32 %v921, %v929
    %v931 = vpack.c.bf16 %v930, %v930
    %v933 = vunpack.c.l.b16 %v931
    %v934 = vpack.c.b16 %v933, %v933
    %935 = vrot.lane.b32.xlu0 %v934, 64
    %v936 = vpop.permute.xlu0 %935
    %938 = vst.msk [vmem:[#allocation3 + $0x18] sm:$0xf] %vm456, %v936
    %939 = vst.msk [vmem:[#allocation3 + $0x4] sm:$0xf] %vm458, %v936
    %v940 = vld [vmem:[#allocation2 + $0x70] sm:$0xff]
    %v941 = vld [vmem:[#allocation2 + $0x78] sm:$0xff]
    %v942 = vld [vmem:[#allocation2] sm:$0xff]
    %v943 = vld [vmem:[#allocation2 + $0x8] sm:$0xff]
    %v944 = vsel %vm167, %v940, %v942
    %v945 = vsel %vm168, %v941, %v943
    %946 = vrot.lane.b32.xlu0 %v931, 64
    %v947 = vpop.permute.xlu0 %946
    %v949 = vsel %vm385, %v947, 0
    %951 = vmatprep.subr.bf16.mxu0 0
    %952 = vmatpush1.bf16.msra.mxu0 0
    %953 = vmatprep.subr.bf16.mxu0 0
    %954 = vmatpush1.bf16.msra.mxu0 0
    %955 = vmatprep.subr.bf16.mxu0 0
    %956 = vmatpush1.bf16.msra.mxu0 0
    %957 = vmatprep.subr.bf16.mxu0 0
    %958 = vmatpush1.bf16.msra.mxu0 0
    %959 = vmatprep.subr.bf16.mxu0 %v376
    %960 = vmatpush1.bf16.msra.mxu0 %v375
    %961 = vmatprep.subr.bf16.mxu0 %v374
    %962 = vmatpush1.bf16.msra.mxu0 %v373
    %963 = vmatprep.subr.bf16.mxu0 %v372
    %964 = vmatpush1.bf16.msra.mxu0 %v371
    %965 = vmatprep.subr.bf16.mxu0 %v370
    %966 = vmatpush1.bf16.msra.mxu0 %v369
    %967 = vmatprep.subr.bf16.mxu0 0
    %968 = vmatpush2.bf16.msra.mxu0 0
    %969 = vmatprep.subr.bf16.mxu0 0
    %970 = vmatpush2.bf16.msra.mxu0 0
    %971 = vmatprep.subr.bf16.mxu0 0
    %972 = vmatpush2.bf16.msra.mxu0 0
    %973 = vmatprep.subr.bf16.mxu0 0
    %974 = vmatpush2.bf16.msra.mxu0 0
    %975 = vmatprep.subr.bf16.mxu0 0
    %976 = vmatpush2.bf16.msra.mxu0 0
    %977 = vmatprep.subr.bf16.mxu0 0
    %978 = vmatpush2.bf16.msra.mxu0 0
    %979 = vmatprep.subr.bf16.mxu0 0
    %980 = vmatpush2.bf16.msra.mxu0 0
    %981 = vmatprep.subr.bf16.mxu0 0
    %982 = vmatpush2.bf16.msra.mxu0 0
    %983 = vmatprep.mubr.bf16.mxu0 0
    %984 = vmatmul.mubr.bf16.gmra.mxu0 %v949
    %v985 = vpop.f32.mrf.mxu0
    %v986 = vadd.f32 0.0, %v985
    %v987 = vpop.f32.mrf.mxu0
    %v988 = vadd.f32 0.0, %v987
    %v989 = vpop.f32.mrf.mxu0
    %v990 = vpop.f32.mrf.mxu0
    %991 = vdwg.mxu0
    %v992 = vadd.f32 %v944, %v986
    %v993 = vadd.f32 %v945, %v988
    %v994 = vmul.f32 %v992, %v173
    %v995 = vmul.f32 %v993, %v174
    %v996 = vtanh.pop %v994
    %v997 = vtanh.pop %v995
    %v998 = vmul.f32 %v996, %v173
    %v999 = vmul.f32 %v997, %v174
    %v1000 = vadd.f32 %v998, %v175
    %v1001 = vadd.f32 %v999, %v176
    %v1002 = vmul.f32 %v1000, %v928
    %v1003 = vmul.f32 %v1000, %v1001
    %1005 = vrot.lane.b32.xlu0 %v1003, 64
    %v1006 = vpop.permute.xlu0 %1005
    %v1008 = vadd.f32 %v1002, %v1006
    %v1009 = vtanh.pop %v1008
    %v1010 = vmul.f32 %v1001, %v1009
    %v1011 = vpack.c.bf16 %v1010, %v1010
    %v1013 = vunpack.c.l.b16 %v1011
    %v1014 = vpack.c.b16 %v1013, %v1013
    %1015 = vrot.lane.b32.xlu0 %v1014, 64
    %v1016 = vpop.permute.xlu0 %1015
    %1018 = vst.msk [vmem:[#allocation3 + $0x1c] sm:$0xf] %vm456, %v1016
    %1019 = vst.msk [vmem:[#allocation3] sm:$0xf] %vm458, %v1016
    %v1020 = vld [vmem:[#allocation3] sm:$0xf]
    %v1021 = vld [vmem:[#allocation3 + $0x4] sm:$0xf]
    %v1022 = vld [vmem:[#allocation3 + $0x8] sm:$0xf]
    %v1023 = vld [vmem:[#allocation3 + $0xc] sm:$0xf]
    %v1024 = vld [vmem:[#allocation3 + $0x10] sm:$0xf]
    %v1025 = vld [vmem:[#allocation3 + $0x14] sm:$0xf]
    %v1026 = vld [vmem:[#allocation3 + $0x18] sm:$0xf]
    %v1027 = vld [vmem:[#allocation3 + $0x1c] sm:$0xf]
    %v1028 = vld [vmem:[#allocation6] sm:$0xff]
    %v1029 = vld [vmem:[#allocation6 + $0x8] sm:$0xff]
    %v1030 = vld [vmem:[#allocation6 + $0x10] sm:$0xff]
    %v1031 = vld [vmem:[#allocation6 + $0x18] sm:$0xff]
    %v1032 = vld [vmem:[#allocation6 + $0x20] sm:$0xff]
    %v1033 = vld [vmem:[#allocation6 + $0x28] sm:$0xff]
    %v1034 = vld [vmem:[#allocation6 + $0x30] sm:$0xff]
    %v1035 = vld [vmem:[#allocation6 + $0x38] sm:$0xff]
    %v1036 = vld [vmem:[%s6] sm:$0x3]
    %v1038 = vlaneseq
    %v1039 = vshrl.u32 %v1038, 7
    %v1040 = vsub.s32 0, %v1039
    %v1041 = vrot.slane %v1036, %v1040
    %v1042 = vlaneseq
    %v1043 = vshrl.u32 %v1042, 7
    %v1044 = vsub.s32 1, %v1043
    %v1045 = vrot.slane %v1036, %v1044
    %v1056 = vunpack.c.l.b16 %v1020
    %v1057 = vunpack.c.l.b16 %v1021
    %v1058 = vunpack.c.l.b16 %v1022
    %v1059 = vunpack.c.l.b16 %v1023
    %v1060 = vunpack.c.l.b16 %v1024
    %v1061 = vunpack.c.l.b16 %v1025
    %v1062 = vunpack.c.l.b16 %v1026
    %v1063 = vunpack.c.l.b16 %v1027
    %v1064 = vpack.c.b16 %v1057, %v1056
    %v1065 = vpack.c.b16 %v1059, %v1058
    %v1066 = vpack.c.b16 %v1061, %v1060
    %v1067 = vpack.c.b16 %v1063, %v1062
    %v1076 = vunpack.c.l.b16 %v1028
    %v1077 = vunpack.c.h.b16 %v1028
    %v1078 = vunpack.c.l.b16 %v1029
    %v1079 = vunpack.c.h.b16 %v1029
    %v1080 = vunpack.c.l.b16 %v1030
    %v1081 = vunpack.c.h.b16 %v1030
    %v1082 = vunpack.c.l.b16 %v1031
    %v1083 = vunpack.c.h.b16 %v1031
    %v1084 = vunpack.c.l.b16 %v1032
    %v1085 = vunpack.c.h.b16 %v1032
    %v1086 = vunpack.c.l.b16 %v1033
    %v1087 = vunpack.c.h.b16 %v1033
    %v1088 = vunpack.c.l.b16 %v1034
    %v1089 = vunpack.c.h.b16 %v1034
    %v1090 = vunpack.c.l.b16 %v1035
    %v1091 = vunpack.c.h.b16 %v1035
    %v1092 = vpack.c.b16 %v1078, %v1076
    %v1093 = vpack.c.b16 %v1079, %v1077
    %v1094 = vpack.c.b16 %v1082, %v1080
    %v1095 = vpack.c.b16 %v1083, %v1081
    %v1096 = vpack.c.b16 %v1086, %v1084
    %v1097 = vpack.c.b16 %v1087, %v1085
    %v1098 = vpack.c.b16 %v1090, %v1088
    %v1099 = vpack.c.b16 %v1091, %v1089
    %v1109 = vsel %vm385, %v1064, 0
    %v1112 = vsel %vm385, %v1065, 0
    %v1115 = vsel %vm385, %v1066, 0
    %v1118 = vsel %vm385, %v1067, 0
    %1120 = vmatprep.subr.bf16.mxu0 0
    %1121 = vmatpush1.bf16.msra.mxu0 0
    %1122 = vmatprep.subr.bf16.mxu0 0
    %1123 = vmatpush1.bf16.msra.mxu0 0
    %1124 = vmatprep.subr.bf16.mxu0 0
    %1125 = vmatpush1.bf16.msra.mxu0 0
    %1126 = vmatprep.subr.bf16.mxu0 0
    %1127 = vmatpush1.bf16.msra.mxu0 0
    %1128 = vmatprep.subr.bf16.mxu0 %v1099
    %1129 = vmatpush1.bf16.msra.mxu0 %v1098
    %1130 = vmatprep.subr.bf16.mxu0 %v1097
    %1131 = vmatpush1.bf16.msra.mxu0 %v1096
    %1132 = vmatprep.subr.bf16.mxu0 %v1095
    %1133 = vmatpush1.bf16.msra.mxu0 %v1094
    %1134 = vmatprep.subr.bf16.mxu0 %v1093
    %1135 = vmatpush1.bf16.msra.mxu0 %v1092
    %1136 = vmatprep.subr.bf16.mxu0 0
    %1137 = vmatpush2.bf16.msra.mxu0 0
    %1138 = vmatprep.subr.bf16.mxu0 0
    %1139 = vmatpush2.bf16.msra.mxu0 0
    %1140 = vmatprep.subr.bf16.mxu0 0
    %1141 = vmatpush2.bf16.msra.mxu0 0
    %1142 = vmatprep.subr.bf16.mxu0 0
    %1143 = vmatpush2.bf16.msra.mxu0 0
    %1144 = vmatprep.subr.bf16.mxu0 0
    %1145 = vmatpush2.bf16.msra.mxu0 0
    %1146 = vmatprep.subr.bf16.mxu0 0
    %1147 = vmatpush2.bf16.msra.mxu0 0
    %1148 = vmatprep.subr.bf16.mxu0 0
    %1149 = vmatpush2.bf16.msra.mxu0 0
    %1150 = vmatprep.subr.bf16.mxu0 0
    %1151 = vmatpush2.bf16.msra.mxu0 0
    %1152 = vmatprep.mubr.bf16.mxu0 0
    %1153 = vmatmul.mubr.bf16.gmra.mxu0 %v1109
    %v1154 = vpop.f32.mrf.mxu0
    %v1155 = vadd.f32 %v1041, %v1154
    %v1156 = vpop.f32.mrf.mxu0
    %v1157 = vadd.f32 %v1045, %v1156
    %v1158 = vpop.f32.mrf.mxu0
    %v1159 = vadd.f32 %v1041, %v1158
    %v1160 = vpop.f32.mrf.mxu0
    %v1161 = vadd.f32 %v1045, %v1160
    %1162 = vmatprep.mubr.bf16.mxu0 0
    %1163 = vmatmul.mubr.bf16.gmra.mxu0 %v1112
    %v1164 = vpop.f32.mrf.mxu0
    %v1165 = vadd.f32 %v1041, %v1164
    %v1166 = vpop.f32.mrf.mxu0
    %v1167 = vadd.f32 %v1045, %v1166
    %v1168 = vpop.f32.mrf.mxu0
    %v1169 = vadd.f32 %v1041, %v1168
    %v1170 = vpop.f32.mrf.mxu0
    %v1171 = vadd.f32 %v1045, %v1170
    %1172 = vmatprep.mubr.bf16.mxu0 0
    %1173 = vmatmul.mubr.bf16.gmra.mxu0 %v1115
    %v1174 = vpop.f32.mrf.mxu0
    %v1175 = vadd.f32 %v1041, %v1174
    %v1176 = vpop.f32.mrf.mxu0
    %v1177 = vadd.f32 %v1045, %v1176
    %v1178 = vpop.f32.mrf.mxu0
    %v1179 = vadd.f32 %v1041, %v1178
    %v1180 = vpop.f32.mrf.mxu0
    %v1181 = vadd.f32 %v1045, %v1180
    %1182 = vmatprep.mubr.bf16.mxu0 0
    %1183 = vmatmul.mubr.bf16.gmra.mxu0 %v1118
    %v1184 = vpop.f32.mrf.mxu0
    %v1185 = vadd.f32 %v1041, %v1184
    %v1186 = vpop.f32.mrf.mxu0
    %v1187 = vadd.f32 %v1045, %v1186
    %v1188 = vpop.f32.mrf.mxu0
    %v1189 = vadd.f32 %v1041, %v1188
    %v1190 = vpop.f32.mrf.mxu0
    %v1191 = vadd.f32 %v1045, %v1190
    %1192 = vdwg.mxu0
    %1193 = vst [vmem:[#allocation2] sm:$0xff] %v1155
    %1194 = vst [vmem:[#allocation2 + $0x8] sm:$0xff] %v1157
    %1195 = vst [vmem:[#allocation2 + $0x10] sm:$0xff] %v1159
    %1196 = vst [vmem:[#allocation2 + $0x18] sm:$0xff] %v1161
    %1197 = vst [vmem:[#allocation2 + $0x20] sm:$0xff] %v1165
    %1198 = vst [vmem:[#allocation2 + $0x28] sm:$0xff] %v1167
    %1199 = vst [vmem:[#allocation2 + $0x30] sm:$0xff] %v1169
    %1200 = vst [vmem:[#allocation2 + $0x38] sm:$0xff] %v1171
    %1201 = vst [vmem:[#allocation2 + $0x40] sm:$0xff] %v1175
    %1202 = vst [vmem:[#allocation2 + $0x48] sm:$0xff] %v1177
    %1203 = vst [vmem:[#allocation2 + $0x50] sm:$0xff] %v1179
    %1204 = vst [vmem:[#allocation2 + $0x58] sm:$0xff] %v1181
    %1205 = vst [vmem:[#allocation2 + $0x60] sm:$0xff] %v1185
    %1206 = vst [vmem:[#allocation2 + $0x68] sm:$0xff] %v1187
    %1207 = vst [vmem:[#allocation2 + $0x70] sm:$0xff] %v1189
    %1208 = vst [vmem:[#allocation2 + $0x78] sm:$0xff] %v1191
    %v1209 = vld [vmem:[#allocation8] sm:$0xff]
    %v1210 = vld [vmem:[#allocation8 + $0x8] sm:$0xff]
    %v1211 = vld [vmem:[#allocation8 + $0x10] sm:$0xff]
    %v1212 = vld [vmem:[#allocation8 + $0x18] sm:$0xff]
    %v1213 = vld [vmem:[#allocation8 + $0x20] sm:$0xff]
    %v1214 = vld [vmem:[#allocation8 + $0x28] sm:$0xff]
    %v1215 = vld [vmem:[#allocation8 + $0x30] sm:$0xff]
    %v1216 = vld [vmem:[#allocation8 + $0x38] sm:$0xff]
    %v1217 = vld [vmem:[#allocation2] sm:$0xff]
    %v1218 = vld [vmem:[#allocation2 + $0x8] sm:$0xff]
    %v1219 = vld [vmem:[#allocation2 + $0x70] sm:$0xff]
    %v1220 = vld [vmem:[#allocation2 + $0x78] sm:$0xff]
    %v1221 = vsel %vm167, %v1217, %v1219
    %v1222 = vsel %vm168, %v1218, %v1220
    %v1231 = vunpack.c.l.b16 %v1209
    %v1232 = vunpack.c.h.b16 %v1209
    %v1233 = vunpack.c.l.b16 %v1210
    %v1234 = vunpack.c.h.b16 %v1210
    %v1235 = vunpack.c.l.b16 %v1211
    %v1236 = vunpack.c.h.b16 %v1211
    %v1237 = vunpack.c.l.b16 %v1212
    %v1238 = vunpack.c.h.b16 %v1212
    %v1239 = vunpack.c.l.b16 %v1213
    %v1240 = vunpack.c.h.b16 %v1213
    %v1241 = vunpack.c.l.b16 %v1214
    %v1242 = vunpack.c.h.b16 %v1214
    %v1243 = vunpack.c.l.b16 %v1215
    %v1244 = vunpack.c.h.b16 %v1215
    %v1245 = vunpack.c.l.b16 %v1216
    %v1246 = vunpack.c.h.b16 %v1216
    %v1247 = vpack.c.b16 %v1233, %v1231
    %v1248 = vpack.c.b16 %v1234, %v1232
    %v1249 = vpack.c.b16 %v1237, %v1235
    %v1250 = vpack.c.b16 %v1238, %v1236
    %v1251 = vpack.c.b16 %v1241, %v1239
    %v1252 = vpack.c.b16 %v1242, %v1240
    %v1253 = vpack.c.b16 %v1245, %v1243
    %v1254 = vpack.c.b16 %v1246, %v1244
    %1263 = vmatprep.subr.bf16.mxu0 0
    %1264 = vmatpush1.bf16.msra.mxu0 0
    %1265 = vmatprep.subr.bf16.mxu0 0
    %1266 = vmatpush1.bf16.msra.mxu0 0
    %1267 = vmatprep.subr.bf16.mxu0 0
    %1268 = vmatpush1.bf16.msra.mxu0 0
    %1269 = vmatprep.subr.bf16.mxu0 0
    %1270 = vmatpush1.bf16.msra.mxu0 0
    %1271 = vmatprep.subr.bf16.mxu0 %v1254
    %1272 = vmatpush1.bf16.msra.mxu0 %v1253
    %1273 = vmatprep.subr.bf16.mxu0 %v1252
    %1274 = vmatpush1.bf16.msra.mxu0 %v1251
    %1275 = vmatprep.subr.bf16.mxu0 %v1250
    %1276 = vmatpush1.bf16.msra.mxu0 %v1249
    %1277 = vmatprep.subr.bf16.mxu0 %v1248
    %1278 = vmatpush1.bf16.msra.mxu0 %v1247
    %1279 = vmatprep.subr.bf16.mxu0 0
    %1280 = vmatpush2.bf16.msra.mxu0 0
    %1281 = vmatprep.subr.bf16.mxu0 0
    %1282 = vmatpush2.bf16.msra.mxu0 0
    %1283 = vmatprep.subr.bf16.mxu0 0
    %1284 = vmatpush2.bf16.msra.mxu0 0
    %1285 = vmatprep.subr.bf16.mxu0 0
    %1286 = vmatpush2.bf16.msra.mxu0 0
    %1287 = vmatprep.subr.bf16.mxu0 0
    %1288 = vmatpush2.bf16.msra.mxu0 0
    %1289 = vmatprep.subr.bf16.mxu0 0
    %1290 = vmatpush2.bf16.msra.mxu0 0
    %1291 = vmatprep.subr.bf16.mxu0 0
    %1292 = vmatpush2.bf16.msra.mxu0 0
    %1293 = vmatprep.subr.bf16.mxu0 0
    %1294 = vmatpush2.bf16.msra.mxu0 0
    %1295 = vmatprep.mubr.bf16.mxu0 0
    %1296 = vmatmul.mubr.bf16.gmra.mxu0 %v387
    %v1297 = vpop.f32.mrf.mxu0
    %v1298 = vadd.f32 0.0, %v1297
    %v1299 = vpop.f32.mrf.mxu0
    %v1300 = vadd.f32 0.0, %v1299
    %v1301 = vpop.f32.mrf.mxu0
    %v1302 = vpop.f32.mrf.mxu0
    %1303 = vdwg.mxu0
    %v1304 = vadd.f32 %v1221, %v1298
    %v1305 = vadd.f32 %v1222, %v1300
    %v1306 = vmul.f32 %v1304, %v173
    %v1307 = vmul.f32 %v1305, %v174
    %v1308 = vtanh.pop %v1306
    %v1309 = vtanh.pop %v1307
    %v1310 = vmul.f32 %v1308, %v173
    %v1311 = vmul.f32 %v1309, %v174
    %v1312 = vadd.f32 %v1310, %v175
    %v1313 = vadd.f32 %v1311, %v176
    %v1314 = vmul.f32 %v1312, 0.0
    %v1315 = vmul.f32 %v1312, %v1313
    %1317 = vrot.lane.b32.xlu0 %v1315, 64
    %v1318 = vpop.permute.xlu0 %1317
    %v1320 = vadd.f32 %v1314, %v1318
    %v1321 = vtanh.pop %v1320
    %v1322 = vmul.f32 %v1313, %v1321
    %v1323 = vadd.f32 %v1322, 0.0
    %v1324 = vld [vmem:[#allocation2 + $0x10] sm:$0xff]
    %v1325 = vld [vmem:[#allocation2 + $0x18] sm:$0xff]
    %v1326 = vld [vmem:[#allocation2 + $0x60] sm:$0xff]
    %v1327 = vld [vmem:[#allocation2 + $0x68] sm:$0xff]
    %v1328 = vsel %vm167, %v1324, %v1326
    %v1329 = vsel %vm168, %v1325, %v1327
    %v1330 = vpack.c.bf16 %v1322, %v1322
    %1332 = vrot.lane.b32.xlu0 %v1330, 64
    %v1333 = vpop.permute.xlu0 %1332
    %v1335 = vsel %vm385, %v1333, 0
    %1337 = vmatprep.subr.bf16.mxu0 0
    %1338 = vmatpush1.bf16.msra.mxu0 0
    %1339 = vmatprep.subr.bf16.mxu0 0
    %1340 = vmatpush1.bf16.msra.mxu0 0
    %1341 = vmatprep.subr.bf16.mxu0 0
    %1342 = vmatpush1.bf16.msra.mxu0 0
    %1343 = vmatprep.subr.bf16.mxu0 0
    %1344 = vmatpush1.bf16.msra.mxu0 0
    %1345 = vmatprep.subr.bf16.mxu0 %v1254
    %1346 = vmatpush1.bf16.msra.mxu0 %v1253
    %1347 = vmatprep.subr.bf16.mxu0 %v1252
    %1348 = vmatpush1.bf16.msra.mxu0 %v1251
    %1349 = vmatprep.subr.bf16.mxu0 %v1250
    %1350 = vmatpush1.bf16.msra.mxu0 %v1249
    %1351 = vmatprep.subr.bf16.mxu0 %v1248
    %1352 = vmatpush1.bf16.msra.mxu0 %v1247
    %1353 = vmatprep.subr.bf16.mxu0 0
    %1354 = vmatpush2.bf16.msra.mxu0 0
    %1355 = vmatprep.subr.bf16.mxu0 0
    %1356 = vmatpush2.bf16.msra.mxu0 0
    %1357 = vmatprep.subr.bf16.mxu0 0
    %1358 = vmatpush2.bf16.msra.mxu0 0
    %1359 = vmatprep.subr.bf16.mxu0 0
    %1360 = vmatpush2.bf16.msra.mxu0 0
    %1361 = vmatprep.subr.bf16.mxu0 0
    %1362 = vmatpush2.bf16.msra.mxu0 0
    %1363 = vmatprep.subr.bf16.mxu0 0
    %1364 = vmatpush2.bf16.msra.mxu0 0
    %1365 = vmatprep.subr.bf16.mxu0 0
    %1366 = vmatpush2.bf16.msra.mxu0 0
    %1367 = vmatprep.subr.bf16.mxu0 0
    %1368 = vmatpush2.bf16.msra.mxu0 0
    %1369 = vmatprep.mubr.bf16.mxu0 0
    %1370 = vmatmul.mubr.bf16.gmra.mxu0 %v1335
    %v1371 = vpop.f32.mrf.mxu0
    %v1372 = vadd.f32 0.0, %v1371
    %v1373 = vpop.f32.mrf.mxu0
    %v1374 = vadd.f32 0.0, %v1373
    %v1375 = vpop.f32.mrf.mxu0
    %v1376 = vpop.f32.mrf.mxu0
    %1377 = vdwg.mxu0
    %v1378 = vadd.f32 %v1328, %v1372
    %v1379 = vadd.f32 %v1329, %v1374
    %v1380 = vmul.f32 %v1378, %v173
    %v1381 = vmul.f32 %v1379, %v174
    %v1382 = vtanh.pop %v1380
    %v1383 = vtanh.pop %v1381
    %v1384 = vmul.f32 %v1382, %v173
    %v1385 = vmul.f32 %v1383, %v174
    %v1386 = vadd.f32 %v1384, %v175
    %v1387 = vadd.f32 %v1385, %v176
    %v1388 = vmul.f32 %v1386, %v1320
    %v1389 = vmul.f32 %v1386, %v1387
    %1391 = vrot.lane.b32.xlu0 %v1389, 64
    %v1392 = vpop.permute.xlu0 %1391
    %v1394 = vadd.f32 %v1388, %v1392
    %v1395 = vtanh.pop %v1394
    %v1396 = vmul.f32 %v1387, %v1395
    %v1397 = vadd.f32 %v1323, %v1396
    %v1398 = vld [vmem:[#allocation2 + $0x20] sm:$0xff]
    %v1399 = vld [vmem:[#allocation2 + $0x28] sm:$0xff]
    %v1400 = vld [vmem:[#allocation2 + $0x50] sm:$0xff]
    %v1401 = vld [vmem:[#allocation2 + $0x58] sm:$0xff]
    %v1402 = vsel %vm167, %v1398, %v1400
    %v1403 = vsel %vm168, %v1399, %v1401
    %v1404 = vpack.c.bf16 %v1396, %v1396
    %1406 = vrot.lane.b32.xlu0 %v1404, 64
    %v1407 = vpop.permute.xlu0 %1406
    %v1409 = vsel %vm385, %v1407, 0
    %1411 = vmatprep.subr.bf16.mxu0 0
    %1412 = vmatpush1.bf16.msra.mxu0 0
    %1413 = vmatprep.subr.bf16.mxu0 0
    %1414 = vmatpush1.bf16.msra.mxu0 0
    %1415 = vmatprep.subr.bf16.mxu0 0
    %1416 = vmatpush1.bf16.msra.mxu0 0
    %1417 = vmatprep.subr.bf16.mxu0 0
    %1418 = vmatpush1.bf16.msra.mxu0 0
    %1419 = vmatprep.subr.bf16.mxu0 %v1254
    %1420 = vmatpush1.bf16.msra.mxu0 %v1253
    %1421 = vmatprep.subr.bf16.mxu0 %v1252
    %1422 = vmatpush1.bf16.msra.mxu0 %v1251
    %1423 = vmatprep.subr.bf16.mxu0 %v1250
    %1424 = vmatpush1.bf16.msra.mxu0 %v1249
    %1425 = vmatprep.subr.bf16.mxu0 %v1248
    %1426 = vmatpush1.bf16.msra.mxu0 %v1247
    %1427 = vmatprep.subr.bf16.mxu0 0
    %1428 = vmatpush2.bf16.msra.mxu0 0
    %1429 = vmatprep.subr.bf16.mxu0 0
    %1430 = vmatpush2.bf16.msra.mxu0 0
    %1431 = vmatprep.subr.bf16.mxu0 0
    %1432 = vmatpush2.bf16.msra.mxu0 0
    %1433 = vmatprep.subr.bf16.mxu0 0
    %1434 = vmatpush2.bf16.msra.mxu0 0
    %1435 = vmatprep.subr.bf16.mxu0 0
    %1436 = vmatpush2.bf16.msra.mxu0 0
    %1437 = vmatprep.subr.bf16.mxu0 0
    %1438 = vmatpush2.bf16.msra.mxu0 0
    %1439 = vmatprep.subr.bf16.mxu0 0
    %1440 = vmatpush2.bf16.msra.mxu0 0
    %1441 = vmatprep.subr.bf16.mxu0 0
    %1442 = vmatpush2.bf16.msra.mxu0 0
    %1443 = vmatprep.mubr.bf16.mxu0 0
    %1444 = vmatmul.mubr.bf16.gmra.mxu0 %v1409
    %v1445 = vpop.f32.mrf.mxu0
    %v1446 = vadd.f32 0.0, %v1445
    %v1447 = vpop.f32.mrf.mxu0
    %v1448 = vadd.f32 0.0, %v1447
    %v1449 = vpop.f32.mrf.mxu0
    %v1450 = vpop.f32.mrf.mxu0
    %1451 = vdwg.mxu0
    %v1452 = vadd.f32 %v1402, %v1446
    %v1453 = vadd.f32 %v1403, %v1448
    %v1454 = vmul.f32 %v1452, %v173
    %v1455 = vmul.f32 %v1453, %v174
    %v1456 = vtanh.pop %v1454
    %v1457 = vtanh.pop %v1455
    %v1458 = vmul.f32 %v1456, %v173
    %v1459 = vmul.f32 %v1457, %v174
    %v1460 = vadd.f32 %v1458, %v175
    %v1461 = vadd.f32 %v1459, %v176
    %v1462 = vmul.f32 %v1460, %v1394
    %v1463 = vmul.f32 %v1460, %v1461
    %1465 = vrot.lane.b32.xlu0 %v1463, 64
    %v1466 = vpop.permute.xlu0 %1465
    %v1468 = vadd.f32 %v1462, %v1466
    %v1469 = vtanh.pop %v1468
    %v1470 = vmul.f32 %v1461, %v1469
    %v1471 = vadd.f32 %v1397, %v1470
    %v1472 = vld [vmem:[#allocation2 + $0x30] sm:$0xff]
    %v1473 = vld [vmem:[#allocation2 + $0x38] sm:$0xff]
    %v1474 = vld [vmem:[#allocation2 + $0x40] sm:$0xff]
    %v1475 = vld [vmem:[#allocation2 + $0x48] sm:$0xff]
    %v1476 = vsel %vm167, %v1472, %v1474
    %v1477 = vsel %vm168, %v1473, %v1475
    %v1478 = vpack.c.bf16 %v1470, %v1470
    %1480 = vrot.lane.b32.xlu0 %v1478, 64
    %v1481 = vpop.permute.xlu0 %1480
    %v1483 = vsel %vm385, %v1481, 0
    %1485 = vmatprep.subr.bf16.mxu0 0
    %1486 = vmatpush1.bf16.msra.mxu0 0
    %1487 = vmatprep.subr.bf16.mxu0 0
    %1488 = vmatpush1.bf16.msra.mxu0 0
    %1489 = vmatprep.subr.bf16.mxu0 0
    %1490 = vmatpush1.bf16.msra.mxu0 0
    %1491 = vmatprep.subr.bf16.mxu0 0
    %1492 = vmatpush1.bf16.msra.mxu0 0
    %1493 = vmatprep.subr.bf16.mxu0 %v1254
    %1494 = vmatpush1.bf16.msra.mxu0 %v1253
    %1495 = vmatprep.subr.bf16.mxu0 %v1252
    %1496 = vmatpush1.bf16.msra.mxu0 %v1251
    %1497 = vmatprep.subr.bf16.mxu0 %v1250
    %1498 = vmatpush1.bf16.msra.mxu0 %v1249
    %1499 = vmatprep.subr.bf16.mxu0 %v1248
    %1500 = vmatpush1.bf16.msra.mxu0 %v1247
    %1501 = vmatprep.subr.bf16.mxu0 0
    %1502 = vmatpush2.bf16.msra.mxu0 0
    %1503 = vmatprep.subr.bf16.mxu0 0
    %1504 = vmatpush2.bf16.msra.mxu0 0
    %1505 = vmatprep.subr.bf16.mxu0 0
    %1506 = vmatpush2.bf16.msra.mxu0 0
    %1507 = vmatprep.subr.bf16.mxu0 0
    %1508 = vmatpush2.bf16.msra.mxu0 0
    %1509 = vmatprep.subr.bf16.mxu0 0
    %1510 = vmatpush2.bf16.msra.mxu0 0
    %1511 = vmatprep.subr.bf16.mxu0 0
    %1512 = vmatpush2.bf16.msra.mxu0 0
    %1513 = vmatprep.subr.bf16.mxu0 0
    %1514 = vmatpush2.bf16.msra.mxu0 0
    %1515 = vmatprep.subr.bf16.mxu0 0
    %1516 = vmatpush2.bf16.msra.mxu0 0
    %1517 = vmatprep.mubr.bf16.mxu0 0
    %1518 = vmatmul.mubr.bf16.gmra.mxu0 %v1483
    %v1519 = vpop.f32.mrf.mxu0
    %v1520 = vadd.f32 0.0, %v1519
    %v1521 = vpop.f32.mrf.mxu0
    %v1522 = vadd.f32 0.0, %v1521
    %v1523 = vpop.f32.mrf.mxu0
    %v1524 = vpop.f32.mrf.mxu0
    %1525 = vdwg.mxu0
    %v1526 = vadd.f32 %v1476, %v1520
    %v1527 = vadd.f32 %v1477, %v1522
    %v1528 = vmul.f32 %v1526, %v173
    %v1529 = vmul.f32 %v1527, %v174
    %v1530 = vtanh.pop %v1528
    %v1531 = vtanh.pop %v1529
    %v1532 = vmul.f32 %v1530, %v173
    %v1533 = vmul.f32 %v1531, %v174
    %v1534 = vadd.f32 %v1532, %v175
    %v1535 = vadd.f32 %v1533, %v176
    %v1536 = vmul.f32 %v1534, %v1468
    %v1537 = vmul.f32 %v1534, %v1535
    %1539 = vrot.lane.b32.xlu0 %v1537, 64
    %v1540 = vpop.permute.xlu0 %1539
    %v1542 = vadd.f32 %v1536, %v1540
    %v1543 = vtanh.pop %v1542
    %v1544 = vmul.f32 %v1535, %v1543
    %v1545 = vadd.f32 %v1471, %v1544
    %v1546 = vsel %vm167, %v1474, %v1472
    %v1547 = vsel %vm168, %v1475, %v1473
    %v1548 = vpack.c.bf16 %v1544, %v1544
    %1550 = vrot.lane.b32.xlu0 %v1548, 64
    %v1551 = vpop.permute.xlu0 %1550
    %v1553 = vsel %vm385, %v1551, 0
    %1555 = vmatprep.subr.bf16.mxu0 0
    %1556 = vmatpush1.bf16.msra.mxu0 0
    %1557 = vmatprep.subr.bf16.mxu0 0
    %1558 = vmatpush1.bf16.msra.mxu0 0
    %1559 = vmatprep.subr.bf16.mxu0 0
    %1560 = vmatpush1.bf16.msra.mxu0 0
    %1561 = vmatprep.subr.bf16.mxu0 0
    %1562 = vmatpush1.bf16.msra.mxu0 0
    %1563 = vmatprep.subr.bf16.mxu0 %v1254
    %1564 = vmatpush1.bf16.msra.mxu0 %v1253
    %1565 = vmatprep.subr.bf16.mxu0 %v1252
    %1566 = vmatpush1.bf16.msra.mxu0 %v1251
    %1567 = vmatprep.subr.bf16.mxu0 %v1250
    %1568 = vmatpush1.bf16.msra.mxu0 %v1249
    %1569 = vmatprep.subr.bf16.mxu0 %v1248
    %1570 = vmatpush1.bf16.msra.mxu0 %v1247
    %1571 = vmatprep.subr.bf16.mxu0 0
    %1572 = vmatpush2.bf16.msra.mxu0 0
    %1573 = vmatprep.subr.bf16.mxu0 0
    %1574 = vmatpush2.bf16.msra.mxu0 0
    %1575 = vmatprep.subr.bf16.mxu0 0
    %1576 = vmatpush2.bf16.msra.mxu0 0
    %1577 = vmatprep.subr.bf16.mxu0 0
    %1578 = vmatpush2.bf16.msra.mxu0 0
    %1579 = vmatprep.subr.bf16.mxu0 0
    %1580 = vmatpush2.bf16.msra.mxu0 0
    %1581 = vmatprep.subr.bf16.mxu0 0
    %1582 = vmatpush2.bf16.msra.mxu0 0
    %1583 = vmatprep.subr.bf16.mxu0 0
    %1584 = vmatpush2.bf16.msra.mxu0 0
    %1585 = vmatprep.subr.bf16.mxu0 0
    %1586 = vmatpush2.bf16.msra.mxu0 0
    %1587 = vmatprep.mubr.bf16.mxu0 0
    %1588 = vmatmul.mubr.bf16.gmra.mxu0 %v1553
    %v1589 = vpop.f32.mrf.mxu0
    %v1590 = vadd.f32 0.0, %v1589
    %v1591 = vpop.f32.mrf.mxu0
    %v1592 = vadd.f32 0.0, %v1591
    %v1593 = vpop.f32.mrf.mxu0
    %v1594 = vpop.f32.mrf.mxu0
    %1595 = vdwg.mxu0
    %v1596 = vadd.f32 %v1546, %v1590
    %v1597 = vadd.f32 %v1547, %v1592
    %v1598 = vmul.f32 %v1596, %v173
    %v1599 = vmul.f32 %v1597, %v174
    %v1600 = vtanh.pop %v1598
    %v1601 = vtanh.pop %v1599
    %v1602 = vmul.f32 %v1600, %v173
    %v1603 = vmul.f32 %v1601, %v174
    %v1604 = vadd.f32 %v1602, %v175
    %v1605 = vadd.f32 %v1603, %v176
    %v1606 = vmul.f32 %v1604, %v1542
    %v1607 = vmul.f32 %v1604, %v1605
    %1609 = vrot.lane.b32.xlu0 %v1607, 64
    %v1610 = vpop.permute.xlu0 %1609
    %v1612 = vadd.f32 %v1606, %v1610
    %v1613 = vtanh.pop %v1612
    %v1614 = vmul.f32 %v1605, %v1613
    %v1615 = vadd.f32 %v1545, %v1614
    %v1616 = vsel %vm167, %v1400, %v1398
    %v1617 = vsel %vm168, %v1401, %v1399
    %v1618 = vpack.c.bf16 %v1614, %v1614
    %1620 = vrot.lane.b32.xlu0 %v1618, 64
    %v1621 = vpop.permute.xlu0 %1620
    %v1623 = vsel %vm385, %v1621, 0
    %1625 = vmatprep.subr.bf16.mxu0 0
    %1626 = vmatpush1.bf16.msra.mxu0 0
    %1627 = vmatprep.subr.bf16.mxu0 0
    %1628 = vmatpush1.bf16.msra.mxu0 0
    %1629 = vmatprep.subr.bf16.mxu0 0
    %1630 = vmatpush1.bf16.msra.mxu0 0
    %1631 = vmatprep.subr.bf16.mxu0 0
    %1632 = vmatpush1.bf16.msra.mxu0 0
    %1633 = vmatprep.subr.bf16.mxu0 %v1254
    %1634 = vmatpush1.bf16.msra.mxu0 %v1253
    %1635 = vmatprep.subr.bf16.mxu0 %v1252
    %1636 = vmatpush1.bf16.msra.mxu0 %v1251
    %1637 = vmatprep.subr.bf16.mxu0 %v1250
    %1638 = vmatpush1.bf16.msra.mxu0 %v1249
    %1639 = vmatprep.subr.bf16.mxu0 %v1248
    %1640 = vmatpush1.bf16.msra.mxu0 %v1247
    %1641 = vmatprep.subr.bf16.mxu0 0
    %1642 = vmatpush2.bf16.msra.mxu0 0
    %1643 = vmatprep.subr.bf16.mxu0 0
    %1644 = vmatpush2.bf16.msra.mxu0 0
    %1645 = vmatprep.subr.bf16.mxu0 0
    %1646 = vmatpush2.bf16.msra.mxu0 0
    %1647 = vmatprep.subr.bf16.mxu0 0
    %1648 = vmatpush2.bf16.msra.mxu0 0
    %1649 = vmatprep.subr.bf16.mxu0 0
    %1650 = vmatpush2.bf16.msra.mxu0 0
    %1651 = vmatprep.subr.bf16.mxu0 0
    %1652 = vmatpush2.bf16.msra.mxu0 0
    %1653 = vmatprep.subr.bf16.mxu0 0
    %1654 = vmatpush2.bf16.msra.mxu0 0
    %1655 = vmatprep.subr.bf16.mxu0 0
    %1656 = vmatpush2.bf16.msra.mxu0 0
    %1657 = vmatprep.mubr.bf16.mxu0 0
    %1658 = vmatmul.mubr.bf16.gmra.mxu0 %v1623
    %v1659 = vpop.f32.mrf.mxu0
    %v1660 = vadd.f32 0.0, %v1659
    %v1661 = vpop.f32.mrf.mxu0
    %v1662 = vadd.f32 0.0, %v1661
    %v1663 = vpop.f32.mrf.mxu0
    %v1664 = vpop.f32.mrf.mxu0
    %1665 = vdwg.mxu0
    %v1666 = vadd.f32 %v1616, %v1660
    %v1667 = vadd.f32 %v1617, %v1662
    %v1668 = vmul.f32 %v1666, %v173
    %v1669 = vmul.f32 %v1667, %v174
    %v1670 = vtanh.pop %v1668
    %v1671 = vtanh.pop %v1669
    %v1672 = vmul.f32 %v1670, %v173
    %v1673 = vmul.f32 %v1671, %v174
    %v1674 = vadd.f32 %v1672, %v175
    %v1675 = vadd.f32 %v1673, %v176
    %v1676 = vmul.f32 %v1674, %v1612
    %v1677 = vmul.f32 %v1674, %v1675
    %1679 = vrot.lane.b32.xlu0 %v1677, 64
    %v1680 = vpop.permute.xlu0 %1679
    %v1682 = vadd.f32 %v1676, %v1680
    %v1683 = vtanh.pop %v1682
    %v1684 = vmul.f32 %v1675, %v1683
    %v1685 = vadd.f32 %v1615, %v1684
    %v1686 = vsel %vm167, %v1326, %v1324
    %v1687 = vsel %vm168, %v1327, %v1325
    %v1688 = vpack.c.bf16 %v1684, %v1684
    %1690 = vrot.lane.b32.xlu0 %v1688, 64
    %v1691 = vpop.permute.xlu0 %1690
    %v1693 = vsel %vm385, %v1691, 0
    %1695 = vmatprep.subr.bf16.mxu0 0
    %1696 = vmatpush1.bf16.msra.mxu0 0
    %1697 = vmatprep.subr.bf16.mxu0 0
    %1698 = vmatpush1.bf16.msra.mxu0 0
    %1699 = vmatprep.subr.bf16.mxu0 0
    %1700 = vmatpush1.bf16.msra.mxu0 0
    %1701 = vmatprep.subr.bf16.mxu0 0
    %1702 = vmatpush1.bf16.msra.mxu0 0
    %1703 = vmatprep.subr.bf16.mxu0 %v1254
    %1704 = vmatpush1.bf16.msra.mxu0 %v1253
    %1705 = vmatprep.subr.bf16.mxu0 %v1252
    %1706 = vmatpush1.bf16.msra.mxu0 %v1251
    %1707 = vmatprep.subr.bf16.mxu0 %v1250
    %1708 = vmatpush1.bf16.msra.mxu0 %v1249
    %1709 = vmatprep.subr.bf16.mxu0 %v1248
    %1710 = vmatpush1.bf16.msra.mxu0 %v1247
    %1711 = vmatprep.subr.bf16.mxu0 0
    %1712 = vmatpush2.bf16.msra.mxu0 0
    %1713 = vmatprep.subr.bf16.mxu0 0
    %1714 = vmatpush2.bf16.msra.mxu0 0
    %1715 = vmatprep.subr.bf16.mxu0 0
    %1716 = vmatpush2.bf16.msra.mxu0 0
    %1717 = vmatprep.subr.bf16.mxu0 0
    %1718 = vmatpush2.bf16.msra.mxu0 0
    %1719 = vmatprep.subr.bf16.mxu0 0
    %1720 = vmatpush2.bf16.msra.mxu0 0
    %1721 = vmatprep.subr.bf16.mxu0 0
    %1722 = vmatpush2.bf16.msra.mxu0 0
    %1723 = vmatprep.subr.bf16.mxu0 0
    %1724 = vmatpush2.bf16.msra.mxu0 0
    %1725 = vmatprep.subr.bf16.mxu0 0
    %1726 = vmatpush2.bf16.msra.mxu0 0
    %1727 = vmatprep.mubr.bf16.mxu0 0
    %1728 = vmatmul.mubr.bf16.gmra.mxu0 %v1693
    %v1729 = vpop.f32.mrf.mxu0
    %v1730 = vadd.f32 0.0, %v1729
    %v1731 = vpop.f32.mrf.mxu0
    %v1732 = vadd.f32 0.0, %v1731
    %v1733 = vpop.f32.mrf.mxu0
    %v1734 = vpop.f32.mrf.mxu0
    %1735 = vdwg.mxu0
    %v1736 = vadd.f32 %v1686, %v1730
    %v1737 = vadd.f32 %v1687, %v1732
    %v1738 = vmul.f32 %v1736, %v173
    %v1739 = vmul.f32 %v1737, %v174
    %v1740 = vtanh.pop %v1738
    %v1741 = vtanh.pop %v1739
    %v1742 = vmul.f32 %v1740, %v173
    %v1743 = vmul.f32 %v1741, %v174
    %v1744 = vadd.f32 %v1742, %v175
    %v1745 = vadd.f32 %v1743, %v176
    %v1746 = vmul.f32 %v1744, %v1682
    %v1747 = vmul.f32 %v1744, %v1745
    %1749 = vrot.lane.b32.xlu0 %v1747, 64
    %v1750 = vpop.permute.xlu0 %1749
    %v1752 = vadd.f32 %v1746, %v1750
    %v1753 = vtanh.pop %v1752
    %v1754 = vmul.f32 %v1745, %v1753
    %v1755 = vadd.f32 %v1685, %v1754
    %v1756 = vsel %vm167, %v1219, %v1217
    %v1757 = vsel %vm168, %v1220, %v1218
    %v1758 = vpack.c.bf16 %v1754, %v1754
    %1760 = vrot.lane.b32.xlu0 %v1758, 64
    %v1761 = vpop.permute.xlu0 %1760
    %v1763 = vsel %vm385, %v1761, 0
    %1765 = vmatprep.subr.bf16.mxu0 0
    %1766 = vmatpush1.bf16.msra.mxu0 0
    %1767 = vmatprep.subr.bf16.mxu0 0
    %1768 = vmatpush1.bf16.msra.mxu0 0
    %1769 = vmatprep.subr.bf16.mxu0 0
    %1770 = vmatpush1.bf16.msra.mxu0 0
    %1771 = vmatprep.subr.bf16.mxu0 0
    %1772 = vmatpush1.bf16.msra.mxu0 0
    %1773 = vmatprep.subr.bf16.mxu0 %v1254
    %1774 = vmatpush1.bf16.msra.mxu0 %v1253
    %1775 = vmatprep.subr.bf16.mxu0 %v1252
    %1776 = vmatpush1.bf16.msra.mxu0 %v1251
    %1777 = vmatprep.subr.bf16.mxu0 %v1250
    %1778 = vmatpush1.bf16.msra.mxu0 %v1249
    %1779 = vmatprep.subr.bf16.mxu0 %v1248
    %1780 = vmatpush1.bf16.msra.mxu0 %v1247
    %1781 = vmatprep.subr.bf16.mxu0 0
    %1782 = vmatpush2.bf16.msra.mxu0 0
    %1783 = vmatprep.subr.bf16.mxu0 0
    %1784 = vmatpush2.bf16.msra.mxu0 0
    %1785 = vmatprep.subr.bf16.mxu0 0
    %1786 = vmatpush2.bf16.msra.mxu0 0
    %1787 = vmatprep.subr.bf16.mxu0 0
    %1788 = vmatpush2.bf16.msra.mxu0 0
    %1789 = vmatprep.subr.bf16.mxu0 0
    %1790 = vmatpush2.bf16.msra.mxu0 0
    %1791 = vmatprep.subr.bf16.mxu0 0
    %1792 = vmatpush2.bf16.msra.mxu0 0
    %1793 = vmatprep.subr.bf16.mxu0 0
    %1794 = vmatpush2.bf16.msra.mxu0 0
    %1795 = vmatprep.subr.bf16.mxu0 0
    %1796 = vmatpush2.bf16.msra.mxu0 0
    %1797 = vmatprep.mubr.bf16.mxu0 0
    %1798 = vmatmul.mubr.bf16.gmra.mxu0 %v1763
    %v1799 = vpop.f32.mrf.mxu0
    %v1800 = vadd.f32 0.0, %v1799
    %v1801 = vpop.f32.mrf.mxu0
    %v1802 = vadd.f32 0.0, %v1801
    %v1803 = vpop.f32.mrf.mxu0
    %v1804 = vpop.f32.mrf.mxu0
    %1805 = vdwg.mxu0
    %v1806 = vadd.f32 %v1756, %v1800
    %v1807 = vadd.f32 %v1757, %v1802
    %v1808 = vmul.f32 %v1806, %v173
    %v1809 = vmul.f32 %v1807, %v174
    %v1810 = vtanh.pop %v1808
    %v1811 = vtanh.pop %v1809
    %v1812 = vmul.f32 %v1810, %v173
    %v1813 = vmul.f32 %v1811, %v174
    %v1814 = vadd.f32 %v1812, %v175
    %v1815 = vadd.f32 %v1813, %v176
    %v1816 = vmul.f32 %v1814, %v1752
    %v1817 = vmul.f32 %v1814, %v1815
    %1819 = vrot.lane.b32.xlu0 %v1817, 64
    %v1820 = vpop.permute.xlu0 %1819
    %v1822 = vadd.f32 %v1816, %v1820
    %v1823 = vtanh.pop %v1822
    %v1824 = vmul.f32 %v1815, %v1823
    %v1825 = vadd.f32 %v1755, %v1824
    %v1826 = vmul.f32 %v1825, 0.125
    %v1827 = vld [vmem:[#allocation9] sm:$0xff]
    %v1828 = vld [vmem:[#allocation9 + $0x8] sm:$0xff]
    %v1829 = vld [vmem:[#allocation9 + $0x10] sm:$0xff]
    %v1830 = vld [vmem:[#allocation9 + $0x18] sm:$0xff]
    %v1831 = vld [vmem:[#allocation9 + $0x20] sm:$0xff]
    %v1832 = vld [vmem:[#allocation9 + $0x28] sm:$0xff]
    %v1833 = vld [vmem:[#allocation9 + $0x30] sm:$0xff]
    %v1834 = vld [vmem:[#allocation9 + $0x38] sm:$0xff]
    %v1835 = vld [vmem:[#allocation11] sm:$0x1]
    %v1837 = vlaneseq
    %v1838 = vshrl.u32 %v1837, 7
    %v1839 = vsub.s32 0, %v1838
    %v1840 = vrot.slane %v1835, %v1839
    %1843 = vrot.lane.b32.xlu0 %v1826, 64
    %v1844 = vpop.permute.xlu0 %1843
    %v1845 = vsel %vm385, %v1844, 0
    %1847 = vmatprep.subr.mxu0 0.0
    %1848 = vmatpush1.msra.mxu0 0.0
    %1849 = vmatprep.subr.mxu0 0.0
    %1850 = vmatpush1.msra.mxu0 0.0
    %1851 = vmatprep.subr.mxu0 0.0
    %1852 = vmatpush1.msra.mxu0 0.0
    %1853 = vmatprep.subr.mxu0 0.0
    %1854 = vmatpush1.msra.mxu0 0.0
    %1855 = vmatprep.subr.mxu0 0.0
    %1856 = vmatpush1.msra.mxu0 0.0
    %1857 = vmatprep.subr.mxu0 0.0
    %1858 = vmatpush1.msra.mxu0 0.0
    %1859 = vmatprep.subr.mxu0 0.0
    %1860 = vmatpush1.msra.mxu0 0.0
    %1861 = vmatprep.subr.mxu0 0.0
    %1862 = vmatpush1.msra.mxu0 0.0
    %1863 = vmatprep.subr.mxu0 0.0
    %1864 = vmatpush1.msra.mxu0 %v1834
    %1865 = vmatprep.subr.mxu0 0.0
    %1866 = vmatpush1.msra.mxu0 %v1833
    %1867 = vmatprep.subr.mxu0 0.0
    %1868 = vmatpush1.msra.mxu0 %v1832
    %1869 = vmatprep.subr.mxu0 0.0
    %1870 = vmatpush1.msra.mxu0 %v1831
    %1871 = vmatprep.subr.mxu0 0.0
    %1872 = vmatpush1.msra.mxu0 %v1830
    %1873 = vmatprep.subr.mxu0 0.0
    %1874 = vmatpush1.msra.mxu0 %v1829
    %1875 = vmatprep.subr.mxu0 0.0
    %1876 = vmatpush1.msra.mxu0 %v1828
    %1877 = vmatprep.subr.mxu0 0.0
    %1878 = vmatpush1.msra.mxu0 %v1827
    %1879 = vmatprep.subr.mxu0 0.0
    %1880 = vmatpush2.msra.mxu0 0.0
    %1881 = vmatprep.subr.mxu0 0.0
    %1882 = vmatpush2.msra.mxu0 0.0
    %1883 = vmatprep.subr.mxu0 0.0
    %1884 = vmatpush2.msra.mxu0 0.0
    %1885 = vmatprep.subr.mxu0 0.0
    %1886 = vmatpush2.msra.mxu0 0.0
    %1887 = vmatprep.subr.mxu0 0.0
    %1888 = vmatpush2.msra.mxu0 0.0
    %1889 = vmatprep.subr.mxu0 0.0
    %1890 = vmatpush2.msra.mxu0 0.0
    %1891 = vmatprep.subr.mxu0 0.0
    %1892 = vmatpush2.msra.mxu0 0.0
    %1893 = vmatprep.subr.mxu0 0.0
    %1894 = vmatpush2.msra.mxu0 0.0
    %1895 = vmatprep.subr.mxu0 0.0
    %1896 = vmatpush2.msra.mxu0 0.0
    %1897 = vmatprep.subr.mxu0 0.0
    %1898 = vmatpush2.msra.mxu0 0.0
    %1899 = vmatprep.subr.mxu0 0.0
    %1900 = vmatpush2.msra.mxu0 0.0
    %1901 = vmatprep.subr.mxu0 0.0
    %1902 = vmatpush2.msra.mxu0 0.0
    %1903 = vmatprep.subr.mxu0 0.0
    %1904 = vmatpush2.msra.mxu0 0.0
    %1905 = vmatprep.subr.mxu0 0.0
    %1906 = vmatpush2.msra.mxu0 0.0
    %1907 = vmatprep.subr.mxu0 0.0
    %1908 = vmatpush2.msra.mxu0 0.0
    %1909 = vmatprep.subr.mxu0 0.0
    %1910 = vmatpush2.msra.mxu0 0.0
    %1911 = vmatprep.mubr.f32.mxu0 0.0
    %1912 = vmatmul.mubr.f32.gmra.mxu0 %v1845
    %v1913 = vpop.f32.mrf.mxu0
    %v1914 = vadd.f32 %v1840, %v1913
    %v1915 = vpop.f32.mrf.mxu0
    %1916 = vdwg.mxu0
    %vm1917 = vcmp.gt.f32.partialorder %v1914, 0.0
    %v1918 = vmul.f32 %v1914, 0.01
    %v1919 = vsel %vm1917, %v1914, %v1918
    %v1920 = vld [vmem:[#allocation12] sm:$0xff]
    %v1921 = vld [vmem:[#allocation12 + $0x8] sm:$0xff]
    %v1922 = vld [vmem:[#allocation12 + $0x10] sm:$0xff]
    %v1923 = vld [vmem:[#allocation12 + $0x18] sm:$0xff]
    %v1924 = vld [vmem:[#allocation12 + $0x20] sm:$0xff]
    %v1925 = vld [vmem:[#allocation12 + $0x28] sm:$0xff]
    %v1926 = vld [vmem:[#allocation12 + $0x30] sm:$0xff]
    %v1927 = vld [vmem:[#allocation12 + $0x38] sm:$0xff]
    %v1928 = vld [vmem:[#allocation12 + $0x40] sm:$0xff]
    %v1929 = vld [vmem:[#allocation12 + $0x48] sm:$0xff]
    %v1930 = vld [vmem:[#allocation12 + $0x50] sm:$0xff]
    %v1931 = vld [vmem:[#allocation12 + $0x58] sm:$0xff]
    %v1932 = vld [vmem:[#allocation12 + $0x60] sm:$0xff]
    %v1933 = vld [vmem:[#allocation12 + $0x68] sm:$0xff]
    %v1934 = vld [vmem:[#allocation12 + $0x70] sm:$0xff]
    %v1935 = vld [vmem:[#allocation12 + $0x78] sm:$0xff]
    %v1936 = vld [vmem:[#allocation14] sm:$0x1]
    %v1938 = vlaneseq
    %v1939 = vshrl.u32 %v1938, 7
    %v1940 = vsub.s32 0, %v1939
    %v1941 = vrot.slane %v1936, %v1940
    %1943 = vmatprep.subr.mxu0 0.0
    %1944 = vmatpush1.msra.mxu0 %v1935
    %1945 = vmatprep.subr.mxu0 0.0
    %1946 = vmatpush1.msra.mxu0 %v1934
    %1947 = vmatprep.subr.mxu0 0.0
    %1948 = vmatpush1.msra.mxu0 %v1933
    %1949 = vmatprep.subr.mxu0 0.0
    %1950 = vmatpush1.msra.mxu0 %v1932
    %1951 = vmatprep.subr.mxu0 0.0
    %1952 = vmatpush1.msra.mxu0 %v1931
    %1953 = vmatprep.subr.mxu0 0.0
    %1954 = vmatpush1.msra.mxu0 %v1930
    %1955 = vmatprep.subr.mxu0 0.0
    %1956 = vmatpush1.msra.mxu0 %v1929
    %1957 = vmatprep.subr.mxu0 0.0
    %1958 = vmatpush1.msra.mxu0 %v1928
    %1959 = vmatprep.subr.mxu0 0.0
    %1960 = vmatpush1.msra.mxu0 %v1927
    %1961 = vmatprep.subr.mxu0 0.0
    %1962 = vmatpush1.msra.mxu0 %v1926
    %1963 = vmatprep.subr.mxu0 0.0
    %1964 = vmatpush1.msra.mxu0 %v1925
    %1965 = vmatprep.subr.mxu0 0.0
    %1966 = vmatpush1.msra.mxu0 %v1924
    %1967 = vmatprep.subr.mxu0 0.0
    %1968 = vmatpush1.msra.mxu0 %v1923
    %1969 = vmatprep.subr.mxu0 0.0
    %1970 = vmatpush1.msra.mxu0 %v1922
    %1971 = vmatprep.subr.mxu0 0.0
    %1972 = vmatpush1.msra.mxu0 %v1921
    %1973 = vmatprep.subr.mxu0 0.0
    %1974 = vmatpush1.msra.mxu0 %v1920
    %1975 = vmatprep.subr.mxu0 0.0
    %1976 = vmatpush2.msra.mxu0 0.0
    %1977 = vmatprep.subr.mxu0 0.0
    %1978 = vmatpush2.msra.mxu0 0.0
    %1979 = vmatprep.subr.mxu0 0.0
    %1980 = vmatpush2.msra.mxu0 0.0
    %1981 = vmatprep.subr.mxu0 0.0
    %1982 = vmatpush2.msra.mxu0 0.0
    %1983 = vmatprep.subr.mxu0 0.0
    %1984 = vmatpush2.msra.mxu0 0.0
    %1985 = vmatprep.subr.mxu0 0.0
    %1986 = vmatpush2.msra.mxu0 0.0
    %1987 = vmatprep.subr.mxu0 0.0
    %1988 = vmatpush2.msra.mxu0 0.0
    %1989 = vmatprep.subr.mxu0 0.0
    %1990 = vmatpush2.msra.mxu0 0.0
    %1991 = vmatprep.subr.mxu0 0.0
    %1992 = vmatpush2.msra.mxu0 0.0
    %1993 = vmatprep.subr.mxu0 0.0
    %1994 = vmatpush2.msra.mxu0 0.0
    %1995 = vmatprep.subr.mxu0 0.0
    %1996 = vmatpush2.msra.mxu0 0.0
    %1997 = vmatprep.subr.mxu0 0.0
    %1998 = vmatpush2.msra.mxu0 0.0
    %1999 = vmatprep.subr.mxu0 0.0
    %2000 = vmatpush2.msra.mxu0 0.0
    %2001 = vmatprep.subr.mxu0 0.0
    %2002 = vmatpush2.msra.mxu0 0.0
    %2003 = vmatprep.subr.mxu0 0.0
    %2004 = vmatpush2.msra.mxu0 0.0
    %2005 = vmatprep.subr.mxu0 0.0
    %2006 = vmatpush2.msra.mxu0 0.0
    %2007 = vmatprep.mubr.f32.mxu0 0.0
    %2008 = vmatmul.mubr.f32.gmra.mxu0 %v1919
    %v2009 = vpop.f32.mrf.mxu0
    %v2010 = vadd.f32 %v1941, %v2009
    %v2011 = vpop.f32.mrf.mxu0
    %2012 = vdwg.mxu0
    %vm2013 = vcmp.gt.f32.partialorder %v2010, 0.0
    %v2014 = vmul.f32 %v2010, 0.01
    %v2015 = vsel %vm2013, %v2010, %v2014
    %v2016 = vld [vmem:[%s11] sm:$0xff]
    %v2017 = vld [vmem:[%s11 + $0x8] sm:$0xff]
    %v2018 = vld [vmem:[%s11 + $0x10] sm:$0xff]
    %v2019 = vld [vmem:[%s11 + $0x18] sm:$0xff]
    %v2020 = vld [vmem:[%s11 + $0x20] sm:$0xff]
    %v2021 = vld [vmem:[%s11 + $0x28] sm:$0xff]
    %v2022 = vld [vmem:[%s11 + $0x30] sm:$0xff]
    %v2023 = vld [vmem:[%s11 + $0x38] sm:$0xff]
    %v2024 = vld [vmem:[%s11 + $0x40] sm:$0xff]
    %v2025 = vld [vmem:[%s11 + $0x48] sm:$0xff]
    %v2026 = vld [vmem:[%s11 + $0x50] sm:$0xff]
    %v2027 = vld [vmem:[%s11 + $0x58] sm:$0xff]
    %v2028 = vld [vmem:[%s11 + $0x60] sm:$0xff]
    %v2029 = vld [vmem:[%s11 + $0x68] sm:$0xff]
    %v2030 = vld [vmem:[%s11 + $0x70] sm:$0xff]
    %v2031 = vld [vmem:[%s11 + $0x78] sm:$0xff]
    %v2032 = vld [vmem:[%s12] sm:$0x1]
    %v2034 = vlaneseq
    %v2035 = vshrl.u32 %v2034, 7
    %v2036 = vsub.s32 0, %v2035
    %v2037 = vrot.slane %v2032, %v2036
    %2039 = vmatprep.subr.mxu0 0.0
    %2040 = vmatpush1.msra.mxu0 %v2031
    %2041 = vmatprep.subr.mxu0 0.0
    %2042 = vmatpush1.msra.mxu0 %v2030
    %2043 = vmatprep.subr.mxu0 0.0
    %2044 = vmatpush1.msra.mxu0 %v2029
    %2045 = vmatprep.subr.mxu0 0.0
    %2046 = vmatpush1.msra.mxu0 %v2028
    %2047 = vmatprep.subr.mxu0 0.0
    %2048 = vmatpush1.msra.mxu0 %v2027
    %2049 = vmatprep.subr.mxu0 0.0
    %2050 = vmatpush1.msra.mxu0 %v2026
    %2051 = vmatprep.subr.mxu0 0.0
    %2052 = vmatpush1.msra.mxu0 %v2025
    %2053 = vmatprep.subr.mxu0 0.0
    %2054 = vmatpush1.msra.mxu0 %v2024
    %2055 = vmatprep.subr.mxu0 0.0
    %2056 = vmatpush1.msra.mxu0 %v2023
    %2057 = vmatprep.subr.mxu0 0.0
    %2058 = vmatpush1.msra.mxu0 %v2022
    %2059 = vmatprep.subr.mxu0 0.0
    %2060 = vmatpush1.msra.mxu0 %v2021
    %2061 = vmatprep.subr.mxu0 0.0
    %2062 = vmatpush1.msra.mxu0 %v2020
    %2063 = vmatprep.subr.mxu0 0.0
    %2064 = vmatpush1.msra.mxu0 %v2019
    %2065 = vmatprep.subr.mxu0 0.0
    %2066 = vmatpush1.msra.mxu0 %v2018
    %2067 = vmatprep.subr.mxu0 0.0
    %2068 = vmatpush1.msra.mxu0 %v2017
    %2069 = vmatprep.subr.mxu0 0.0
    %2070 = vmatpush1.msra.mxu0 %v2016
    %2071 = vmatprep.subr.mxu0 0.0
    %2072 = vmatpush2.msra.mxu0 0.0
    %2073 = vmatprep.subr.mxu0 0.0
    %2074 = vmatpush2.msra.mxu0 0.0
    %2075 = vmatprep.subr.mxu0 0.0
    %2076 = vmatpush2.msra.mxu0 0.0
    %2077 = vmatprep.subr.mxu0 0.0
    %2078 = vmatpush2.msra.mxu0 0.0
    %2079 = vmatprep.subr.mxu0 0.0
    %2080 = vmatpush2.msra.mxu0 0.0
    %2081 = vmatprep.subr.mxu0 0.0
    %2082 = vmatpush2.msra.mxu0 0.0
    %2083 = vmatprep.subr.mxu0 0.0
    %2084 = vmatpush2.msra.mxu0 0.0
    %2085 = vmatprep.subr.mxu0 0.0
    %2086 = vmatpush2.msra.mxu0 0.0
    %2087 = vmatprep.subr.mxu0 0.0
    %2088 = vmatpush2.msra.mxu0 0.0
    %2089 = vmatprep.subr.mxu0 0.0
    %2090 = vmatpush2.msra.mxu0 0.0
    %2091 = vmatprep.subr.mxu0 0.0
    %2092 = vmatpush2.msra.mxu0 0.0
    %2093 = vmatprep.subr.mxu0 0.0
    %2094 = vmatpush2.msra.mxu0 0.0
    %2095 = vmatprep.subr.mxu0 0.0
    %2096 = vmatpush2.msra.mxu0 0.0
    %2097 = vmatprep.subr.mxu0 0.0
    %2098 = vmatpush2.msra.mxu0 0.0
    %2099 = vmatprep.subr.mxu0 0.0
    %2100 = vmatpush2.msra.mxu0 0.0
    %2101 = vmatprep.subr.mxu0 0.0
    %2102 = vmatpush2.msra.mxu0 0.0
    %2103 = vmatprep.mubr.f32.mxu0 0.0
    %2104 = vmatmul.mubr.f32.gmra.mxu0 %v2015
    %v2105 = vpop.f32.mrf.mxu0
    %v2106 = vadd.f32 %v2037, %v2105
    %v2107 = vpop.f32.mrf.mxu0
    %2108 = vdwg.mxu0
    %2109 = vst [vmem:[%s13] sm:$0xff] %v2106
    // Predicated region
    $region82: #{bilstm_model_forward.1} parent=1 // pred_check
      _
    $region83: #{bilstm_model_forward.1} parent=1 // pred_check_branch
      %2111 = sbr.rel (0) target = $region85
    $region84: #{bilstm_model_forward.1} parent=1 // pred_region
      _
    $region85: #{bilstm_model_forward.1} parent=1 // pred_fallthru
      _
    // Predicated region
    $region86: #{bilstm_model_forward.1} parent=1 // pred_check
      _
    $region87: #{bilstm_model_forward.1} parent=1 // pred_check_branch
      %2113 = sbr.rel (0) target = $region89
    $region88: #{bilstm_model_forward.1} parent=1 // pred_region
      _
    $region89: #{bilstm_model_forward.1} parent=1 // pred_fallthru
      _
    %2114 = vsyncpa [#allocation5], 1
    %2115 = vsyncpa [#allocation7], 1
    %2116 = vsyncpa [#allocation10], 1
    %2117 = vsyncpa [#allocation13], 1

</llo_original>
